<compile_context>
chip_gen: v7x
topology: tpu7x:2x2x1
jax: 0.10.0
libtpu: 0.0.40
codegen_flags: <defaults>
</compile_context>

<pallas_src>
from functools import partial

import numpy as np
import jax
import jax.numpy as jnp
from jax import lax
from jax.experimental import pallas as pl
from jax.experimental.pallas import tpu as pltpu


# ----------------------------------------------------------------------------
# Host-side tree utilities (pure Python traversal, same role as the reference
# prepare_trees called inside forward()).
# ----------------------------------------------------------------------------
def features(x):
    return x[0]


def left_child(x):
    if len(x) != 3:
        return None
    return x[1]


def right_child(x):
    if len(x) != 3:
        return None
    return x[2]


def prepare_trees(batch_trees, features_fn, left_fn, right_fn, in_channels):
    """Flatten each tree (preorder), prepend a zero node at index 0 and build
    (self, left, right) index triples (0 == null node).  All trees in a batch
    are assumed to have the same node count (true for the synthetic input).

    Returns numpy arrays:
      data: (B, N, C) float32   (N = num_nodes + 1, node 0 is all zeros)
      idx:  (B, N, 3) int32     (row 0 is a dummy (0,0,0) triple)
    """
    all_data, all_idx = [], []
    for tree in batch_trees:
        feats, triples = [], []

        def visit(node):
            my = len(feats) + 1  # 1-based; 0 is the null node
            feats.append(np.asarray(features_fn(node), dtype=np.float32))
            slot = len(triples)
            triples.append(None)
            l, r = left_fn(node), right_fn(node)
            li = visit(l) if l is not None else 0
            ri = visit(r) if r is not None else 0
            triples[slot] = (my, li, ri)
            return my

        visit(tree)
        data = np.concatenate(
            [np.zeros((1, in_channels), np.float32), np.stack(feats)], axis=0)
        idx = np.concatenate(
            [np.zeros((1, 3), np.int32), np.asarray(triples, np.int32)], axis=0)
        all_data.append(data)
        all_idx.append(idx)
    return np.stack(all_data), np.stack(all_idx)


def fuse_inputs(tree_inputs):
    """Fuse the K variadic (data, idx) batches into the fused-kernel inputs.

    Tree ordering t = b*K + k (b-major) so the (B*K, 64) embeddings map
    directly onto torch.stack(embeddings, dim=1).view(B, K, 64).

    Returns:
      gathered1: (M, 3*C) f32 host-pre-gathered [self|left|right] features
                 (layer-1 gather folded into prepare), M = B*K*N.  Kept f32:
                 the raw features are not exactly representable in bf16.
      Gblk:      (3, T, N, N) bf16 block-diagonal one-hot gather operators
                 (per-tree local row indices), reused by conv layers 2 and 3.
                 0/1 entries are exact in bf16; this halves DMA bytes / VMEM.
      nmask:     (M, 1) f32, 0 at each tree's null-node row, 1 elsewhere.
    """
    K = len(tree_inputs)
    B, N, C = tree_inputs[0][0].shape
    T = B * K
    M = T * N
    # TODO(synk): pad with whole null trees if B*K*N is not a multiple of 8.
    assert M % 8 == 0, "B*K*N must be a multiple of 8 for clean sublane tiling"
    gathered1 = np.zeros((M, 3 * C), np.float32)
    Gblk = np.zeros((3, T, N, N), np.float32)
    nmask = np.ones((M, 1), np.float32)
    rows = np.arange(N)
    for b in range(B):
        for k in range(K):
            t = b * K + k
            base = t * N
            data = tree_inputs[k][0][b]            # (N, C), row 0 all zeros
            idx = tree_inputs[k][1][b]             # (N, 3) local indices
            gathered1[base:base + N] = data[idx].reshape(N, 3 * C)
            for tap in range(3):
                Gblk[tap, t, rows, idx[:, tap]] = 1.0
            nmask[base, 0] = 0.0                   # fresh zero vec per conv output
    return (jnp.asarray(gathered1),
            jnp.asarray(Gblk, dtype=jnp.bfloat16),
            jnp.asarray(nmask))


# ----------------------------------------------------------------------------
# Fused kernel: tree-conv stack + deep-set aggregator + final MLP head
# ----------------------------------------------------------------------------
def tcnnds_kernel(g1_ref, G_ref, nmask_ref,
                  w1_ref, b1_ref, w2_ref, b2_ref, w3_ref, b3_ref,
                  wp1_ref, bp1_ref, wp2_ref, bp2_ref,
                  wr1_ref, br1_ref, wr2_ref, br2_ref,
                  wm1_ref, bm1_ref, wm2_ref, bm2_ref,
                  out_ref, *, B, K, N, B_pad):
    T = B * K
    M = T * N
    nmask = nmask_ref[...]                                    # (M, 1)

    def layernorm_act(h, leaky):
        # TreeLayerNorm: per-tree stats over (nodes x channels), unbiased std,
        # eps added to the std (torch semantics), then optional LeakyReLU.
        C = h.shape[1]
        h3 = h.reshape(T, N, C)
        cnt = N * C
        mean = jnp.sum(jnp.sum(h3, axis=2, keepdims=True),
                       axis=1, keepdims=True) * (1.0 / cnt)   # (T,1,1)
        d = h3 - mean
        var = jnp.sum(jnp.sum(d * d, axis=2, keepdims=True),
                      axis=1, keepdims=True) * (1.0 / (cnt - 1))
        inv = pl.reciprocal(jnp.sqrt(var) + 1e-5, approx=False)  # T scalars only
        hn = (d * inv).reshape(M, C)
        if leaky:
            hn = jnp.where(hn > 0, hn, 0.01 * hn)              # LeakyReLU(0.01)
        return hn

    # --- Conv layer 1: host-pre-gathered [self|left|right] -> one MXU push.
    h = jnp.dot(g1_ref[...], w1_ref[...], preferred_element_type=jnp.float32)
    h = (h + b1_ref[...]) * nmask                              # fresh zero row/tree
    h = layernorm_act(h, True)                                  # (M, 256)

    def conv_gather(h, w_ref, b_ref):
        # BinaryTreeConv, project-then-gather order: per-tap projection
        # contracts over C_in, then the block-diagonal one-hot gather acts on
        # the (T, N, C_out) projection — the N^2-scaling matmul contracts over
        # the *smaller* C_out, and no lane-axis concatenate is needed.
        C_out = w_ref.shape[2]
        acc = None
        for tap in range(3):                                    # static unroll
            proj = jnp.dot(h, w_ref[tap],
                           preferred_element_type=jnp.float32)  # (M, C_out)
            proj = proj.reshape(T, N, C_out)
            g = G_ref[tap].astype(jnp.float32)                  # bf16 -> f32 (exact)
            term = jnp.einsum('tnm,tmc->tnc', g, proj,
                              preferred_element_type=jnp.float32)
            acc = term if acc is None else acc + term
        return (acc.reshape(M, C_out) + b_ref[...]) * nmask

    h = layernorm_act(conv_gather(h, w2_ref, b2_ref), True)    # (M, 128)
    h = layernorm_act(conv_gather(h, w3_ref, b3_ref), False)   # (M, 64)

    # DynamicPooling: max over the node axis, per tree.
    emb = jnp.max(h.reshape(T, N, 64), axis=1)                 # (B*K, 64)

    def linear(v, w_ref, b_ref, act):
        o = jnp.dot(v, w_ref[...], preferred_element_type=jnp.float32) + b_ref[...]
        return jnp.maximum(o, 0.0) if act else o

    # DeepSetAggregator phi over all B*K rows at once: 64 -> 128 -> 32.
    p = linear(linear(emb, wp1_ref, bp1_ref, True), wp2_ref, bp2_ref, False)

    # Sum over the set (K) dimension: reshape + XLU sum (no selector matmul).
    agg = jnp.sum(p.reshape(B, K, 32), axis=1)                  # (B, 32)

    # Pad batch rows to a full sublane tile so the rho/final-MLP matmuls and
    # the output store run on full (8, 128)-aligned tiles (wrapper slices).
    if B_pad > B:
        agg = jnp.concatenate(
            [agg, jnp.zeros((B_pad - B, 32), jnp.float32)], axis=0)

    # rho MLP (32 -> 64 -> 64) and final MLP (64 -> 32 -> 2, padded to 128).
    r = linear(linear(agg, wr1_ref, br1_ref, True), wr2_ref, br2_ref, False)
    o = linear(linear(r, wm1_ref, bm1_ref, True), wm2_ref, bm2_ref, False)  # (B_pad,128)

    # Column 0 = mean, column 1 = exp(log_var); padded columns/rows stay benign.
    col = lax.broadcasted_iota(jnp.int32, o.shape, 1)
    is_var = col == 1
    safe = jnp.where(is_var, o, 0.0)              # no exp() on the mean column
    out_ref[...] = jnp.where(is_var, jnp.exp(safe), o)


def _full_spec(x):
    return pl.BlockSpec(x.shape, lambda i, _nd=x.ndim: (0,) * _nd)


@partial(jax.jit, static_argnames=("B", "K", "N", "B_pad"))
def tcnnds_forward(gathered1, Gblk, nmask, tp, hp, *, B, K, N, B_pad):
    operands = (gathered1, Gblk, nmask,
                tp["w1"], tp["b1"], tp["w2"], tp["b2"], tp["w3"], tp["b3"],
                hp["wp1"], hp["bp1"], hp["wp2"], hp["bp2"],
                hp["wr1"], hp["br1"], hp["wr2"], hp["br2"],
                hp["wm1"], hp["bm1"], hp["wm2"], hp["bm2"])
    out = pl.pallas_call(
        partial(tcnnds_kernel, B=B, K=K, N=N, B_pad=B_pad),
        out_shape=jax.ShapeDtypeStruct((B_pad, 128), jnp.float32),
        grid=(1,),
        in_specs=[_full_spec(x) for x in operands],
        out_specs=pl.BlockSpec((B_pad, 128), lambda i: (0, 0)),
        compiler_params=pltpu.CompilerParams(
            dimension_semantics=("arbitrary",)),
    )(*operands)
    return out[:B, 0], out[:B, 1]      # (mean, exp(log_var))


# ----------------------------------------------------------------------------
# Deterministic parameter init (synthetic; shapes follow TCNNDS.__init__)
# ----------------------------------------------------------------------------
def init_params(key, in_channels):
    def dense(k, shape, scale=0.1):
        return jax.random.normal(k, shape, jnp.float32) * scale

    ks = jax.random.split(key, 18)
    # Conv1d(C_in, C_out, k=3, stride=3) weights:
    #   layer 1: stacked (3*C_in, C_out) — host pre-gathers [self|left|right].
    #   layers 2/3: per-tap (3, C_in, C_out) — kernel projects per tap, then
    #   applies the block-diagonal gather to the projected output.
    tree_params = dict(
        w1=dense(ks[0], (3, in_channels, 256)).reshape(3 * in_channels, 256),
        b1=dense(ks[1], (1, 256)),
        w2=dense(ks[2], (3, 256, 128)),
        b2=dense(ks[3], (1, 128)),
        w3=dense(ks[4], (3, 128, 64)),
        b3=dense(ks[5], (1, 64)),
    )
    # Final Linear padded from 2 -> 128 output columns (zeros) so the kernel's
    # single output store is lane-dense; wrapper reads columns 0 and 1 only.
    wm2 = dense(ks[16], (32, 2))
    bm2 = dense(ks[17], (1, 2))
    head_params = dict(
        wp1=dense(ks[6], (64, 128)),  bp1=dense(ks[7], (1, 128)),   # phi
        wp2=dense(ks[8], (128, 32)),  bp2=dense(ks[9], (1, 32)),
        wr1=dense(ks[10], (32, 64)),  br1=dense(ks[11], (1, 64)),   # rho
        wr2=dense(ks[12], (64, 64)),  br2=dense(ks[13], (1, 64)),
        wm1=dense(ks[14], (64, 32)),  bm1=dense(ks[15], (1, 32)),   # final MLP
        wm2=jnp.pad(wm2, ((0, 0), (0, 126))),
        bm2=jnp.pad(bm2, ((0, 0), (0, 126))),
    )
    return tree_params, head_params


def make_tree(key, c):
    """Complete binary tree, 7 nodes: node = (features, left, right) / (features,)."""
    keys = jax.random.split(key, 7)
    f = [np.asarray(jax.random.normal(k, (c,), jnp.float32)) for k in keys]
    leaf = lambda v: (v,)
    return (f[0],
            (f[1], leaf(f[2]), leaf(f[3])),
            (f[4], leaf(f[5]), leaf(f[6])))


if __name__ == "__main__":
    B = 2            # batch size (number of trees per variadic input)
    K = 2            # number of variadic inputs to forward()
    C_IN = 4         # in_channels

    key = jax.random.PRNGKey(0)
    pkey, dkey = jax.random.split(key)
    tree_params, head_params = init_params(pkey, C_IN)

    # Build K batches of B trees and prepare them (host-side glue, as in the
    # reference forward()).
    tree_inputs = []
    dkeys = jax.random.split(dkey, K * B)
    for k in range(K):
        batch_trees = [make_tree(dkeys[k * B + b], C_IN) for b in range(B)]
        data, idx = prepare_trees(batch_trees, features, left_child,
                                  right_child, C_IN)
        tree_inputs.append((data, idx))

    gathered1, Gblk, nmask = fuse_inputs(tree_inputs)
    N = tree_inputs[0][0].shape[1]   # nodes per tree incl. the null node (= 8)
    B_pad = ((B + 7) // 8) * 8       # head rows padded to a full sublane tile

    mean, var = tcnnds_forward(gathered1, Gblk, nmask, tree_params, head_params,
                               B=B, K=K, N=N, B_pad=B_pad)
    jax.block_until_ready((mean, var))

    assert mean.shape == (B,) and var.shape == (B,)
    assert bool(jnp.all(jnp.isfinite(mean))) and bool(jnp.all(var > 0))
    print("KERNEL_OK")
</pallas_src>

<mosaic_0001>
module attributes {stable_mosaic.version = 11 : i64} {
  func.func @tcnnds_kernel(%arg0: i32, %arg1: memref<32x12xf32, #tpu.memory_space<vmem>>, %arg2: memref<3x4x8x8xbf16, #tpu.memory_space<vmem>>, %arg3: memref<32x1xf32, #tpu.memory_space<vmem>>, %arg4: memref<12x256xf32, #tpu.memory_space<vmem>>, %arg5: memref<1x256xf32, #tpu.memory_space<vmem>>, %arg6: memref<3x256x128xf32, #tpu.memory_space<vmem>>, %arg7: memref<1x128xf32, #tpu.memory_space<vmem>>, %arg8: memref<3x128x64xf32, #tpu.memory_space<vmem>>, %arg9: memref<1x64xf32, #tpu.memory_space<vmem>>, %arg10: memref<64x128xf32, #tpu.memory_space<vmem>>, %arg11: memref<1x128xf32, #tpu.memory_space<vmem>>, %arg12: memref<128x32xf32, #tpu.memory_space<vmem>>, %arg13: memref<1x32xf32, #tpu.memory_space<vmem>>, %arg14: memref<32x64xf32, #tpu.memory_space<vmem>>, %arg15: memref<1x64xf32, #tpu.memory_space<vmem>>, %arg16: memref<64x64xf32, #tpu.memory_space<vmem>>, %arg17: memref<1x64xf32, #tpu.memory_space<vmem>>, %arg18: memref<64x32xf32, #tpu.memory_space<vmem>>, %arg19: memref<1x32xf32, #tpu.memory_space<vmem>>, %arg20: memref<32x128xf32, #tpu.memory_space<vmem>>, %arg21: memref<1x128xf32, #tpu.memory_space<vmem>>, %arg22: memref<8x128xf32, #tpu.memory_space<vmem>>) attributes {dimension_semantics = [#tpu.dimension_semantics<arbitrary>], iteration_bounds = array<i64: 1>, scalar_prefetch = 0 : i64, scratch_operands = 0 : i64, tpu.core_type = #tpu.core_type<tc>, window_params = [{pipeline_mode = #tpu.pipeline_mode<synchronous>, transform_indices = @transform_0, window_bounds = array<i64: 32, 12>}, {pipeline_mode = #tpu.pipeline_mode<synchronous>, transform_indices = @transform_1, window_bounds = array<i64: 3, 4, 8, 8>}, {pipeline_mode = #tpu.pipeline_mode<synchronous>, transform_indices = @transform_2, window_bounds = array<i64: 32, 1>}, {pipeline_mode = #tpu.pipeline_mode<synchronous>, transform_indices = @transform_3, window_bounds = array<i64: 12, 256>}, {pipeline_mode = #tpu.pipeline_mode<synchronous>, transform_indices = @transform_4, window_bounds = array<i64: 1, 256>}, {pipeline_mode = #tpu.pipeline_mode<synchronous>, transform_indices = @transform_5, window_bounds = array<i64: 3, 256, 128>}, {pipeline_mode = #tpu.pipeline_mode<synchronous>, transform_indices = @transform_6, window_bounds = array<i64: 1, 128>}, {pipeline_mode = #tpu.pipeline_mode<synchronous>, transform_indices = @transform_7, window_bounds = array<i64: 3, 128, 64>}, {pipeline_mode = #tpu.pipeline_mode<synchronous>, transform_indices = @transform_8, window_bounds = array<i64: 1, 64>}, {pipeline_mode = #tpu.pipeline_mode<synchronous>, transform_indices = @transform_9, window_bounds = array<i64: 64, 128>}, {pipeline_mode = #tpu.pipeline_mode<synchronous>, transform_indices = @transform_10, window_bounds = array<i64: 1, 128>}, {pipeline_mode = #tpu.pipeline_mode<synchronous>, transform_indices = @transform_11, window_bounds = array<i64: 128, 32>}, {pipeline_mode = #tpu.pipeline_mode<synchronous>, transform_indices = @transform_12, window_bounds = array<i64: 1, 32>}, {pipeline_mode = #tpu.pipeline_mode<synchronous>, transform_indices = @transform_13, window_bounds = array<i64: 32, 64>}, {pipeline_mode = #tpu.pipeline_mode<synchronous>, transform_indices = @transform_14, window_bounds = array<i64: 1, 64>}, {pipeline_mode = #tpu.pipeline_mode<synchronous>, transform_indices = @transform_15, window_bounds = array<i64: 64, 64>}, {pipeline_mode = #tpu.pipeline_mode<synchronous>, transform_indices = @transform_16, window_bounds = array<i64: 1, 64>}, {pipeline_mode = #tpu.pipeline_mode<synchronous>, transform_indices = @transform_17, window_bounds = array<i64: 64, 32>}, {pipeline_mode = #tpu.pipeline_mode<synchronous>, transform_indices = @transform_18, window_bounds = array<i64: 1, 32>}, {pipeline_mode = #tpu.pipeline_mode<synchronous>, transform_indices = @transform_19, window_bounds = array<i64: 32, 128>}, {pipeline_mode = #tpu.pipeline_mode<synchronous>, transform_indices = @transform_20, window_bounds = array<i64: 1, 128>}, {pipeline_mode = #tpu.pipeline_mode<synchronous>, transform_indices = @transform_21, window_bounds = array<i64: 8, 128>}]} {
    %c0 = arith.constant 0 : index
    %c0_0 = arith.constant 0 : index
    %0 = vector.load %arg3[%c0, %c0_0] : memref<32x1xf32, #tpu.memory_space<vmem>>, vector<32x1xf32>
    %c0_1 = arith.constant 0 : index
    %c0_2 = arith.constant 0 : index
    %1 = vector.load %arg1[%c0_1, %c0_2] : memref<32x12xf32, #tpu.memory_space<vmem>>, vector<32x12xf32>
    %c0_3 = arith.constant 0 : index
    %c0_4 = arith.constant 0 : index
    %2 = vector.load %arg4[%c0_3, %c0_4] : memref<12x256xf32, #tpu.memory_space<vmem>>, vector<12x256xf32>
    %cst = arith.constant dense<0.000000e+00> : vector<32x256xf32>
    %3 = tpu.matmul %1, %2, %cst {dimension_numbers = #tpu.dot_dimension_numbers<[1], [0], [0], [1], [0, 0, 1, 1], [], []>} : vector<32x12xf32>, vector<12x256xf32>, vector<32x256xf32> -> vector<32x256xf32>
    %c0_5 = arith.constant 0 : index
    %c0_6 = arith.constant 0 : index
    %4 = vector.load %arg5[%c0_5, %c0_6] : memref<1x256xf32, #tpu.memory_space<vmem>>, vector<1x256xf32>
    %5 = vector.broadcast %4 : vector<1x256xf32> to vector<32x256xf32>
    %6 = arith.addf %3, %5 : vector<32x256xf32>
    %7 = vector.broadcast %0 : vector<32x1xf32> to vector<32x256xf32>
    %8 = arith.mulf %6, %7 : vector<32x256xf32>
    %9 = vector.shape_cast %8 : vector<32x256xf32> to vector<4x8x256xf32>
    %cst_7 = arith.constant dense<0.000000e+00> : vector<4x8xf32>
    %10 = vector.multi_reduction <add>, %9, %cst_7 [2] : vector<4x8x256xf32> to vector<4x8xf32>
    %11 = vector.shape_cast %10 : vector<4x8xf32> to vector<4x8x1xf32>
    %cst_8 = arith.constant dense<0.000000e+00> : vector<4x1xf32>
    %12 = vector.multi_reduction <add>, %11, %cst_8 [1] : vector<4x8x1xf32> to vector<4x1xf32>
    %13 = vector.shape_cast %12 : vector<4x1xf32> to vector<4x1x1xf32>
    %cst_9 = arith.constant 4.8828125E-4 : f32
    %14 = vector.broadcast %cst_9 : f32 to vector<4x1x1xf32>
    %15 = arith.mulf %13, %14 : vector<4x1x1xf32>
    %16 = vector.broadcast %15 : vector<4x1x1xf32> to vector<4x8x256xf32>
    %17 = arith.subf %9, %16 : vector<4x8x256xf32>
    %18 = arith.mulf %17, %17 : vector<4x8x256xf32>
    %cst_10 = arith.constant dense<0.000000e+00> : vector<4x8xf32>
    %19 = vector.multi_reduction <add>, %18, %cst_10 [2] : vector<4x8x256xf32> to vector<4x8xf32>
    %20 = vector.shape_cast %19 : vector<4x8xf32> to vector<4x8x1xf32>
    %cst_11 = arith.constant dense<0.000000e+00> : vector<4x1xf32>
    %21 = vector.multi_reduction <add>, %20, %cst_11 [1] : vector<4x8x1xf32> to vector<4x1xf32>
    %22 = vector.shape_cast %21 : vector<4x1xf32> to vector<4x1x1xf32>
    %cst_12 = arith.constant 4.88519785E-4 : f32
    %23 = vector.broadcast %cst_12 : f32 to vector<4x1x1xf32>
    %24 = arith.mulf %22, %23 : vector<4x1x1xf32>
    %25 = math.sqrt %24 : vector<4x1x1xf32>
    %cst_13 = arith.constant 9.99999974E-6 : f32
    %26 = vector.broadcast %cst_13 : f32 to vector<4x1x1xf32>
    %27 = arith.addf %25, %26 : vector<4x1x1xf32>
    %28 = tpu.reciprocal %27 : vector<4x1x1xf32> -> vector<4x1x1xf32>
    %29 = vector.broadcast %28 : vector<4x1x1xf32> to vector<4x8x256xf32>
    %30 = arith.mulf %17, %29 : vector<4x8x256xf32>
    %31 = vector.shape_cast %30 : vector<4x8x256xf32> to vector<32x256xf32>
    %cst_14 = arith.constant 0.000000e+00 : f32
    %32 = vector.broadcast %cst_14 : f32 to vector<32x256xf32>
    %33 = arith.cmpf ogt, %31, %32 : vector<32x256xf32>
    %cst_15 = arith.constant 0.00999999977 : f32
    %34 = vector.broadcast %cst_15 : f32 to vector<32x256xf32>
    %35 = arith.mulf %34, %31 : vector<32x256xf32>
    %36 = arith.select %33, %31, %35 : vector<32x256xi1>, vector<32x256xf32>
    %c0_16 = arith.constant 0 : index
    %c0_17 = arith.constant 0 : index
    %c0_18 = arith.constant 0 : index
    %37 = vector.load %arg6[%c0_16, %c0_17, %c0_18] : memref<3x256x128xf32, #tpu.memory_space<vmem>>, vector<1x256x128xf32>
    %38 = vector.shape_cast %37 : vector<1x256x128xf32> to vector<256x128xf32>
    %cst_19 = arith.constant dense<0.000000e+00> : vector<32x128xf32>
    %39 = tpu.matmul %36, %38, %cst_19 {dimension_numbers = #tpu.dot_dimension_numbers<[1], [0], [0], [1], [0, 0, 1, 1], [], []>} : vector<32x256xf32>, vector<256x128xf32>, vector<32x128xf32> -> vector<32x128xf32>
    %40 = vector.shape_cast %39 : vector<32x128xf32> to vector<4x8x128xf32>
    %c0_20 = arith.constant 0 : index
    %c0_21 = arith.constant 0 : index
    %c0_22 = arith.constant 0 : index
    %c0_23 = arith.constant 0 : index
    %41 = vector.load %arg2[%c0_20, %c0_21, %c0_22, %c0_23] : memref<3x4x8x8xbf16, #tpu.memory_space<vmem>>, vector<1x4x8x8xbf16>
    %42 = vector.shape_cast %41 : vector<1x4x8x8xbf16> to vector<4x8x8xbf16>
    %43 = arith.extf %42 : vector<4x8x8xbf16> to vector<4x8x8xf32>
    "tpu.trace_start"() <{level = 10 : i32, message = "tnm,tmc->tnc"}> : () -> ()
    %cst_24 = arith.constant dense<0.000000e+00> : vector<4x8x128xf32>
    %44 = tpu.matmul %43, %40, %cst_24 {dimension_numbers = #tpu.dot_dimension_numbers<[2], [1], [1], [2], [0, 0, 0, 1, 1, 2], [0], [0]>} : vector<4x8x8xf32>, vector<4x8x128xf32>, vector<4x8x128xf32> -> vector<4x8x128xf32>
    "tpu.trace_stop"() : () -> ()
    %c1 = arith.constant 1 : index
    %c0_25 = arith.constant 0 : index
    %c0_26 = arith.constant 0 : index
    %45 = vector.load %arg6[%c1, %c0_25, %c0_26] : memref<3x256x128xf32, #tpu.memory_space<vmem>>, vector<1x256x128xf32>
    %46 = vector.shape_cast %45 : vector<1x256x128xf32> to vector<256x128xf32>
    %cst_27 = arith.constant dense<0.000000e+00> : vector<32x128xf32>
    %47 = tpu.matmul %36, %46, %cst_27 {dimension_numbers = #tpu.dot_dimension_numbers<[1], [0], [0], [1], [0, 0, 1, 1], [], []>} : vector<32x256xf32>, vector<256x128xf32>, vector<32x128xf32> -> vector<32x128xf32>
    %48 = vector.shape_cast %47 : vector<32x128xf32> to vector<4x8x128xf32>
    %c1_28 = arith.constant 1 : index
    %c0_29 = arith.constant 0 : index
    %c0_30 = arith.constant 0 : index
    %c0_31 = arith.constant 0 : index
    %49 = vector.load %arg2[%c1_28, %c0_29, %c0_30, %c0_31] : memref<3x4x8x8xbf16, #tpu.memory_space<vmem>>, vector<1x4x8x8xbf16>
    %50 = vector.shape_cast %49 : vector<1x4x8x8xbf16> to vector<4x8x8xbf16>
    %51 = arith.extf %50 : vector<4x8x8xbf16> to vector<4x8x8xf32>
    "tpu.trace_start"() <{level = 10 : i32, message = "tnm,tmc->tnc"}> : () -> ()
    %cst_32 = arith.constant dense<0.000000e+00> : vector<4x8x128xf32>
    %52 = tpu.matmul %51, %48, %cst_32 {dimension_numbers = #tpu.dot_dimension_numbers<[2], [1], [1], [2], [0, 0, 0, 1, 1, 2], [0], [0]>} : vector<4x8x8xf32>, vector<4x8x128xf32>, vector<4x8x128xf32> -> vector<4x8x128xf32>
    "tpu.trace_stop"() : () -> ()
    %53 = arith.addf %44, %52 : vector<4x8x128xf32>
    %c2 = arith.constant 2 : index
    %c0_33 = arith.constant 0 : index
    %c0_34 = arith.constant 0 : index
    %54 = vector.load %arg6[%c2, %c0_33, %c0_34] : memref<3x256x128xf32, #tpu.memory_space<vmem>>, vector<1x256x128xf32>
    %55 = vector.shape_cast %54 : vector<1x256x128xf32> to vector<256x128xf32>
    %cst_35 = arith.constant dense<0.000000e+00> : vector<32x128xf32>
    %56 = tpu.matmul %36, %55, %cst_35 {dimension_numbers = #tpu.dot_dimension_numbers<[1], [0], [0], [1], [0, 0, 1, 1], [], []>} : vector<32x256xf32>, vector<256x128xf32>, vector<32x128xf32> -> vector<32x128xf32>
    %57 = vector.shape_cast %56 : vector<32x128xf32> to vector<4x8x128xf32>
    %c2_36 = arith.constant 2 : index
    %c0_37 = arith.constant 0 : index
    %c0_38 = arith.constant 0 : index
    %c0_39 = arith.constant 0 : index
    %58 = vector.load %arg2[%c2_36, %c0_37, %c0_38, %c0_39] : memref<3x4x8x8xbf16, #tpu.memory_space<vmem>>, vector<1x4x8x8xbf16>
    %59 = vector.shape_cast %58 : vector<1x4x8x8xbf16> to vector<4x8x8xbf16>
    %60 = arith.extf %59 : vector<4x8x8xbf16> to vector<4x8x8xf32>
    "tpu.trace_start"() <{level = 10 : i32, message = "tnm,tmc->tnc"}> : () -> ()
    %cst_40 = arith.constant dense<0.000000e+00> : vector<4x8x128xf32>
    %61 = tpu.matmul %60, %57, %cst_40 {dimension_numbers = #tpu.dot_dimension_numbers<[2], [1], [1], [2], [0, 0, 0, 1, 1, 2], [0], [0]>} : vector<4x8x8xf32>, vector<4x8x128xf32>, vector<4x8x128xf32> -> vector<4x8x128xf32>
    "tpu.trace_stop"() : () -> ()
    %62 = arith.addf %53, %61 : vector<4x8x128xf32>
    %63 = vector.shape_cast %62 : vector<4x8x128xf32> to vector<32x128xf32>
    %c0_41 = arith.constant 0 : index
    %c0_42 = arith.constant 0 : index
    %64 = vector.load %arg7[%c0_41, %c0_42] : memref<1x128xf32, #tpu.memory_space<vmem>>, vector<1x128xf32>
    %65 = vector.broadcast %64 : vector<1x128xf32> to vector<32x128xf32>
    %66 = arith.addf %63, %65 : vector<32x128xf32>
    %67 = vector.broadcast %0 : vector<32x1xf32> to vector<32x128xf32>
    %68 = arith.mulf %66, %67 : vector<32x128xf32>
    %69 = vector.shape_cast %68 : vector<32x128xf32> to vector<4x8x128xf32>
    %cst_43 = arith.constant dense<0.000000e+00> : vector<4x8xf32>
    %70 = vector.multi_reduction <add>, %69, %cst_43 [2] : vector<4x8x128xf32> to vector<4x8xf32>
    %71 = vector.shape_cast %70 : vector<4x8xf32> to vector<4x8x1xf32>
    %cst_44 = arith.constant dense<0.000000e+00> : vector<4x1xf32>
    %72 = vector.multi_reduction <add>, %71, %cst_44 [1] : vector<4x8x1xf32> to vector<4x1xf32>
    %73 = vector.shape_cast %72 : vector<4x1xf32> to vector<4x1x1xf32>
    %cst_45 = arith.constant 9.765625E-4 : f32
    %74 = vector.broadcast %cst_45 : f32 to vector<4x1x1xf32>
    %75 = arith.mulf %73, %74 : vector<4x1x1xf32>
    %76 = vector.broadcast %75 : vector<4x1x1xf32> to vector<4x8x128xf32>
    %77 = arith.subf %69, %76 : vector<4x8x128xf32>
    %78 = arith.mulf %77, %77 : vector<4x8x128xf32>
    %cst_46 = arith.constant dense<0.000000e+00> : vector<4x8xf32>
    %79 = vector.multi_reduction <add>, %78, %cst_46 [2] : vector<4x8x128xf32> to vector<4x8xf32>
    %80 = vector.shape_cast %79 : vector<4x8xf32> to vector<4x8x1xf32>
    %cst_47 = arith.constant dense<0.000000e+00> : vector<4x1xf32>
    %81 = vector.multi_reduction <add>, %80, %cst_47 [1] : vector<4x8x1xf32> to vector<4x1xf32>
    %82 = vector.shape_cast %81 : vector<4x1xf32> to vector<4x1x1xf32>
    %cst_48 = arith.constant 9.77517105E-4 : f32
    %83 = vector.broadcast %cst_48 : f32 to vector<4x1x1xf32>
    %84 = arith.mulf %82, %83 : vector<4x1x1xf32>
    %85 = math.sqrt %84 : vector<4x1x1xf32>
    %cst_49 = arith.constant 9.99999974E-6 : f32
    %86 = vector.broadcast %cst_49 : f32 to vector<4x1x1xf32>
    %87 = arith.addf %85, %86 : vector<4x1x1xf32>
    %88 = tpu.reciprocal %87 : vector<4x1x1xf32> -> vector<4x1x1xf32>
    %89 = vector.broadcast %88 : vector<4x1x1xf32> to vector<4x8x128xf32>
    %90 = arith.mulf %77, %89 : vector<4x8x128xf32>
    %91 = vector.shape_cast %90 : vector<4x8x128xf32> to vector<32x128xf32>
    %cst_50 = arith.constant 0.000000e+00 : f32
    %92 = vector.broadcast %cst_50 : f32 to vector<32x128xf32>
    %93 = arith.cmpf ogt, %91, %92 : vector<32x128xf32>
    %cst_51 = arith.constant 0.00999999977 : f32
    %94 = vector.broadcast %cst_51 : f32 to vector<32x128xf32>
    %95 = arith.mulf %94, %91 : vector<32x128xf32>
    %96 = arith.select %93, %91, %95 : vector<32x128xi1>, vector<32x128xf32>
    %c0_52 = arith.constant 0 : index
    %c0_53 = arith.constant 0 : index
    %c0_54 = arith.constant 0 : index
    %97 = vector.load %arg8[%c0_52, %c0_53, %c0_54] : memref<3x128x64xf32, #tpu.memory_space<vmem>>, vector<1x128x64xf32>
    %98 = vector.shape_cast %97 : vector<1x128x64xf32> to vector<128x64xf32>
    %cst_55 = arith.constant dense<0.000000e+00> : vector<32x64xf32>
    %99 = tpu.matmul %96, %98, %cst_55 {dimension_numbers = #tpu.dot_dimension_numbers<[1], [0], [0], [1], [0, 0, 1, 1], [], []>} : vector<32x128xf32>, vector<128x64xf32>, vector<32x64xf32> -> vector<32x64xf32>
    %100 = vector.shape_cast %99 : vector<32x64xf32> to vector<4x8x64xf32>
    %c0_56 = arith.constant 0 : index
    %c0_57 = arith.constant 0 : index
    %c0_58 = arith.constant 0 : index
    %c0_59 = arith.constant 0 : index
    %101 = vector.load %arg2[%c0_56, %c0_57, %c0_58, %c0_59] : memref<3x4x8x8xbf16, #tpu.memory_space<vmem>>, vector<1x4x8x8xbf16>
    %102 = vector.shape_cast %101 : vector<1x4x8x8xbf16> to vector<4x8x8xbf16>
    %103 = arith.extf %102 : vector<4x8x8xbf16> to vector<4x8x8xf32>
    "tpu.trace_start"() <{level = 10 : i32, message = "tnm,tmc->tnc"}> : () -> ()
    %cst_60 = arith.constant dense<0.000000e+00> : vector<4x8x64xf32>
    %104 = tpu.matmul %103, %100, %cst_60 {dimension_numbers = #tpu.dot_dimension_numbers<[2], [1], [1], [2], [0, 0, 0, 1, 1, 2], [0], [0]>} : vector<4x8x8xf32>, vector<4x8x64xf32>, vector<4x8x64xf32> -> vector<4x8x64xf32>
    "tpu.trace_stop"() : () -> ()
    %c1_61 = arith.constant 1 : index
    %c0_62 = arith.constant 0 : index
    %c0_63 = arith.constant 0 : index
    %105 = vector.load %arg8[%c1_61, %c0_62, %c0_63] : memref<3x128x64xf32, #tpu.memory_space<vmem>>, vector<1x128x64xf32>
    %106 = vector.shape_cast %105 : vector<1x128x64xf32> to vector<128x64xf32>
    %cst_64 = arith.constant dense<0.000000e+00> : vector<32x64xf32>
    %107 = tpu.matmul %96, %106, %cst_64 {dimension_numbers = #tpu.dot_dimension_numbers<[1], [0], [0], [1], [0, 0, 1, 1], [], []>} : vector<32x128xf32>, vector<128x64xf32>, vector<32x64xf32> -> vector<32x64xf32>
    %108 = vector.shape_cast %107 : vector<32x64xf32> to vector<4x8x64xf32>
    %c1_65 = arith.constant 1 : index
    %c0_66 = arith.constant 0 : index
    %c0_67 = arith.constant 0 : index
    %c0_68 = arith.constant 0 : index
    %109 = vector.load %arg2[%c1_65, %c0_66, %c0_67, %c0_68] : memref<3x4x8x8xbf16, #tpu.memory_space<vmem>>, vector<1x4x8x8xbf16>
    %110 = vector.shape_cast %109 : vector<1x4x8x8xbf16> to vector<4x8x8xbf16>
    %111 = arith.extf %110 : vector<4x8x8xbf16> to vector<4x8x8xf32>
    "tpu.trace_start"() <{level = 10 : i32, message = "tnm,tmc->tnc"}> : () -> ()
    %cst_69 = arith.constant dense<0.000000e+00> : vector<4x8x64xf32>
    %112 = tpu.matmul %111, %108, %cst_69 {dimension_numbers = #tpu.dot_dimension_numbers<[2], [1], [1], [2], [0, 0, 0, 1, 1, 2], [0], [0]>} : vector<4x8x8xf32>, vector<4x8x64xf32>, vector<4x8x64xf32> -> vector<4x8x64xf32>
    "tpu.trace_stop"() : () -> ()
    %113 = arith.addf %104, %112 : vector<4x8x64xf32>
    %c2_70 = arith.constant 2 : index
    %c0_71 = arith.constant 0 : index
    %c0_72 = arith.constant 0 : index
    %114 = vector.load %arg8[%c2_70, %c0_71, %c0_72] : memref<3x128x64xf32, #tpu.memory_space<vmem>>, vector<1x128x64xf32>
    %115 = vector.shape_cast %114 : vector<1x128x64xf32> to vector<128x64xf32>
    %cst_73 = arith.constant dense<0.000000e+00> : vector<32x64xf32>
    %116 = tpu.matmul %96, %115, %cst_73 {dimension_numbers = #tpu.dot_dimension_numbers<[1], [0], [0], [1], [0, 0, 1, 1], [], []>} : vector<32x128xf32>, vector<128x64xf32>, vector<32x64xf32> -> vector<32x64xf32>
    %117 = vector.shape_cast %116 : vector<32x64xf32> to vector<4x8x64xf32>
    %c2_74 = arith.constant 2 : index
    %c0_75 = arith.constant 0 : index
    %c0_76 = arith.constant 0 : index
    %c0_77 = arith.constant 0 : index
    %118 = vector.load %arg2[%c2_74, %c0_75, %c0_76, %c0_77] : memref<3x4x8x8xbf16, #tpu.memory_space<vmem>>, vector<1x4x8x8xbf16>
    %119 = vector.shape_cast %118 : vector<1x4x8x8xbf16> to vector<4x8x8xbf16>
    %120 = arith.extf %119 : vector<4x8x8xbf16> to vector<4x8x8xf32>
    "tpu.trace_start"() <{level = 10 : i32, message = "tnm,tmc->tnc"}> : () -> ()
    %cst_78 = arith.constant dense<0.000000e+00> : vector<4x8x64xf32>
    %121 = tpu.matmul %120, %117, %cst_78 {dimension_numbers = #tpu.dot_dimension_numbers<[2], [1], [1], [2], [0, 0, 0, 1, 1, 2], [0], [0]>} : vector<4x8x8xf32>, vector<4x8x64xf32>, vector<4x8x64xf32> -> vector<4x8x64xf32>
    "tpu.trace_stop"() : () -> ()
    %122 = arith.addf %113, %121 : vector<4x8x64xf32>
    %123 = vector.shape_cast %122 : vector<4x8x64xf32> to vector<32x64xf32>
    %c0_79 = arith.constant 0 : index
    %c0_80 = arith.constant 0 : index
    %124 = vector.load %arg9[%c0_79, %c0_80] : memref<1x64xf32, #tpu.memory_space<vmem>>, vector<1x64xf32>
    %125 = vector.broadcast %124 : vector<1x64xf32> to vector<32x64xf32>
    %126 = arith.addf %123, %125 : vector<32x64xf32>
    %127 = vector.broadcast %0 : vector<32x1xf32> to vector<32x64xf32>
    %128 = arith.mulf %126, %127 : vector<32x64xf32>
    %129 = vector.shape_cast %128 : vector<32x64xf32> to vector<4x8x64xf32>
    %cst_81 = arith.constant dense<0.000000e+00> : vector<4x8xf32>
    %130 = vector.multi_reduction <add>, %129, %cst_81 [2] : vector<4x8x64xf32> to vector<4x8xf32>
    %131 = vector.shape_cast %130 : vector<4x8xf32> to vector<4x8x1xf32>
    %cst_82 = arith.constant dense<0.000000e+00> : vector<4x1xf32>
    %132 = vector.multi_reduction <add>, %131, %cst_82 [1] : vector<4x8x1xf32> to vector<4x1xf32>
    %133 = vector.shape_cast %132 : vector<4x1xf32> to vector<4x1x1xf32>
    %cst_83 = arith.constant 0.001953125 : f32
    %134 = vector.broadcast %cst_83 : f32 to vector<4x1x1xf32>
    %135 = arith.mulf %133, %134 : vector<4x1x1xf32>
    %136 = vector.broadcast %135 : vector<4x1x1xf32> to vector<4x8x64xf32>
    %137 = arith.subf %129, %136 : vector<4x8x64xf32>
    %138 = arith.mulf %137, %137 : vector<4x8x64xf32>
    %cst_84 = arith.constant dense<0.000000e+00> : vector<4x8xf32>
    %139 = vector.multi_reduction <add>, %138, %cst_84 [2] : vector<4x8x64xf32> to vector<4x8xf32>
    %140 = vector.shape_cast %139 : vector<4x8xf32> to vector<4x8x1xf32>
    %cst_85 = arith.constant dense<0.000000e+00> : vector<4x1xf32>
    %141 = vector.multi_reduction <add>, %140, %cst_85 [1] : vector<4x8x1xf32> to vector<4x1xf32>
    %142 = vector.shape_cast %141 : vector<4x1xf32> to vector<4x1x1xf32>
    %cst_86 = arith.constant 0.00195694715 : f32
    %143 = vector.broadcast %cst_86 : f32 to vector<4x1x1xf32>
    %144 = arith.mulf %142, %143 : vector<4x1x1xf32>
    %145 = math.sqrt %144 : vector<4x1x1xf32>
    %cst_87 = arith.constant 9.99999974E-6 : f32
    %146 = vector.broadcast %cst_87 : f32 to vector<4x1x1xf32>
    %147 = arith.addf %145, %146 : vector<4x1x1xf32>
    %148 = tpu.reciprocal %147 : vector<4x1x1xf32> -> vector<4x1x1xf32>
    %149 = vector.broadcast %148 : vector<4x1x1xf32> to vector<4x8x64xf32>
    %150 = arith.mulf %137, %149 : vector<4x8x64xf32>
    %151 = vector.shape_cast %150 : vector<4x8x64xf32> to vector<32x64xf32>
    %152 = vector.shape_cast %151 : vector<32x64xf32> to vector<4x8x64xf32>
    %cst_88 = arith.constant dense<0xFF800000> : vector<4x64xf32>
    %153 = vector.multi_reduction <maximumf>, %152, %cst_88 [1] : vector<4x8x64xf32> to vector<4x64xf32>
    %c0_89 = arith.constant 0 : index
    %c0_90 = arith.constant 0 : index
    %154 = vector.load %arg10[%c0_89, %c0_90] : memref<64x128xf32, #tpu.memory_space<vmem>>, vector<64x128xf32>
    %cst_91 = arith.constant dense<0.000000e+00> : vector<4x128xf32>
    %155 = tpu.matmul %153, %154, %cst_91 {dimension_numbers = #tpu.dot_dimension_numbers<[1], [0], [0], [1], [0, 0, 1, 1], [], []>} : vector<4x64xf32>, vector<64x128xf32>, vector<4x128xf32> -> vector<4x128xf32>
    %c0_92 = arith.constant 0 : index
    %c0_93 = arith.constant 0 : index
    %156 = vector.load %arg11[%c0_92, %c0_93] : memref<1x128xf32, #tpu.memory_space<vmem>>, vector<1x128xf32>
    %157 = vector.broadcast %156 : vector<1x128xf32> to vector<4x128xf32>
    %158 = arith.addf %155, %157 : vector<4x128xf32>
    %cst_94 = arith.constant 0.000000e+00 : f32
    %159 = vector.broadcast %cst_94 : f32 to vector<4x128xf32>
    %160 = arith.maximumf %158, %159 : vector<4x128xf32>
    %c0_95 = arith.constant 0 : index
    %c0_96 = arith.constant 0 : index
    %161 = vector.load %arg12[%c0_95, %c0_96] : memref<128x32xf32, #tpu.memory_space<vmem>>, vector<128x32xf32>
    %cst_97 = arith.constant dense<0.000000e+00> : vector<4x32xf32>
    %162 = tpu.matmul %160, %161, %cst_97 {dimension_numbers = #tpu.dot_dimension_numbers<[1], [0], [0], [1], [0, 0, 1, 1], [], []>} : vector<4x128xf32>, vector<128x32xf32>, vector<4x32xf32> -> vector<4x32xf32>
    %c0_98 = arith.constant 0 : index
    %c0_99 = arith.constant 0 : index
    %163 = vector.load %arg13[%c0_98, %c0_99] : memref<1x32xf32, #tpu.memory_space<vmem>>, vector<1x32xf32>
    %164 = vector.broadcast %163 : vector<1x32xf32> to vector<4x32xf32>
    %165 = arith.addf %162, %164 : vector<4x32xf32>
    %166 = vector.shape_cast %165 : vector<4x32xf32> to vector<2x2x32xf32>
    %cst_100 = arith.constant dense<0.000000e+00> : vector<2x32xf32>
    %167 = vector.multi_reduction <add>, %166, %cst_100 [1] : vector<2x2x32xf32> to vector<2x32xf32>
    %cst_101 = arith.constant 0.000000e+00 : f32
    %168 = vector.broadcast %cst_101 : f32 to vector<6x32xf32>
    %169 = tpu.concatenate %167, %168 in 0 : vector<2x32xf32>, vector<6x32xf32> -> vector<8x32xf32>
    %c0_102 = arith.constant 0 : index
    %c0_103 = arith.constant 0 : index
    %170 = vector.load %arg14[%c0_102, %c0_103] : memref<32x64xf32, #tpu.memory_space<vmem>>, vector<32x64xf32>
    %cst_104 = arith.constant dense<0.000000e+00> : vector<8x64xf32>
    %171 = tpu.matmul %169, %170, %cst_104 {dimension_numbers = #tpu.dot_dimension_numbers<[1], [0], [0], [1], [0, 0, 1, 1], [], []>} : vector<8x32xf32>, vector<32x64xf32>, vector<8x64xf32> -> vector<8x64xf32>
    %c0_105 = arith.constant 0 : index
    %c0_106 = arith.constant 0 : index
    %172 = vector.load %arg15[%c0_105, %c0_106] : memref<1x64xf32, #tpu.memory_space<vmem>>, vector<1x64xf32>
    %173 = vector.broadcast %172 : vector<1x64xf32> to vector<8x64xf32>
    %174 = arith.addf %171, %173 : vector<8x64xf32>
    %cst_107 = arith.constant 0.000000e+00 : f32
    %175 = vector.broadcast %cst_107 : f32 to vector<8x64xf32>
    %176 = arith.maximumf %174, %175 : vector<8x64xf32>
    %c0_108 = arith.constant 0 : index
    %c0_109 = arith.constant 0 : index
    %177 = vector.load %arg16[%c0_108, %c0_109] : memref<64x64xf32, #tpu.memory_space<vmem>>, vector<64x64xf32>
    %cst_110 = arith.constant dense<0.000000e+00> : vector<8x64xf32>
    %178 = tpu.matmul %176, %177, %cst_110 {dimension_numbers = #tpu.dot_dimension_numbers<[1], [0], [0], [1], [0, 0, 1, 1], [], []>} : vector<8x64xf32>, vector<64x64xf32>, vector<8x64xf32> -> vector<8x64xf32>
    %c0_111 = arith.constant 0 : index
    %c0_112 = arith.constant 0 : index
    %179 = vector.load %arg17[%c0_111, %c0_112] : memref<1x64xf32, #tpu.memory_space<vmem>>, vector<1x64xf32>
    %180 = vector.broadcast %179 : vector<1x64xf32> to vector<8x64xf32>
    %181 = arith.addf %178, %180 : vector<8x64xf32>
    %c0_113 = arith.constant 0 : index
    %c0_114 = arith.constant 0 : index
    %182 = vector.load %arg18[%c0_113, %c0_114] : memref<64x32xf32, #tpu.memory_space<vmem>>, vector<64x32xf32>
    %cst_115 = arith.constant dense<0.000000e+00> : vector<8x32xf32>
    %183 = tpu.matmul %181, %182, %cst_115 {dimension_numbers = #tpu.dot_dimension_numbers<[1], [0], [0], [1], [0, 0, 1, 1], [], []>} : vector<8x64xf32>, vector<64x32xf32>, vector<8x32xf32> -> vector<8x32xf32>
    %c0_116 = arith.constant 0 : index
    %c0_117 = arith.constant 0 : index
    %184 = vector.load %arg19[%c0_116, %c0_117] : memref<1x32xf32, #tpu.memory_space<vmem>>, vector<1x32xf32>
    %185 = vector.broadcast %184 : vector<1x32xf32> to vector<8x32xf32>
    %186 = arith.addf %183, %185 : vector<8x32xf32>
    %cst_118 = arith.constant 0.000000e+00 : f32
    %187 = vector.broadcast %cst_118 : f32 to vector<8x32xf32>
    %188 = arith.maximumf %186, %187 : vector<8x32xf32>
    %c0_119 = arith.constant 0 : index
    %c0_120 = arith.constant 0 : index
    %189 = vector.load %arg20[%c0_119, %c0_120] : memref<32x128xf32, #tpu.memory_space<vmem>>, vector<32x128xf32>
    %cst_121 = arith.constant dense<0.000000e+00> : vector<8x128xf32>
    %190 = tpu.matmul %188, %189, %cst_121 {dimension_numbers = #tpu.dot_dimension_numbers<[1], [0], [0], [1], [0, 0, 1, 1], [], []>} : vector<8x32xf32>, vector<32x128xf32>, vector<8x128xf32> -> vector<8x128xf32>
    %c0_122 = arith.constant 0 : index
    %c0_123 = arith.constant 0 : index
    %191 = vector.load %arg21[%c0_122, %c0_123] : memref<1x128xf32, #tpu.memory_space<vmem>>, vector<1x128xf32>
    %192 = vector.broadcast %191 : vector<1x128xf32> to vector<8x128xf32>
    %193 = arith.addf %190, %192 : vector<8x128xf32>
    %194 = tpu.iota {dimensions = array<i32: 1>} : vector<8x128xi32>
    %c1_i32 = arith.constant 1 : i32
    %195 = vector.broadcast %c1_i32 : i32 to vector<8x128xi32>
    %196 = arith.cmpi eq, %194, %195 : vector<8x128xi32>
    %cst_124 = arith.constant 0.000000e+00 : f32
    %197 = vector.broadcast %cst_124 : f32 to vector<8x128xf32>
    %198 = arith.select %196, %193, %197 : vector<8x128xi1>, vector<8x128xf32>
    %199 = math.exp %198 : vector<8x128xf32>
    %200 = arith.select %196, %199, %193 : vector<8x128xi1>, vector<8x128xf32>
    %c0_125 = arith.constant 0 : index
    %c0_126 = arith.constant 0 : index
    %201 = vector.load %arg22[%c0_125, %c0_126] : memref<8x128xf32, #tpu.memory_space<vmem>>, vector<8x128xf32>
    tpu.vector_store %arg22[%c0_125, %c0_126], %200 {strides = array<i32>} : memref<8x128xf32, #tpu.memory_space<vmem>>, vector<8x128xf32>,
    return
  }
  func.func @transform_0(%arg0: i32) -> (i32, i32) {
    %c0_i32 = arith.constant 0 : i32
    %c0_i32_0 = arith.constant 0 : i32
    %c0_i32_1 = arith.constant 0 : i32
    return %c0_i32, %c0_i32_0 : i32, i32
  }
  func.func @transform_1(%arg0: i32) -> (i32, i32, i32, i32) {
    %c0_i32 = arith.constant 0 : i32
    %c0_i32_0 = arith.constant 0 : i32
    %c0_i32_1 = arith.constant 0 : i32
    %c0_i32_2 = arith.constant 0 : i32
    %c0_i32_3 = arith.constant 0 : i32
    return %c0_i32, %c0_i32_0, %c0_i32_1, %c0_i32_2 : i32, i32, i32, i32
  }
  func.func @transform_2(%arg0: i32) -> (i32, i32) {
    %c0_i32 = arith.constant 0 : i32
    %c0_i32_0 = arith.constant 0 : i32
    %c0_i32_1 = arith.constant 0 : i32
    return %c0_i32, %c0_i32_0 : i32, i32
  }
  func.func @transform_3(%arg0: i32) -> (i32, i32) {
    %c0_i32 = arith.constant 0 : i32
    %c0_i32_0 = arith.constant 0 : i32
    %c0_i32_1 = arith.constant 0 : i32
    return %c0_i32, %c0_i32_0 : i32, i32
  }
  func.func @transform_4(%arg0: i32) -> (i32, i32) {
    %c0_i32 = arith.constant 0 : i32
    %c0_i32_0 = arith.constant 0 : i32
    %c0_i32_1 = arith.constant 0 : i32
    return %c0_i32, %c0_i32_0 : i32, i32
  }
  func.func @transform_5(%arg0: i32) -> (i32, i32, i32) {
    %c0_i32 = arith.constant 0 : i32
    %c0_i32_0 = arith.constant 0 : i32
    %c0_i32_1 = arith.constant 0 : i32
    %c0_i32_2 = arith.constant 0 : i32
    return %c0_i32, %c0_i32_0, %c0_i32_1 : i32, i32, i32
  }
  func.func @transform_6(%arg0: i32) -> (i32, i32) {
    %c0_i32 = arith.constant 0 : i32
    %c0_i32_0 = arith.constant 0 : i32
    %c0_i32_1 = arith.constant 0 : i32
    return %c0_i32, %c0_i32_0 : i32, i32
  }
  func.func @transform_7(%arg0: i32) -> (i32, i32, i32) {
    %c0_i32 = arith.constant 0 : i32
    %c0_i32_0 = arith.constant 0 : i32
    %c0_i32_1 = arith.constant 0 : i32
    %c0_i32_2 = arith.constant 0 : i32
    return %c0_i32, %c0_i32_0, %c0_i32_1 : i32, i32, i32
  }
  func.func @transform_8(%arg0: i32) -> (i32, i32) {
    %c0_i32 = arith.constant 0 : i32
    %c0_i32_0 = arith.constant 0 : i32
    %c0_i32_1 = arith.constant 0 : i32
    return %c0_i32, %c0_i32_0 : i32, i32
  }
  func.func @transform_9(%arg0: i32) -> (i32, i32) {
    %c0_i32 = arith.constant 0 : i32
    %c0_i32_0 = arith.constant 0 : i32
    %c0_i32_1 = arith.constant 0 : i32
    return %c0_i32, %c0_i32_0 : i32, i32
  }
  func.func @transform_10(%arg0: i32) -> (i32, i32) {
    %c0_i32 = arith.constant 0 : i32
    %c0_i32_0 = arith.constant 0 : i32
    %c0_i32_1 = arith.constant 0 : i32
    return %c0_i32, %c0_i32_0 : i32, i32
  }
  func.func @transform_11(%arg0: i32) -> (i32, i32) {
    %c0_i32 = arith.constant 0 : i32
    %c0_i32_0 = arith.constant 0 : i32
    %c0_i32_1 = arith.constant 0 : i32
    return %c0_i32, %c0_i32_0 : i32, i32
  }
  func.func @transform_12(%arg0: i32) -> (i32, i32) {
    %c0_i32 = arith.constant 0 : i32
    %c0_i32_0 = arith.constant 0 : i32
    %c0_i32_1 = arith.constant 0 : i32
    return %c0_i32, %c0_i32_0 : i32, i32
  }
  func.func @transform_13(%arg0: i32) -> (i32, i32) {
    %c0_i32 = arith.constant 0 : i32
    %c0_i32_0 = arith.constant 0 : i32
    %c0_i32_1 = arith.constant 0 : i32
    return %c0_i32, %c0_i32_0 : i32, i32
  }
  func.func @transform_14(%arg0: i32) -> (i32, i32) {
    %c0_i32 = arith.constant 0 : i32
    %c0_i32_0 = arith.constant 0 : i32
    %c0_i32_1 = arith.constant 0 : i32
    return %c0_i32, %c0_i32_0 : i32, i32
  }
  func.func @transform_15(%arg0: i32) -> (i32, i32) {
    %c0_i32 = arith.constant 0 : i32
    %c0_i32_0 = arith.constant 0 : i32
    %c0_i32_1 = arith.constant 0 : i32
    return %c0_i32, %c0_i32_0 : i32, i32
  }
  func.func @transform_16(%arg0: i32) -> (i32, i32) {
    %c0_i32 = arith.constant 0 : i32
    %c0_i32_0 = arith.constant 0 : i32
    %c0_i32_1 = arith.constant 0 : i32
    return %c0_i32, %c0_i32_0 : i32, i32
  }
  func.func @transform_17(%arg0: i32) -> (i32, i32) {
    %c0_i32 = arith.constant 0 : i32
    %c0_i32_0 = arith.constant 0 : i32
    %c0_i32_1 = arith.constant 0 : i32
    return %c0_i32, %c0_i32_0 : i32, i32
  }
  func.func @transform_18(%arg0: i32) -> (i32, i32) {
    %c0_i32 = arith.constant 0 : i32
    %c0_i32_0 = arith.constant 0 : i32
    %c0_i32_1 = arith.constant 0 : i32
    return %c0_i32, %c0_i32_0 : i32, i32
  }
  func.func @transform_19(%arg0: i32) -> (i32, i32) {
    %c0_i32 = arith.constant 0 : i32
    %c0_i32_0 = arith.constant 0 : i32
    %c0_i32_1 = arith.constant 0 : i32
    return %c0_i32, %c0_i32_0 : i32, i32
  }
  func.func @transform_20(%arg0: i32) -> (i32, i32) {
    %c0_i32 = arith.constant 0 : i32
    %c0_i32_0 = arith.constant 0 : i32
    %c0_i32_1 = arith.constant 0 : i32
    return %c0_i32, %c0_i32_0 : i32, i32
  }
  func.func @transform_21(%arg0: i32) -> (i32, i32) {
    %c0_i32 = arith.constant 0 : i32
    %c0_i32_0 = arith.constant 0 : i32
    %c0_i32_1 = arith.constant 0 : i32
    return %c0_i32, %c0_i32_0 : i32, i32
  }
}

</mosaic_0001>

<llo_original>
// kernel: tcnnds_forward.1
$region0: #{tcnnds_forward.1}
  #allocation0 [shape = 'u32[]', space=smem, size = 0x4, offset = 0x4, fixed_abs, tag = 'smem constant byte address 0x4 - core index']
  #allocation1 [shape = 'u32[144,128]{1,0:T(1,128)}', space=vmem, size = 0x12000, scoped, tag = 'internal scratch']
  %s0 = inlined_call_operand.vmem [shape: f32[32,12], index: 0, kind: input, shape index: {}]
  %s1 = inlined_call_operand.hbm [shape: bf16[3,4,8,8], index: 1, kind: input, shape index: {}]
  %s2 = inlined_call_operand.vmem [shape: f32[32,1], index: 2, kind: input, shape index: {}]
  %s3 = inlined_call_operand.hbm [shape: f32[12,256], index: 3, kind: input, shape index: {}]
  %s4 = inlined_call_operand.vmem [shape: f32[1,256], index: 4, kind: input, shape index: {}]
  %s5 = inlined_call_operand.vmem [shape: f32[3,256,128], index: 5, kind: input, shape index: {}]
  %s6 = inlined_call_operand.hbm [shape: f32[1,128], index: 6, kind: input, shape index: {}]
  %s7 = inlined_call_operand.vmem [shape: f32[3,128,64], index: 7, kind: input, shape index: {}]
  %s8 = inlined_call_operand.hbm [shape: f32[1,64], index: 8, kind: input, shape index: {}]
  %s9 = inlined_call_operand.vmem [shape: f32[64,128], index: 9, kind: input, shape index: {}]
  %s10 = inlined_call_operand.hbm [shape: f32[1,128], index: 10, kind: input, shape index: {}]
  %s11 = inlined_call_operand.vmem [shape: f32[128,32], index: 11, kind: input, shape index: {}]
  %s12 = inlined_call_operand.hbm [shape: f32[1,32], index: 12, kind: input, shape index: {}]
  %s13 = inlined_call_operand.hbm [shape: f32[32,64], index: 13, kind: input, shape index: {}]
  %s14 = inlined_call_operand.hbm [shape: f32[1,64], index: 14, kind: input, shape index: {}]
  %s15 = inlined_call_operand.vmem [shape: f32[64,64], index: 15, kind: input, shape index: {}]
  %s16 = inlined_call_operand.hbm [shape: f32[1,64], index: 16, kind: input, shape index: {}]
  %s17 = inlined_call_operand.vmem [shape: f32[64,32], index: 17, kind: input, shape index: {}]
  %s18 = inlined_call_operand.hbm [shape: f32[1,32], index: 18, kind: input, shape index: {}]
  %s19 = inlined_call_operand.hbm [shape: f32[32,128], index: 19, kind: input, shape index: {}]
  %s20 = inlined_call_operand.hbm [shape: f32[1,128], index: 20, kind: input, shape index: {}]
  %s21 = inlined_call_operand.vmem [shape: f32[8,128], index: 21, kind: output, shape index: {}]
  %s22 = sld [smem:[#allocation0]]
  $region142: #{tcnnds_forward.1} parent=0
    _
  %s24 = ssub.s32 1, %s22
  %s25 = scalar_select 0, %s24, %s22
  $region1: #{tcnnds_forward.1} parent=0
    #allocation2 [shape = 'u8[24576]{0}', space=vmem, size = 0x6000, scoped, tag = 'input window, operand 1, single buffered']
    #allocation3 [shape = 's32[1]{0}', space=sflag, size = 0x4, scoped, tag = 'scoped memory for tcnnds_forward.1']
    #allocation4 [shape = 'u8[16384]{0}', space=vmem, size = 0x4000, scoped, tag = 'input window, operand 3, single buffered']
    #allocation5 [shape = 's32[1]{0}', space=sflag, size = 0x4, scoped, tag = 'scoped memory for tcnnds_forward.1']
    #allocation6 [shape = 'u8[512]{0}', space=vmem, size = 0x400, scoped, tag = 'input window, operand 6, single buffered']
    #allocation7 [shape = 'u8[512]{0}', space=vmem, size = 0x400, scoped, tag = 'input window, operand 8, single buffered']
    #allocation8 [shape = 's32[1]{0}', space=sflag, size = 0x4, scoped, tag = 'scoped memory for tcnnds_forward.1']
    #allocation9 [shape = 'u8[512]{0}', space=vmem, size = 0x400, scoped, tag = 'input window, operand 10, single buffered']
    #allocation10 [shape = 'u8[512]{0}', space=vmem, size = 0x400, scoped, tag = 'input window, operand 12, single buffered']
    #allocation11 [shape = 's32[1]{0}', space=sflag, size = 0x4, scoped, tag = 'scoped memory for tcnnds_forward.1']
    #allocation12 [shape = 'u8[16384]{0}', space=vmem, size = 0x4000, scoped, tag = 'input window, operand 13, single buffered']
    #allocation13 [shape = 'u8[512]{0}', space=vmem, size = 0x400, scoped, tag = 'input window, operand 14, single buffered']
    #allocation14 [shape = 's32[1]{0}', space=sflag, size = 0x4, scoped, tag = 'scoped memory for tcnnds_forward.1']
    #allocation15 [shape = 'u8[512]{0}', space=vmem, size = 0x400, scoped, tag = 'input window, operand 16, single buffered']
    #allocation16 [shape = 'u8[512]{0}', space=vmem, size = 0x400, scoped, tag = 'input window, operand 18, single buffered']
    #allocation17 [shape = 's32[1]{0}', space=sflag, size = 0x4, scoped, tag = 'scoped memory for tcnnds_forward.1']
    #allocation18 [shape = 'u8[16384]{0}', space=vmem, size = 0x4000, scoped, tag = 'input window, operand 19, single buffered']
    #allocation19 [shape = 'u8[512]{0}', space=vmem, size = 0x400, scoped, tag = 'input window, operand 20, single buffered']
    #allocation20 [shape = 's32[1]{0}', space=sflag, size = 0x4, scoped, tag = 'scoped memory for tcnnds_forward.1']
    %26 = vsyncpa [#allocation3], 0
    %27 = vsyncpa [#allocation5], 0
    %28 = vsyncpa [#allocation8], 0
    %29 = vsyncpa [#allocation11], 0
    %30 = vsyncpa [#allocation14], 0
    %31 = vsyncpa [#allocation17], 0
    %32 = vsyncpa [#allocation20], 0
    // Predicated region
    $region2: #{tcnnds_forward.1} parent=1 // pred_check
      _
    $region3: #{tcnnds_forward.1} parent=1 // pred_check_branch
      %34 = sbr.rel (0) target = $region5
    $region4: #{tcnnds_forward.1} parent=1 // pred_region
      _
    $region5: #{tcnnds_forward.1} parent=1 // pred_fallthru
      _
    // Predicated region
    $region6: #{tcnnds_forward.1} parent=1 // pred_check
      _
    $region7: #{tcnnds_forward.1} parent=1 // pred_check_branch
      %36 = sbr.rel (0) target = $region9
    $region8: #{tcnnds_forward.1} parent=1 // pred_region
      %s38 = ssub.s32 768, 768
      %39 = vsyncadd [#allocation3], %s38
      %s40 = sshll.u32 [#allocation2], 4
      %s41 = int_to_ptr.vmem [resolvable:$true] %s40
      %46 = dma.hbm_to_vmem [thread:$0]  %s1, 768, %s41, [#allocation3], 64, 64, 4
    $region9: #{tcnnds_forward.1} parent=1 // pred_fallthru
      _
    // Predicated region
    $region10: #{tcnnds_forward.1} parent=1 // pred_check
      _
    $region11: #{tcnnds_forward.1} parent=1 // pred_check_branch
      %48 = sbr.rel (0) target = $region13
    $region12: #{tcnnds_forward.1} parent=1 // pred_region
      _
    $region13: #{tcnnds_forward.1} parent=1 // pred_fallthru
      _
    // Predicated region
    $region14: #{tcnnds_forward.1} parent=1 // pred_check
      _
    $region15: #{tcnnds_forward.1} parent=1 // pred_check_branch
      %50 = sbr.rel (0) target = $region17
    $region16: #{tcnnds_forward.1} parent=1 // pred_region
      %s52 = ssub.s32 512, 512
      %53 = vsyncadd [#allocation5], %s52
      %s54 = sshll.u32 [#allocation4], 4
      %s55 = int_to_ptr.vmem [resolvable:$true] %s54
      %60 = dma.hbm_to_vmem [thread:$0]  %s3, 512, %s55, [#allocation5], 256, 256, 16
    $region17: #{tcnnds_forward.1} parent=1 // pred_fallthru
      _
    // Predicated region
    $region18: #{tcnnds_forward.1} parent=1 // pred_check
      _
    $region19: #{tcnnds_forward.1} parent=1 // pred_check_branch
      %62 = sbr.rel (0) target = $region21
    $region20: #{tcnnds_forward.1} parent=1 // pred_region
      _
    $region21: #{tcnnds_forward.1} parent=1 // pred_fallthru
      _
    // Predicated region
    $region22: #{tcnnds_forward.1} parent=1 // pred_check
      _
    $region23: #{tcnnds_forward.1} parent=1 // pred_check_branch
      %64 = sbr.rel (0) target = $region25
    $region24: #{tcnnds_forward.1} parent=1 // pred_region
      _
    $region25: #{tcnnds_forward.1} parent=1 // pred_fallthru
      _
    // Predicated region
    $region26: #{tcnnds_forward.1} parent=1 // pred_check
      _
    $region27: #{tcnnds_forward.1} parent=1 // pred_check_branch
      %66 = sbr.rel (0) target = $region29
    $region28: #{tcnnds_forward.1} parent=1 // pred_region
      %s68 = ssub.s32 16, 16
      %69 = vsyncadd [#allocation5], %s68
      %s71 = sshll.u32 [#allocation6], 4
      %s72 = int_to_ptr.vmem [resolvable:$true] %s71
      %74 = dma.hbm_to_vmem [thread:$0]  %s6, 16, %s72, [#allocation5]
    $region29: #{tcnnds_forward.1} parent=1 // pred_fallthru
      _
    // Predicated region
    $region30: #{tcnnds_forward.1} parent=1 // pred_check
      _
    $region31: #{tcnnds_forward.1} parent=1 // pred_check_branch
      %76 = sbr.rel (0) target = $region33
    $region32: #{tcnnds_forward.1} parent=1 // pred_region
      _
    $region33: #{tcnnds_forward.1} parent=1 // pred_fallthru
      _
    // Predicated region
    $region34: #{tcnnds_forward.1} parent=1 // pred_check
      _
    $region35: #{tcnnds_forward.1} parent=1 // pred_check_branch
      %78 = sbr.rel (0) target = $region37
    $region36: #{tcnnds_forward.1} parent=1 // pred_region
      %s80 = ssub.s32 16, 16
      %81 = vsyncadd [#allocation8], %s80
      %s83 = sshll.u32 [#allocation7], 4
      %s84 = int_to_ptr.vmem [resolvable:$true] %s83
      %86 = dma.hbm_to_vmem [thread:$0]  %s8, 16, %s84, [#allocation8]
    $region37: #{tcnnds_forward.1} parent=1 // pred_fallthru
      _
    // Predicated region
    $region38: #{tcnnds_forward.1} parent=1 // pred_check
      _
    $region39: #{tcnnds_forward.1} parent=1 // pred_check_branch
      %88 = sbr.rel (0) target = $region41
    $region40: #{tcnnds_forward.1} parent=1 // pred_region
      _
    $region41: #{tcnnds_forward.1} parent=1 // pred_fallthru
      _
    // Predicated region
    $region42: #{tcnnds_forward.1} parent=1 // pred_check
      _
    $region43: #{tcnnds_forward.1} parent=1 // pred_check_branch
      %90 = sbr.rel (0) target = $region45
    $region44: #{tcnnds_forward.1} parent=1 // pred_region
      %s92 = ssub.s32 16, 16
      %93 = vsyncadd [#allocation8], %s92
      %s95 = sshll.u32 [#allocation9], 4
      %s96 = int_to_ptr.vmem [resolvable:$true] %s95
      %98 = dma.hbm_to_vmem [thread:$0]  %s10, 16, %s96, [#allocation8]
    $region45: #{tcnnds_forward.1} parent=1 // pred_fallthru
      _
    // Predicated region
    $region46: #{tcnnds_forward.1} parent=1 // pred_check
      _
    $region47: #{tcnnds_forward.1} parent=1 // pred_check_branch
      %100 = sbr.rel (0) target = $region49
    $region48: #{tcnnds_forward.1} parent=1 // pred_region
      _
    $region49: #{tcnnds_forward.1} parent=1 // pred_fallthru
      _
    // Predicated region
    $region50: #{tcnnds_forward.1} parent=1 // pred_check
      _
    $region51: #{tcnnds_forward.1} parent=1 // pred_check_branch
      %102 = sbr.rel (0) target = $region53
    $region52: #{tcnnds_forward.1} parent=1 // pred_region
      %s104 = ssub.s32 16, 16
      %105 = vsyncadd [#allocation11], %s104
      %s107 = sshll.u32 [#allocation10], 4
      %s108 = int_to_ptr.vmem [resolvable:$true] %s107
      %110 = dma.hbm_to_vmem [thread:$0]  %s12, 16, %s108, [#allocation11]
    $region53: #{tcnnds_forward.1} parent=1 // pred_fallthru
      _
    // Predicated region
    $region54: #{tcnnds_forward.1} parent=1 // pred_check
      _
    $region55: #{tcnnds_forward.1} parent=1 // pred_check_branch
      %112 = sbr.rel (0) target = $region57
    $region56: #{tcnnds_forward.1} parent=1 // pred_region
      %s114 = ssub.s32 512, 512
      %115 = vsyncadd [#allocation11], %s114
      %s116 = sshll.u32 [#allocation12], 4
      %s117 = int_to_ptr.vmem [resolvable:$true] %s116
      %122 = dma.hbm_to_vmem [thread:$0]  %s13, 512, %s117, [#allocation11], 128, 128, 8
    $region57: #{tcnnds_forward.1} parent=1 // pred_fallthru
      _
    // Predicated region
    $region58: #{tcnnds_forward.1} parent=1 // pred_check
      _
    $region59: #{tcnnds_forward.1} parent=1 // pred_check_branch
      %124 = sbr.rel (0) target = $region61
    $region60: #{tcnnds_forward.1} parent=1 // pred_region
      %s126 = ssub.s32 16, 16
      %127 = vsyncadd [#allocation14], %s126
      %s129 = sshll.u32 [#allocation13], 4
      %s130 = int_to_ptr.vmem [resolvable:$true] %s129
      %132 = dma.hbm_to_vmem [thread:$0]  %s14, 16, %s130, [#allocation14]
    $region61: #{tcnnds_forward.1} parent=1 // pred_fallthru
      _
    // Predicated region
    $region62: #{tcnnds_forward.1} parent=1 // pred_check
      _
    $region63: #{tcnnds_forward.1} parent=1 // pred_check_branch
      %134 = sbr.rel (0) target = $region65
    $region64: #{tcnnds_forward.1} parent=1 // pred_region
      _
    $region65: #{tcnnds_forward.1} parent=1 // pred_fallthru
      _
    // Predicated region
    $region66: #{tcnnds_forward.1} parent=1 // pred_check
      _
    $region67: #{tcnnds_forward.1} parent=1 // pred_check_branch
      %136 = sbr.rel (0) target = $region69
    $region68: #{tcnnds_forward.1} parent=1 // pred_region
      %s138 = ssub.s32 16, 16
      %139 = vsyncadd [#allocation14], %s138
      %s141 = sshll.u32 [#allocation15], 4
      %s142 = int_to_ptr.vmem [resolvable:$true] %s141
      %144 = dma.hbm_to_vmem [thread:$0]  %s16, 16, %s142, [#allocation14]
    $region69: #{tcnnds_forward.1} parent=1 // pred_fallthru
      _
    // Predicated region
    $region70: #{tcnnds_forward.1} parent=1 // pred_check
      _
    $region71: #{tcnnds_forward.1} parent=1 // pred_check_branch
      %146 = sbr.rel (0) target = $region73
    $region72: #{tcnnds_forward.1} parent=1 // pred_region
      _
    $region73: #{tcnnds_forward.1} parent=1 // pred_fallthru
      _
    // Predicated region
    $region74: #{tcnnds_forward.1} parent=1 // pred_check
      _
    $region75: #{tcnnds_forward.1} parent=1 // pred_check_branch
      %148 = sbr.rel (0) target = $region77
    $region76: #{tcnnds_forward.1} parent=1 // pred_region
      %s150 = ssub.s32 16, 16
      %151 = vsyncadd [#allocation17], %s150
      %s153 = sshll.u32 [#allocation16], 4
      %s154 = int_to_ptr.vmem [resolvable:$true] %s153
      %156 = dma.hbm_to_vmem [thread:$0]  %s18, 16, %s154, [#allocation17]
    $region77: #{tcnnds_forward.1} parent=1 // pred_fallthru
      _
    // Predicated region
    $region78: #{tcnnds_forward.1} parent=1 // pred_check
      _
    $region79: #{tcnnds_forward.1} parent=1 // pred_check_branch
      %158 = sbr.rel (0) target = $region81
    $region80: #{tcnnds_forward.1} parent=1 // pred_region
      %s160 = ssub.s32 512, 512
      %161 = vsyncadd [#allocation17], %s160
      %s162 = sshll.u32 [#allocation18], 4
      %s163 = int_to_ptr.vmem [resolvable:$true] %s162
      %168 = dma.hbm_to_vmem [thread:$0]  %s19, 512, %s163, [#allocation17], 128, 128, 8
    $region81: #{tcnnds_forward.1} parent=1 // pred_fallthru
      _
    // Predicated region
    $region82: #{tcnnds_forward.1} parent=1 // pred_check
      _
    $region83: #{tcnnds_forward.1} parent=1 // pred_check_branch
      %170 = sbr.rel (0) target = $region85
    $region84: #{tcnnds_forward.1} parent=1 // pred_region
      %s172 = ssub.s32 16, 16
      %173 = vsyncadd [#allocation20], %s172
      %s175 = sshll.u32 [#allocation19], 4
      %s176 = int_to_ptr.vmem [resolvable:$true] %s175
      %178 = dma.hbm_to_vmem [thread:$0]  %s20, 16, %s176, [#allocation20]
    $region85: #{tcnnds_forward.1} parent=1 // pred_fallthru
      _
    // Predicated region
    $region86: #{tcnnds_forward.1} parent=1 // pred_check
      _
    $region87: #{tcnnds_forward.1} parent=1 // pred_check_branch
      %180 = sbr.rel (0) target = $region89
    $region88: #{tcnnds_forward.1} parent=1 // pred_region
      %181 = dma.done [#allocation3], 768
    $region89: #{tcnnds_forward.1} parent=1 // pred_fallthru
      _
    // Predicated region
    $region90: #{tcnnds_forward.1} parent=1 // pred_check
      _
    $region91: #{tcnnds_forward.1} parent=1 // pred_check_branch
      %183 = sbr.rel (0) target = $region93
    $region92: #{tcnnds_forward.1} parent=1 // pred_region
      %184 = dma.done [#allocation5], 512
    $region93: #{tcnnds_forward.1} parent=1 // pred_fallthru
      _
    // Predicated region
    $region94: #{tcnnds_forward.1} parent=1 // pred_check
      _
    $region95: #{tcnnds_forward.1} parent=1 // pred_check_branch
      %186 = sbr.rel (0) target = $region97
    $region96: #{tcnnds_forward.1} parent=1 // pred_region
      %187 = dma.done [#allocation5], 16
    $region97: #{tcnnds_forward.1} parent=1 // pred_fallthru
      _
    // Predicated region
    $region98: #{tcnnds_forward.1} parent=1 // pred_check
      _
    $region99: #{tcnnds_forward.1} parent=1 // pred_check_branch
      %189 = sbr.rel (0) target = $region101
    $region100: #{tcnnds_forward.1} parent=1 // pred_region
      %190 = dma.done [#allocation8], 16
    $region101: #{tcnnds_forward.1} parent=1 // pred_fallthru
      _
    // Predicated region
    $region102: #{tcnnds_forward.1} parent=1 // pred_check
      _
    $region103: #{tcnnds_forward.1} parent=1 // pred_check_branch
      %192 = sbr.rel (0) target = $region105
    $region104: #{tcnnds_forward.1} parent=1 // pred_region
      %193 = dma.done [#allocation8], 16
    $region105: #{tcnnds_forward.1} parent=1 // pred_fallthru
      _
    // Predicated region
    $region106: #{tcnnds_forward.1} parent=1 // pred_check
      _
    $region107: #{tcnnds_forward.1} parent=1 // pred_check_branch
      %195 = sbr.rel (0) target = $region109
    $region108: #{tcnnds_forward.1} parent=1 // pred_region
      %196 = dma.done [#allocation11], 16
    $region109: #{tcnnds_forward.1} parent=1 // pred_fallthru
      _
    // Predicated region
    $region110: #{tcnnds_forward.1} parent=1 // pred_check
      _
    $region111: #{tcnnds_forward.1} parent=1 // pred_check_branch
      %198 = sbr.rel (0) target = $region113
    $region112: #{tcnnds_forward.1} parent=1 // pred_region
      %199 = dma.done [#allocation11], 512
    $region113: #{tcnnds_forward.1} parent=1 // pred_fallthru
      _
    // Predicated region
    $region114: #{tcnnds_forward.1} parent=1 // pred_check
      _
    $region115: #{tcnnds_forward.1} parent=1 // pred_check_branch
      %201 = sbr.rel (0) target = $region117
    $region116: #{tcnnds_forward.1} parent=1 // pred_region
      %202 = dma.done [#allocation14], 16
    $region117: #{tcnnds_forward.1} parent=1 // pred_fallthru
      _
    // Predicated region
    $region118: #{tcnnds_forward.1} parent=1 // pred_check
      _
    $region119: #{tcnnds_forward.1} parent=1 // pred_check_branch
      %204 = sbr.rel (0) target = $region121
    $region120: #{tcnnds_forward.1} parent=1 // pred_region
      %205 = dma.done [#allocation14], 16
    $region121: #{tcnnds_forward.1} parent=1 // pred_fallthru
      _
    // Predicated region
    $region122: #{tcnnds_forward.1} parent=1 // pred_check
      _
    $region123: #{tcnnds_forward.1} parent=1 // pred_check_branch
      %207 = sbr.rel (0) target = $region125
    $region124: #{tcnnds_forward.1} parent=1 // pred_region
      %208 = dma.done [#allocation17], 16
    $region125: #{tcnnds_forward.1} parent=1 // pred_fallthru
      _
    // Predicated region
    $region126: #{tcnnds_forward.1} parent=1 // pred_check
      _
    $region127: #{tcnnds_forward.1} parent=1 // pred_check_branch
      %210 = sbr.rel (0) target = $region129
    $region128: #{tcnnds_forward.1} parent=1 // pred_region
      %211 = dma.done [#allocation17], 512
    $region129: #{tcnnds_forward.1} parent=1 // pred_fallthru
      _
    // Predicated region
    $region130: #{tcnnds_forward.1} parent=1 // pred_check
      _
    $region131: #{tcnnds_forward.1} parent=1 // pred_check_branch
      %213 = sbr.rel (0) target = $region133
    $region132: #{tcnnds_forward.1} parent=1 // pred_region
      %214 = dma.done [#allocation20], 16
    $region133: #{tcnnds_forward.1} parent=1 // pred_fallthru
      _
    %v215 = vld [vmem:[%s2] sm:$0xff]
    %v216 = vld [vmem:[%s2 + $0x8] sm:$0xff]
    %v217 = vld [vmem:[%s2 + $0x10] sm:$0xff]
    %v218 = vld [vmem:[%s2 + $0x18] sm:$0xff]
    %v219 = vld [vmem:[%s0] sm:$0xff]
    %v220 = vld [vmem:[%s0 + $0x8] sm:$0xff]
    %v221 = vld [vmem:[%s0 + $0x10] sm:$0xff]
    %v222 = vld [vmem:[%s0 + $0x18] sm:$0xff]
    %v223 = vld [vmem:[#allocation4] sm:$0xff]
    %v224 = vld [vmem:[#allocation4 + $0x8] sm:$0xff]
    %v225 = vld [vmem:[#allocation4 + $0x10] sm:$0xf]
    %v226 = vld [vmem:[#allocation4 + $0x18] sm:$0xf]
    %v227 = vld [vmem:[%s4] sm:$0x3]
    %v229 = vlaneseq
    %v230 = vshrl.u32 %v229, 7
    %v231 = vsub.s32 0, %v230
    %v232 = vrot.slane %v227, %v231
    %v233 = vlaneseq
    %v234 = vshrl.u32 %v233, 7
    %v235 = vsub.s32 1, %v234
    %v236 = vrot.slane %v227, %v235
    %vm239 = vcmask 97280
    %v241 = vsel %vm239, %v219, 0
    %v244 = vsel %vm239, %v220, 0
    %v247 = vsel %vm239, %v221, 0
    %v250 = vsel %vm239, %v222, 0
    %vm252 = vcmask 1043456
    %v254 = vsel %vm252, %v225, 0
    %v257 = vsel %vm252, %v226, 0
    %259 = vmatprep.subr.mxu0 %v224
    %260 = vmatpush1.msra.mxu0 %v223
    %261 = vmatprep.subr.mxu0 %v257
    %262 = vmatpush1.msra.mxu0 %v254
    %263 = vmatprep.subr.mxu0 0.0
    %264 = vmatpush1.msra.mxu0 0.0
    %265 = vmatprep.subr.mxu0 0.0
    %266 = vmatpush1.msra.mxu0 0.0
    %267 = vmatprep.subr.mxu0 0.0
    %268 = vmatpush1.msra.mxu0 0.0
    %269 = vmatprep.subr.mxu0 0.0
    %270 = vmatpush1.msra.mxu0 0.0
    %271 = vmatprep.subr.mxu0 0.0
    %272 = vmatpush1.msra.mxu0 0.0
    %273 = vmatprep.subr.mxu0 0.0
    %274 = vmatpush1.msra.mxu0 0.0
    %275 = vmatprep.subr.mxu0 0.0
    %276 = vmatpush1.msra.mxu0 0.0
    %277 = vmatprep.subr.mxu0 0.0
    %278 = vmatpush1.msra.mxu0 0.0
    %279 = vmatprep.subr.mxu0 0.0
    %280 = vmatpush1.msra.mxu0 0.0
    %281 = vmatprep.subr.mxu0 0.0
    %282 = vmatpush1.msra.mxu0 0.0
    %283 = vmatprep.subr.mxu0 0.0
    %284 = vmatpush1.msra.mxu0 0.0
    %285 = vmatprep.subr.mxu0 0.0
    %286 = vmatpush1.msra.mxu0 0.0
    %287 = vmatprep.subr.mxu0 0.0
    %288 = vmatpush1.msra.mxu0 0.0
    %289 = vmatprep.subr.mxu0 0.0
    %290 = vmatpush1.msra.mxu0 0.0
    %291 = vmatprep.subr.mxu0 0.0
    %292 = vmatpush1.msra.mxu0 0.0
    %293 = vmatprep.subr.mxu0 0.0
    %294 = vmatpush1.msra.mxu0 0.0
    %295 = vmatprep.subr.mxu0 0.0
    %296 = vmatpush1.msra.mxu0 0.0
    %297 = vmatprep.subr.mxu0 0.0
    %298 = vmatpush1.msra.mxu0 0.0
    %299 = vmatprep.subr.mxu0 0.0
    %300 = vmatpush1.msra.mxu0 0.0
    %301 = vmatprep.subr.mxu0 0.0
    %302 = vmatpush1.msra.mxu0 0.0
    %303 = vmatprep.subr.mxu0 0.0
    %304 = vmatpush1.msra.mxu0 0.0
    %305 = vmatprep.subr.mxu0 0.0
    %306 = vmatpush1.msra.mxu0 0.0
    %307 = vmatprep.subr.mxu0 0.0
    %308 = vmatpush1.msra.mxu0 0.0
    %309 = vmatprep.subr.mxu0 0.0
    %310 = vmatpush1.msra.mxu0 0.0
    %311 = vmatprep.subr.mxu0 0.0
    %312 = vmatpush1.msra.mxu0 0.0
    %313 = vmatprep.subr.mxu0 0.0
    %314 = vmatpush1.msra.mxu0 0.0
    %315 = vmatprep.subr.mxu0 0.0
    %316 = vmatpush1.msra.mxu0 0.0
    %317 = vmatprep.subr.mxu0 0.0
    %318 = vmatpush1.msra.mxu0 0.0
    %319 = vmatprep.subr.mxu0 0.0
    %320 = vmatpush1.msra.mxu0 0.0
    %321 = vmatprep.subr.mxu0 0.0
    %322 = vmatpush1.msra.mxu0 0.0
    %323 = vmatprep.mubr.f32.mxu0 0.0
    %324 = vmatmul.mubr.f32.gmra.mrb[0].mxu0 %v241
    %v325 = vpop.f32.mrb[0].mxu0
    %v326 = vadd.f32 %v232, %v325
    %v327 = vpop.f32.mrb[0].mxu0
    %v328 = vadd.f32 %v236, %v327
    %329 = vmatprep.mubr.f32.mxu0 0.0
    %330 = vmatmul.mubr.f32.gmra.mrb[0].mxu0 %v244
    %v331 = vpop.f32.mrb[0].mxu0
    %v332 = vadd.f32 %v232, %v331
    %v333 = vpop.f32.mrb[0].mxu0
    %v334 = vadd.f32 %v236, %v333
    %335 = vmatprep.mubr.f32.mxu0 0.0
    %336 = vmatmul.mubr.f32.gmra.mrb[0].mxu0 %v247
    %v337 = vpop.f32.mrb[0].mxu0
    %v338 = vadd.f32 %v232, %v337
    %v339 = vpop.f32.mrb[0].mxu0
    %v340 = vadd.f32 %v236, %v339
    %341 = vmatprep.mubr.f32.mxu0 0.0
    %342 = vmatmul.mubr.f32.gmra.mrb[0].mxu0 %v250
    %v343 = vpop.f32.mrb[0].mxu0
    %v344 = vadd.f32 %v232, %v343
    %v345 = vpop.f32.mrb[0].mxu0
    %v346 = vadd.f32 %v236, %v345
    %347 = vdwg.mxu0
    %349 = vset.pattern.permute.xlu0 0
    %350 = vperm.xlu0 %349, %v215
    %v351 = vpop.permute.xlu0 %350
    %354 = vset.pattern.permute.xlu0 0
    %355 = vperm.xlu0 %354, %v216
    %v356 = vpop.permute.xlu0 %355
    %359 = vset.pattern.permute.xlu0 0
    %360 = vperm.xlu0 %359, %v217
    %v361 = vpop.permute.xlu0 %360
    %364 = vset.pattern.permute.xlu0 0
    %365 = vperm.xlu0 %364, %v218
    %v366 = vpop.permute.xlu0 %365
    %v368 = vmul.f32 %v326, %v351
    %v369 = vmul.f32 %v328, %v351
    %v370 = vmul.f32 %v332, %v356
    %v371 = vmul.f32 %v334, %v356
    %v372 = vmul.f32 %v338, %v361
    %v373 = vmul.f32 %v340, %v361
    %v374 = vmul.f32 %v344, %v366
    %v375 = vmul.f32 %v346, %v366
    %v376 = vadd.f32 %v368, %v369
    %377 = vadd.xlane.f32.xlu0 %v376
    %v378 = vpop.xlane.xlu0 %377
    %v379 = vadd.f32 %v370, %v371
    %380 = vadd.xlane.f32.xlu0 %v379
    %v381 = vpop.xlane.xlu0 %380
    %v382 = vadd.f32 %v372, %v373
    %383 = vadd.xlane.f32.xlu0 %v382
    %v384 = vpop.xlane.xlu0 %383
    %v385 = vadd.f32 %v374, %v375
    %386 = vadd.xlane.f32.xlu0 %v385
    %v387 = vpop.xlane.xlu0 %386
    %v388 = vrot.slane %v378, 4
    %v389 = vadd.f32 %v378, %v388
    %v390 = vrot.slane %v389, 2
    %v391 = vadd.f32 %v389, %v390
    %v392 = vrot.slane %v391, 1
    %v393 = vadd.f32 %v391, %v392
    %v394 = vrot.slane %v381, 4
    %v395 = vadd.f32 %v381, %v394
    %v396 = vrot.slane %v395, 2
    %v397 = vadd.f32 %v395, %v396
    %v398 = vrot.slane %v397, 1
    %v399 = vadd.f32 %v397, %v398
    %v400 = vrot.slane %v384, 4
    %v401 = vadd.f32 %v384, %v400
    %v402 = vrot.slane %v401, 2
    %v403 = vadd.f32 %v401, %v402
    %v404 = vrot.slane %v403, 1
    %v405 = vadd.f32 %v403, %v404
    %v406 = vrot.slane %v387, 4
    %v407 = vadd.f32 %v387, %v406
    %v408 = vrot.slane %v407, 2
    %v409 = vadd.f32 %v407, %v408
    %v410 = vrot.slane %v409, 1
    %v411 = vadd.f32 %v409, %v410
    %v412 = vmul.f32 %v393, 0.00048828125
    %v413 = vmul.f32 %v399, 0.00048828125
    %v414 = vmul.f32 %v405, 0.00048828125
    %v415 = vmul.f32 %v411, 0.00048828125
    %v416 = vsub.f32 %v368, %v412
    %v417 = vsub.f32 %v369, %v412
    %v418 = vsub.f32 %v370, %v413
    %v419 = vsub.f32 %v371, %v413
    %v420 = vsub.f32 %v372, %v414
    %v421 = vsub.f32 %v373, %v414
    %v422 = vsub.f32 %v374, %v415
    %v423 = vsub.f32 %v375, %v415
    %v424 = vmul.f32 %v416, %v416
    %v425 = vmul.f32 %v417, %v417
    %v426 = vmul.f32 %v418, %v418
    %v427 = vmul.f32 %v419, %v419
    %v428 = vmul.f32 %v420, %v420
    %v429 = vmul.f32 %v421, %v421
    %v430 = vmul.f32 %v422, %v422
    %v431 = vmul.f32 %v423, %v423
    %v432 = vadd.f32 %v424, %v425
    %433 = vadd.xlane.f32.xlu0 %v432
    %v434 = vpop.xlane.xlu0 %433
    %v435 = vadd.f32 %v426, %v427
    %436 = vadd.xlane.f32.xlu0 %v435
    %v437 = vpop.xlane.xlu0 %436
    %v438 = vadd.f32 %v428, %v429
    %439 = vadd.xlane.f32.xlu0 %v438
    %v440 = vpop.xlane.xlu0 %439
    %v441 = vadd.f32 %v430, %v431
    %442 = vadd.xlane.f32.xlu0 %v441
    %v443 = vpop.xlane.xlu0 %442
    %v444 = vrot.slane %v434, 4
    %v445 = vadd.f32 %v434, %v444
    %v446 = vrot.slane %v445, 2
    %v447 = vadd.f32 %v445, %v446
    %v448 = vrot.slane %v447, 1
    %v449 = vadd.f32 %v447, %v448
    %v450 = vrot.slane %v437, 4
    %v451 = vadd.f32 %v437, %v450
    %v452 = vrot.slane %v451, 2
    %v453 = vadd.f32 %v451, %v452
    %v454 = vrot.slane %v453, 1
    %v455 = vadd.f32 %v453, %v454
    %v456 = vrot.slane %v440, 4
    %v457 = vadd.f32 %v440, %v456
    %v458 = vrot.slane %v457, 2
    %v459 = vadd.f32 %v457, %v458
    %v460 = vrot.slane %v459, 1
    %v461 = vadd.f32 %v459, %v460
    %v462 = vrot.slane %v443, 4
    %v463 = vadd.f32 %v443, %v462
    %v464 = vrot.slane %v463, 2
    %v465 = vadd.f32 %v463, %v464
    %v466 = vrot.slane %v465, 1
    %v467 = vadd.f32 %v465, %v466
    %v468 = vmul.f32 %v449, 0.0004885198
    %v469 = vmul.f32 %v455, 0.0004885198
    %v470 = vmul.f32 %v461, 0.0004885198
    %v471 = vmul.f32 %v467, 0.0004885198
    %v472 = vrsqrt.pop %v468
    %v473 = vmul.f32 %v468, %v472
    %vm474 = vcmp.eq.f32.partialorder %v468, inf
    %v475 = vsel %vm474, %v468, %v473
    %vm476 = vcmp.eq.f32.partialorder %v468, 0.0
    %v477 = vand.u32 %v468, 2147483648
    %v478 = vsel %vm476, %v477, %v475
    %v479 = vrsqrt.pop %v469
    %v480 = vmul.f32 %v469, %v479
    %vm481 = vcmp.eq.f32.partialorder %v469, inf
    %v482 = vsel %vm481, %v469, %v480
    %vm483 = vcmp.eq.f32.partialorder %v469, 0.0
    %v484 = vand.u32 %v469, 2147483648
    %v485 = vsel %vm483, %v484, %v482
    %v486 = vrsqrt.pop %v470
    %v487 = vmul.f32 %v470, %v486
    %vm488 = vcmp.eq.f32.partialorder %v470, inf
    %v489 = vsel %vm488, %v470, %v487
    %vm490 = vcmp.eq.f32.partialorder %v470, 0.0
    %v491 = vand.u32 %v470, 2147483648
    %v492 = vsel %vm490, %v491, %v489
    %v493 = vrsqrt.pop %v471
    %v494 = vmul.f32 %v471, %v493
    %vm495 = vcmp.eq.f32.partialorder %v471, inf
    %v496 = vsel %vm495, %v471, %v494
    %vm497 = vcmp.eq.f32.partialorder %v471, 0.0
    %v498 = vand.u32 %v471, 2147483648
    %v499 = vsel %vm497, %v498, %v496
    %v500 = vadd.f32 %v478, 1e-05
    %v501 = vadd.f32 %v485, 1e-05
    %v502 = vadd.f32 %v492, 1e-05
    %v503 = vadd.f32 %v499, 1e-05
    %v504 = vrcp.pop %v500
    %v505 = vrcp.pop %v501
    %v506 = vrcp.pop %v502
    %v507 = vrcp.pop %v503
    %v508 = vmul.f32 %v416, %v504
    %v509 = vmul.f32 %v417, %v504
    %v510 = vmul.f32 %v418, %v505
    %v511 = vmul.f32 %v419, %v505
    %v512 = vmul.f32 %v420, %v506
    %v513 = vmul.f32 %v421, %v506
    %v514 = vmul.f32 %v422, %v507
    %v515 = vmul.f32 %v423, %v507
    %vm516 = vcmp.gt.f32.partialorder %v508, 0.0
    %vm517 = vcmp.gt.f32.partialorder %v509, 0.0
    %vm518 = vcmp.gt.f32.partialorder %v510, 0.0
    %vm519 = vcmp.gt.f32.partialorder %v511, 0.0
    %vm520 = vcmp.gt.f32.partialorder %v512, 0.0
    %vm521 = vcmp.gt.f32.partialorder %v513, 0.0
    %vm522 = vcmp.gt.f32.partialorder %v514, 0.0
    %vm523 = vcmp.gt.f32.partialorder %v515, 0.0
    %v524 = vmul.f32 %v508, 0.01
    %v525 = vmul.f32 %v509, 0.01
    %v526 = vmul.f32 %v510, 0.01
    %v527 = vmul.f32 %v511, 0.01
    %v528 = vmul.f32 %v512, 0.01
    %v529 = vmul.f32 %v513, 0.01
    %v530 = vmul.f32 %v514, 0.01
    %v531 = vmul.f32 %v515, 0.01
    %v532 = vsel %vm516, %v508, %v524
    %v533 = vsel %vm517, %v509, %v525
    %v534 = vsel %vm518, %v510, %v526
    %v535 = vsel %vm519, %v511, %v527
    %v536 = vsel %vm520, %v512, %v528
    %v537 = vsel %vm521, %v513, %v529
    %v538 = vsel %vm522, %v514, %v530
    %v539 = vsel %vm523, %v515, %v531
    %v540 = vld [vmem:[%s5] sm:$0xff]
    %v541 = vld [vmem:[%s5 + $0x8] sm:$0xff]
    %v542 = vld [vmem:[%s5 + $0x10] sm:$0xff]
    %v543 = vld [vmem:[%s5 + $0x18] sm:$0xff]
    %v544 = vld [vmem:[%s5 + $0x20] sm:$0xff]
    %v545 = vld [vmem:[%s5 + $0x28] sm:$0xff]
    %v546 = vld [vmem:[%s5 + $0x30] sm:$0xff]
    %v547 = vld [vmem:[%s5 + $0x38] sm:$0xff]
    %v548 = vld [vmem:[%s5 + $0x40] sm:$0xff]
    %v549 = vld [vmem:[%s5 + $0x48] sm:$0xff]
    %v550 = vld [vmem:[%s5 + $0x50] sm:$0xff]
    %v551 = vld [vmem:[%s5 + $0x58] sm:$0xff]
    %v552 = vld [vmem:[%s5 + $0x60] sm:$0xff]
    %v553 = vld [vmem:[%s5 + $0x68] sm:$0xff]
    %v554 = vld [vmem:[%s5 + $0x70] sm:$0xff]
    %v555 = vld [vmem:[%s5 + $0x78] sm:$0xff]
    %v556 = vld [vmem:[%s5 + $0x80] sm:$0xff]
    %v557 = vld [vmem:[%s5 + $0x88] sm:$0xff]
    %v558 = vld [vmem:[%s5 + $0x90] sm:$0xff]
    %v559 = vld [vmem:[%s5 + $0x98] sm:$0xff]
    %v560 = vld [vmem:[%s5 + $0xa0] sm:$0xff]
    %v561 = vld [vmem:[%s5 + $0xa8] sm:$0xff]
    %v562 = vld [vmem:[%s5 + $0xb0] sm:$0xff]
    %v563 = vld [vmem:[%s5 + $0xb8] sm:$0xff]
    %v564 = vld [vmem:[%s5 + $0xc0] sm:$0xff]
    %v565 = vld [vmem:[%s5 + $0xc8] sm:$0xff]
    %v566 = vld [vmem:[%s5 + $0xd0] sm:$0xff]
    %v567 = vld [vmem:[%s5 + $0xd8] sm:$0xff]
    %v568 = vld [vmem:[%s5 + $0xe0] sm:$0xff]
    %v569 = vld [vmem:[%s5 + $0xe8] sm:$0xff]
    %v570 = vld [vmem:[%s5 + $0xf0] sm:$0xff]
    %v571 = vld [vmem:[%s5 + $0xf8] sm:$0xff]
    %572 = vmatprep.subr.mxu0 0.0
    %573 = vmatpush1.msra.mxu0 %v540
    %574 = vmatprep.subr.mxu0 0.0
    %575 = vmatpush1.msra.mxu0 %v541
    %576 = vmatprep.subr.mxu0 0.0
    %577 = vmatpush1.msra.mxu0 %v542
    %578 = vmatprep.subr.mxu0 0.0
    %579 = vmatpush1.msra.mxu0 %v543
    %580 = vmatprep.subr.mxu0 0.0
    %581 = vmatpush1.msra.mxu0 %v544
    %582 = vmatprep.subr.mxu0 0.0
    %583 = vmatpush1.msra.mxu0 %v545
    %584 = vmatprep.subr.mxu0 0.0
    %585 = vmatpush1.msra.mxu0 %v546
    %586 = vmatprep.subr.mxu0 0.0
    %587 = vmatpush1.msra.mxu0 %v547
    %588 = vmatprep.subr.mxu0 0.0
    %589 = vmatpush1.msra.mxu0 %v548
    %590 = vmatprep.subr.mxu0 0.0
    %591 = vmatpush1.msra.mxu0 %v549
    %592 = vmatprep.subr.mxu0 0.0
    %593 = vmatpush1.msra.mxu0 %v550
    %594 = vmatprep.subr.mxu0 0.0
    %595 = vmatpush1.msra.mxu0 %v551
    %596 = vmatprep.subr.mxu0 0.0
    %597 = vmatpush1.msra.mxu0 %v552
    %598 = vmatprep.subr.mxu0 0.0
    %599 = vmatpush1.msra.mxu0 %v553
    %600 = vmatprep.subr.mxu0 0.0
    %601 = vmatpush1.msra.mxu0 %v554
    %602 = vmatprep.subr.mxu0 0.0
    %603 = vmatpush1.msra.mxu0 %v555
    %604 = vmatprep.subr.mxu0 0.0
    %605 = vmatpush1.msra.mxu0 %v556
    %606 = vmatprep.subr.mxu0 0.0
    %607 = vmatpush1.msra.mxu0 %v557
    %608 = vmatprep.subr.mxu0 0.0
    %609 = vmatpush1.msra.mxu0 %v558
    %610 = vmatprep.subr.mxu0 0.0
    %611 = vmatpush1.msra.mxu0 %v559
    %612 = vmatprep.subr.mxu0 0.0
    %613 = vmatpush1.msra.mxu0 %v560
    %614 = vmatprep.subr.mxu0 0.0
    %615 = vmatpush1.msra.mxu0 %v561
    %616 = vmatprep.subr.mxu0 0.0
    %617 = vmatpush1.msra.mxu0 %v562
    %618 = vmatprep.subr.mxu0 0.0
    %619 = vmatpush1.msra.mxu0 %v563
    %620 = vmatprep.subr.mxu0 0.0
    %621 = vmatpush1.msra.mxu0 %v564
    %622 = vmatprep.subr.mxu0 0.0
    %623 = vmatpush1.msra.mxu0 %v565
    %624 = vmatprep.subr.mxu0 0.0
    %625 = vmatpush1.msra.mxu0 %v566
    %626 = vmatprep.subr.mxu0 0.0
    %627 = vmatpush1.msra.mxu0 %v567
    %628 = vmatprep.subr.mxu0 0.0
    %629 = vmatpush1.msra.mxu0 %v568
    %630 = vmatprep.subr.mxu0 0.0
    %631 = vmatpush1.msra.mxu0 %v569
    %632 = vmatprep.subr.mxu0 0.0
    %633 = vmatpush1.msra.mxu0 %v570
    %634 = vmatprep.subr.mxu0 0.0
    %635 = vmatpush1.msra.mxu0 %v571
    %636 = vmatprep.mubr.f32.mxu0 %v533
    %637 = vmatmul.mubr.f32.gmra.mrb[0].mxu0 %v532
    %v638 = vpop.f32.mrb[0].mxu0
    %v639 = vadd.f32 0.0, %v638
    %v640 = vpop.f32.mrb[0].mxu0
    %641 = vmatprep.mubr.f32.mxu0 %v535
    %642 = vmatmul.mubr.f32.gmra.mrb[0].mxu0 %v534
    %v643 = vpop.f32.mrb[0].mxu0
    %v644 = vadd.f32 0.0, %v643
    %v645 = vpop.f32.mrb[0].mxu0
    %646 = vmatprep.mubr.f32.mxu0 %v537
    %647 = vmatmul.mubr.f32.gmra.mrb[0].mxu0 %v536
    %v648 = vpop.f32.mrb[0].mxu0
    %v649 = vadd.f32 0.0, %v648
    %v650 = vpop.f32.mrb[0].mxu0
    %651 = vmatprep.mubr.f32.mxu0 %v539
    %652 = vmatmul.mubr.f32.gmra.mrb[0].mxu0 %v538
    %v653 = vpop.f32.mrb[0].mxu0
    %v654 = vadd.f32 0.0, %v653
    %v655 = vpop.f32.mrb[0].mxu0
    %656 = vdwg.mxu0
    %v657 = vld [vmem:[#allocation2] sm:$0xf]
    %v658 = vld [vmem:[#allocation2 + $0x4] sm:$0xf]
    %v659 = vld [vmem:[#allocation2 + $0x8] sm:$0xf]
    %v660 = vld [vmem:[#allocation2 + $0xc] sm:$0xf]
    %v661 = vunpack.c.l.bf16 %v657
    %v662 = vunpack.c.l.bf16 %v658
    %v663 = vunpack.c.l.bf16 %v659
    %v664 = vunpack.c.l.bf16 %v660
    %s665 = scalar_lea.vmem %s5, 256
    %v666 = vld [vmem:[%s665] sm:$0xff]
    %v667 = vld [vmem:[%s665 + $0x8] sm:$0xff]
    %v668 = vld [vmem:[%s665 + $0x10] sm:$0xff]
    %v669 = vld [vmem:[%s665 + $0x18] sm:$0xff]
    %v670 = vld [vmem:[%s665 + $0x20] sm:$0xff]
    %v671 = vld [vmem:[%s665 + $0x28] sm:$0xff]
    %v672 = vld [vmem:[%s665 + $0x30] sm:$0xff]
    %v673 = vld [vmem:[%s665 + $0x38] sm:$0xff]
    %v674 = vld [vmem:[%s665 + $0x40] sm:$0xff]
    %v675 = vld [vmem:[%s665 + $0x48] sm:$0xff]
    %v676 = vld [vmem:[%s665 + $0x50] sm:$0xff]
    %v677 = vld [vmem:[%s665 + $0x58] sm:$0xff]
    %v678 = vld [vmem:[%s665 + $0x60] sm:$0xff]
    %v679 = vld [vmem:[%s665 + $0x68] sm:$0xff]
    %v680 = vld [vmem:[%s665 + $0x70] sm:$0xff]
    %v681 = vld [vmem:[%s665 + $0x78] sm:$0xff]
    %v682 = vld [vmem:[%s665 + $0x80] sm:$0xff]
    %v683 = vld [vmem:[%s665 + $0x88] sm:$0xff]
    %v684 = vld [vmem:[%s665 + $0x90] sm:$0xff]
    %v685 = vld [vmem:[%s665 + $0x98] sm:$0xff]
    %v686 = vld [vmem:[%s665 + $0xa0] sm:$0xff]
    %v687 = vld [vmem:[%s665 + $0xa8] sm:$0xff]
    %v688 = vld [vmem:[%s665 + $0xb0] sm:$0xff]
    %v689 = vld [vmem:[%s665 + $0xb8] sm:$0xff]
    %v690 = vld [vmem:[%s665 + $0xc0] sm:$0xff]
    %v691 = vld [vmem:[%s665 + $0xc8] sm:$0xff]
    %v692 = vld [vmem:[%s665 + $0xd0] sm:$0xff]
    %v693 = vld [vmem:[%s665 + $0xd8] sm:$0xff]
    %v694 = vld [vmem:[%s665 + $0xe0] sm:$0xff]
    %v695 = vld [vmem:[%s665 + $0xe8] sm:$0xff]
    %v696 = vld [vmem:[%s665 + $0xf0] sm:$0xff]
    %v697 = vld [vmem:[%s665 + $0xf8] sm:$0xff]
    %698 = vmatprep.subr.mxu0 0.0
    %699 = vmatpush1.msra.mxu0 %v666
    %700 = vmatprep.subr.mxu0 0.0
    %701 = vmatpush1.msra.mxu0 %v667
    %702 = vmatprep.subr.mxu0 0.0
    %703 = vmatpush1.msra.mxu0 %v668
    %704 = vmatprep.subr.mxu0 0.0
    %705 = vmatpush1.msra.mxu0 %v669
    %706 = vmatprep.subr.mxu0 0.0
    %707 = vmatpush1.msra.mxu0 %v670
    %708 = vmatprep.subr.mxu0 0.0
    %709 = vmatpush1.msra.mxu0 %v671
    %710 = vmatprep.subr.mxu0 0.0
    %711 = vmatpush1.msra.mxu0 %v672
    %712 = vmatprep.subr.mxu0 0.0
    %713 = vmatpush1.msra.mxu0 %v673
    %714 = vmatprep.subr.mxu0 0.0
    %715 = vmatpush1.msra.mxu0 %v674
    %716 = vmatprep.subr.mxu0 0.0
    %717 = vmatpush1.msra.mxu0 %v675
    %718 = vmatprep.subr.mxu0 0.0
    %719 = vmatpush1.msra.mxu0 %v676
    %720 = vmatprep.subr.mxu0 0.0
    %721 = vmatpush1.msra.mxu0 %v677
    %722 = vmatprep.subr.mxu0 0.0
    %723 = vmatpush1.msra.mxu0 %v678
    %724 = vmatprep.subr.mxu0 0.0
    %725 = vmatpush1.msra.mxu0 %v679
    %726 = vmatprep.subr.mxu0 0.0
    %727 = vmatpush1.msra.mxu0 %v680
    %728 = vmatprep.subr.mxu0 0.0
    %729 = vmatpush1.msra.mxu0 %v681
    %730 = vmatprep.subr.mxu0 0.0
    %731 = vmatpush1.msra.mxu0 %v682
    %732 = vmatprep.subr.mxu0 0.0
    %733 = vmatpush1.msra.mxu0 %v683
    %734 = vmatprep.subr.mxu0 0.0
    %735 = vmatpush1.msra.mxu0 %v684
    %736 = vmatprep.subr.mxu0 0.0
    %737 = vmatpush1.msra.mxu0 %v685
    %738 = vmatprep.subr.mxu0 0.0
    %739 = vmatpush1.msra.mxu0 %v686
    %740 = vmatprep.subr.mxu0 0.0
    %741 = vmatpush1.msra.mxu0 %v687
    %742 = vmatprep.subr.mxu0 0.0
    %743 = vmatpush1.msra.mxu0 %v688
    %744 = vmatprep.subr.mxu0 0.0
    %745 = vmatpush1.msra.mxu0 %v689
    %746 = vmatprep.subr.mxu0 0.0
    %747 = vmatpush1.msra.mxu0 %v690
    %748 = vmatprep.subr.mxu0 0.0
    %749 = vmatpush1.msra.mxu0 %v691
    %750 = vmatprep.subr.mxu0 0.0
    %751 = vmatpush1.msra.mxu0 %v692
    %752 = vmatprep.subr.mxu0 0.0
    %753 = vmatpush1.msra.mxu0 %v693
    %754 = vmatprep.subr.mxu0 0.0
    %755 = vmatpush1.msra.mxu0 %v694
    %756 = vmatprep.subr.mxu0 0.0
    %757 = vmatpush1.msra.mxu0 %v695
    %758 = vmatprep.subr.mxu0 0.0
    %759 = vmatpush1.msra.mxu0 %v696
    %760 = vmatprep.subr.mxu0 0.0
    %761 = vmatpush1.msra.mxu0 %v697
    %762 = vmatprep.mubr.f32.mxu0 %v533
    %763 = vmatmul.mubr.f32.gmra.mrb[0].mxu0 %v532
    %v764 = vpop.f32.mrb[0].mxu0
    %v765 = vadd.f32 0.0, %v764
    %v766 = vpop.f32.mrb[0].mxu0
    %767 = vmatprep.mubr.f32.mxu0 %v535
    %768 = vmatmul.mubr.f32.gmra.mrb[0].mxu0 %v534
    %v769 = vpop.f32.mrb[0].mxu0
    %v770 = vadd.f32 0.0, %v769
    %v771 = vpop.f32.mrb[0].mxu0
    %772 = vmatprep.mubr.f32.mxu0 %v537
    %773 = vmatmul.mubr.f32.gmra.mrb[0].mxu0 %v536
    %v774 = vpop.f32.mrb[0].mxu0
    %v775 = vadd.f32 0.0, %v774
    %v776 = vpop.f32.mrb[0].mxu0
    %777 = vmatprep.mubr.f32.mxu0 %v539
    %778 = vmatmul.mubr.f32.gmra.mrb[0].mxu0 %v538
    %v779 = vpop.f32.mrb[0].mxu0
    %v780 = vadd.f32 0.0, %v779
    %v781 = vpop.f32.mrb[0].mxu0
    %782 = vdwg.mxu0
    %s783 = scalar_lea.vmem [#allocation2], 16
    %v784 = vld [vmem:[%s783] sm:$0xf]
    %v785 = vld [vmem:[%s783 + $0x4] sm:$0xf]
    %v786 = vld [vmem:[%s783 + $0x8] sm:$0xf]
    %v787 = vld [vmem:[%s783 + $0xc] sm:$0xf]
    %v788 = vunpack.c.l.bf16 %v784
    %v789 = vunpack.c.l.bf16 %v785
    %v790 = vunpack.c.l.bf16 %v786
    %v791 = vunpack.c.l.bf16 %v787
    %vm792 = vcmask 64512
    %v794 = vsel %vm792, %v788, 0
    %796 = vmatprep.subr.mxu0 0.0
    %797 = vmatpush1.msra.mxu0 %v765
    %798 = vmatprep.subr.mxu0 0.0
    %799 = vmatpush1.msra.mxu0 0.0
    %800 = vmatprep.subr.mxu0 0.0
    %801 = vmatpush1.msra.mxu0 0.0
    %802 = vmatprep.subr.mxu0 0.0
    %803 = vmatpush1.msra.mxu0 0.0
    %804 = vmatprep.subr.mxu0 0.0
    %805 = vmatpush1.msra.mxu0 0.0
    %806 = vmatprep.subr.mxu0 0.0
    %807 = vmatpush1.msra.mxu0 0.0
    %808 = vmatprep.subr.mxu0 0.0
    %809 = vmatpush1.msra.mxu0 0.0
    %810 = vmatprep.subr.mxu0 0.0
    %811 = vmatpush1.msra.mxu0 0.0
    %812 = vmatprep.subr.mxu0 0.0
    %813 = vmatpush1.msra.mxu0 0.0
    %814 = vmatprep.subr.mxu0 0.0
    %815 = vmatpush1.msra.mxu0 0.0
    %816 = vmatprep.subr.mxu0 0.0
    %817 = vmatpush1.msra.mxu0 0.0
    %818 = vmatprep.subr.mxu0 0.0
    %819 = vmatpush1.msra.mxu0 0.0
    %820 = vmatprep.subr.mxu0 0.0
    %821 = vmatpush1.msra.mxu0 0.0
    %822 = vmatprep.subr.mxu0 0.0
    %823 = vmatpush1.msra.mxu0 0.0
    %824 = vmatprep.subr.mxu0 0.0
    %825 = vmatpush1.msra.mxu0 0.0
    %826 = vmatprep.subr.mxu0 0.0
    %827 = vmatpush1.msra.mxu0 0.0
    %828 = vmatprep.subr.mxu0 0.0
    %829 = vmatpush1.msra.mxu0 0.0
    %830 = vmatprep.subr.mxu0 0.0
    %831 = vmatpush1.msra.mxu0 0.0
    %832 = vmatprep.subr.mxu0 0.0
    %833 = vmatpush1.msra.mxu0 0.0
    %834 = vmatprep.subr.mxu0 0.0
    %835 = vmatpush1.msra.mxu0 0.0
    %836 = vmatprep.subr.mxu0 0.0
    %837 = vmatpush1.msra.mxu0 0.0
    %838 = vmatprep.subr.mxu0 0.0
    %839 = vmatpush1.msra.mxu0 0.0
    %840 = vmatprep.subr.mxu0 0.0
    %841 = vmatpush1.msra.mxu0 0.0
    %842 = vmatprep.subr.mxu0 0.0
    %843 = vmatpush1.msra.mxu0 0.0
    %844 = vmatprep.subr.mxu0 0.0
    %845 = vmatpush1.msra.mxu0 0.0
    %846 = vmatprep.subr.mxu0 0.0
    %847 = vmatpush1.msra.mxu0 0.0
    %848 = vmatprep.subr.mxu0 0.0
    %849 = vmatpush1.msra.mxu0 0.0
    %850 = vmatprep.subr.mxu0 0.0
    %851 = vmatpush1.msra.mxu0 0.0
    %852 = vmatprep.subr.mxu0 0.0
    %853 = vmatpush1.msra.mxu0 0.0
    %854 = vmatprep.subr.mxu0 0.0
    %855 = vmatpush1.msra.mxu0 0.0
    %856 = vmatprep.subr.mxu0 0.0
    %857 = vmatpush1.msra.mxu0 0.0
    %858 = vmatprep.subr.mxu0 0.0
    %859 = vmatpush1.msra.mxu0 0.0
    %860 = vmatprep.mubr.f32.mxu0 0.0
    %861 = vmatmul.mubr.f32.gmra.mrb[0].mxu0 %v794
    %v862 = vpop.f32.mrb[0].mxu0
    %v863 = vadd.f32 0.0, %v862
    %v864 = vpop.f32.mrb[0].mxu0
    %865 = vdwg.mxu0
    %v867 = vsel %vm792, %v789, 0
    %869 = vmatprep.subr.mxu0 0.0
    %870 = vmatpush1.msra.mxu0 %v770
    %871 = vmatprep.subr.mxu0 0.0
    %872 = vmatpush1.msra.mxu0 0.0
    %873 = vmatprep.subr.mxu0 0.0
    %874 = vmatpush1.msra.mxu0 0.0
    %875 = vmatprep.subr.mxu0 0.0
    %876 = vmatpush1.msra.mxu0 0.0
    %877 = vmatprep.subr.mxu0 0.0
    %878 = vmatpush1.msra.mxu0 0.0
    %879 = vmatprep.subr.mxu0 0.0
    %880 = vmatpush1.msra.mxu0 0.0
    %881 = vmatprep.subr.mxu0 0.0
    %882 = vmatpush1.msra.mxu0 0.0
    %883 = vmatprep.subr.mxu0 0.0
    %884 = vmatpush1.msra.mxu0 0.0
    %885 = vmatprep.subr.mxu0 0.0
    %886 = vmatpush1.msra.mxu0 0.0
    %887 = vmatprep.subr.mxu0 0.0
    %888 = vmatpush1.msra.mxu0 0.0
    %889 = vmatprep.subr.mxu0 0.0
    %890 = vmatpush1.msra.mxu0 0.0
    %891 = vmatprep.subr.mxu0 0.0
    %892 = vmatpush1.msra.mxu0 0.0
    %893 = vmatprep.subr.mxu0 0.0
    %894 = vmatpush1.msra.mxu0 0.0
    %895 = vmatprep.subr.mxu0 0.0
    %896 = vmatpush1.msra.mxu0 0.0
    %897 = vmatprep.subr.mxu0 0.0
    %898 = vmatpush1.msra.mxu0 0.0
    %899 = vmatprep.subr.mxu0 0.0
    %900 = vmatpush1.msra.mxu0 0.0
    %901 = vmatprep.subr.mxu0 0.0
    %902 = vmatpush1.msra.mxu0 0.0
    %903 = vmatprep.subr.mxu0 0.0
    %904 = vmatpush1.msra.mxu0 0.0
    %905 = vmatprep.subr.mxu0 0.0
    %906 = vmatpush1.msra.mxu0 0.0
    %907 = vmatprep.subr.mxu0 0.0
    %908 = vmatpush1.msra.mxu0 0.0
    %909 = vmatprep.subr.mxu0 0.0
    %910 = vmatpush1.msra.mxu0 0.0
    %911 = vmatprep.subr.mxu0 0.0
    %912 = vmatpush1.msra.mxu0 0.0
    %913 = vmatprep.subr.mxu0 0.0
    %914 = vmatpush1.msra.mxu0 0.0
    %915 = vmatprep.subr.mxu0 0.0
    %916 = vmatpush1.msra.mxu0 0.0
    %917 = vmatprep.subr.mxu0 0.0
    %918 = vmatpush1.msra.mxu0 0.0
    %919 = vmatprep.subr.mxu0 0.0
    %920 = vmatpush1.msra.mxu0 0.0
    %921 = vmatprep.subr.mxu0 0.0
    %922 = vmatpush1.msra.mxu0 0.0
    %923 = vmatprep.subr.mxu0 0.0
    %924 = vmatpush1.msra.mxu0 0.0
    %925 = vmatprep.subr.mxu0 0.0
    %926 = vmatpush1.msra.mxu0 0.0
    %927 = vmatprep.subr.mxu0 0.0
    %928 = vmatpush1.msra.mxu0 0.0
    %929 = vmatprep.subr.mxu0 0.0
    %930 = vmatpush1.msra.mxu0 0.0
    %931 = vmatprep.subr.mxu0 0.0
    %932 = vmatpush1.msra.mxu0 0.0
    %933 = vmatprep.mubr.f32.mxu0 0.0
    %934 = vmatmul.mubr.f32.gmra.mrb[0].mxu0 %v867
    %v935 = vpop.f32.mrb[0].mxu0
    %v936 = vadd.f32 0.0, %v935
    %v937 = vpop.f32.mrb[0].mxu0
    %938 = vdwg.mxu0
    %v940 = vsel %vm792, %v790, 0
    %942 = vmatprep.subr.mxu0 0.0
    %943 = vmatpush1.msra.mxu0 %v775
    %944 = vmatprep.subr.mxu0 0.0
    %945 = vmatpush1.msra.mxu0 0.0
    %946 = vmatprep.subr.mxu0 0.0
    %947 = vmatpush1.msra.mxu0 0.0
    %948 = vmatprep.subr.mxu0 0.0
    %949 = vmatpush1.msra.mxu0 0.0
    %950 = vmatprep.subr.mxu0 0.0
    %951 = vmatpush1.msra.mxu0 0.0
    %952 = vmatprep.subr.mxu0 0.0
    %953 = vmatpush1.msra.mxu0 0.0
    %954 = vmatprep.subr.mxu0 0.0
    %955 = vmatpush1.msra.mxu0 0.0
    %956 = vmatprep.subr.mxu0 0.0
    %957 = vmatpush1.msra.mxu0 0.0
    %958 = vmatprep.subr.mxu0 0.0
    %959 = vmatpush1.msra.mxu0 0.0
    %960 = vmatprep.subr.mxu0 0.0
    %961 = vmatpush1.msra.mxu0 0.0
    %962 = vmatprep.subr.mxu0 0.0
    %963 = vmatpush1.msra.mxu0 0.0
    %964 = vmatprep.subr.mxu0 0.0
    %965 = vmatpush1.msra.mxu0 0.0
    %966 = vmatprep.subr.mxu0 0.0
    %967 = vmatpush1.msra.mxu0 0.0
    %968 = vmatprep.subr.mxu0 0.0
    %969 = vmatpush1.msra.mxu0 0.0
    %970 = vmatprep.subr.mxu0 0.0
    %971 = vmatpush1.msra.mxu0 0.0
    %972 = vmatprep.subr.mxu0 0.0
    %973 = vmatpush1.msra.mxu0 0.0
    %974 = vmatprep.subr.mxu0 0.0
    %975 = vmatpush1.msra.mxu0 0.0
    %976 = vmatprep.subr.mxu0 0.0
    %977 = vmatpush1.msra.mxu0 0.0
    %978 = vmatprep.subr.mxu0 0.0
    %979 = vmatpush1.msra.mxu0 0.0
    %980 = vmatprep.subr.mxu0 0.0
    %981 = vmatpush1.msra.mxu0 0.0
    %982 = vmatprep.subr.mxu0 0.0
    %983 = vmatpush1.msra.mxu0 0.0
    %984 = vmatprep.subr.mxu0 0.0
    %985 = vmatpush1.msra.mxu0 0.0
    %986 = vmatprep.subr.mxu0 0.0
    %987 = vmatpush1.msra.mxu0 0.0
    %988 = vmatprep.subr.mxu0 0.0
    %989 = vmatpush1.msra.mxu0 0.0
    %990 = vmatprep.subr.mxu0 0.0
    %991 = vmatpush1.msra.mxu0 0.0
    %992 = vmatprep.subr.mxu0 0.0
    %993 = vmatpush1.msra.mxu0 0.0
    %994 = vmatprep.subr.mxu0 0.0
    %995 = vmatpush1.msra.mxu0 0.0
    %996 = vmatprep.subr.mxu0 0.0
    %997 = vmatpush1.msra.mxu0 0.0
    %998 = vmatprep.subr.mxu0 0.0
    %999 = vmatpush1.msra.mxu0 0.0
    %1000 = vmatprep.subr.mxu0 0.0
    %1001 = vmatpush1.msra.mxu0 0.0
    %1002 = vmatprep.subr.mxu0 0.0
    %1003 = vmatpush1.msra.mxu0 0.0
    %1004 = vmatprep.subr.mxu0 0.0
    %1005 = vmatpush1.msra.mxu0 0.0
    %1006 = vmatprep.mubr.f32.mxu0 0.0
    %1007 = vmatmul.mubr.f32.gmra.mrb[0].mxu0 %v940
    %v1008 = vpop.f32.mrb[0].mxu0
    %v1009 = vadd.f32 0.0, %v1008
    %v1010 = vpop.f32.mrb[0].mxu0
    %1011 = vdwg.mxu0
    %v1013 = vsel %vm792, %v791, 0
    %1015 = vmatprep.subr.mxu0 0.0
    %1016 = vmatpush1.msra.mxu0 %v780
    %1017 = vmatprep.subr.mxu0 0.0
    %1018 = vmatpush1.msra.mxu0 0.0
    %1019 = vmatprep.subr.mxu0 0.0
    %1020 = vmatpush1.msra.mxu0 0.0
    %1021 = vmatprep.subr.mxu0 0.0
    %1022 = vmatpush1.msra.mxu0 0.0
    %1023 = vmatprep.subr.mxu0 0.0
    %1024 = vmatpush1.msra.mxu0 0.0
    %1025 = vmatprep.subr.mxu0 0.0
    %1026 = vmatpush1.msra.mxu0 0.0
    %1027 = vmatprep.subr.mxu0 0.0
    %1028 = vmatpush1.msra.mxu0 0.0
    %1029 = vmatprep.subr.mxu0 0.0
    %1030 = vmatpush1.msra.mxu0 0.0
    %1031 = vmatprep.subr.mxu0 0.0
    %1032 = vmatpush1.msra.mxu0 0.0
    %1033 = vmatprep.subr.mxu0 0.0
    %1034 = vmatpush1.msra.mxu0 0.0
    %1035 = vmatprep.subr.mxu0 0.0
    %1036 = vmatpush1.msra.mxu0 0.0
    %1037 = vmatprep.subr.mxu0 0.0
    %1038 = vmatpush1.msra.mxu0 0.0
    %1039 = vmatprep.subr.mxu0 0.0
    %1040 = vmatpush1.msra.mxu0 0.0
    %1041 = vmatprep.subr.mxu0 0.0
    %1042 = vmatpush1.msra.mxu0 0.0
    %1043 = vmatprep.subr.mxu0 0.0
    %1044 = vmatpush1.msra.mxu0 0.0
    %1045 = vmatprep.subr.mxu0 0.0
    %1046 = vmatpush1.msra.mxu0 0.0
    %1047 = vmatprep.subr.mxu0 0.0
    %1048 = vmatpush1.msra.mxu0 0.0
    %1049 = vmatprep.subr.mxu0 0.0
    %1050 = vmatpush1.msra.mxu0 0.0
    %1051 = vmatprep.subr.mxu0 0.0
    %1052 = vmatpush1.msra.mxu0 0.0
    %1053 = vmatprep.subr.mxu0 0.0
    %1054 = vmatpush1.msra.mxu0 0.0
    %1055 = vmatprep.subr.mxu0 0.0
    %1056 = vmatpush1.msra.mxu0 0.0
    %1057 = vmatprep.subr.mxu0 0.0
    %1058 = vmatpush1.msra.mxu0 0.0
    %1059 = vmatprep.subr.mxu0 0.0
    %1060 = vmatpush1.msra.mxu0 0.0
    %1061 = vmatprep.subr.mxu0 0.0
    %1062 = vmatpush1.msra.mxu0 0.0
    %1063 = vmatprep.subr.mxu0 0.0
    %1064 = vmatpush1.msra.mxu0 0.0
    %1065 = vmatprep.subr.mxu0 0.0
    %1066 = vmatpush1.msra.mxu0 0.0
    %1067 = vmatprep.subr.mxu0 0.0
    %1068 = vmatpush1.msra.mxu0 0.0
    %1069 = vmatprep.subr.mxu0 0.0
    %1070 = vmatpush1.msra.mxu0 0.0
    %1071 = vmatprep.subr.mxu0 0.0
    %1072 = vmatpush1.msra.mxu0 0.0
    %1073 = vmatprep.subr.mxu0 0.0
    %1074 = vmatpush1.msra.mxu0 0.0
    %1075 = vmatprep.subr.mxu0 0.0
    %1076 = vmatpush1.msra.mxu0 0.0
    %1077 = vmatprep.subr.mxu0 0.0
    %1078 = vmatpush1.msra.mxu0 0.0
    %1079 = vmatprep.mubr.f32.mxu0 0.0
    %1080 = vmatmul.mubr.f32.gmra.mrb[0].mxu0 %v1013
    %v1081 = vpop.f32.mrb[0].mxu0
    %v1082 = vadd.f32 0.0, %v1081
    %v1083 = vpop.f32.mrb[0].mxu0
    %1084 = vdwg.mxu0
    %v1086 = vsel %vm792, %v661, 0
    %1088 = vmatprep.subr.mxu0 0.0
    %1089 = vmatpush1.msra.mxu0 %v639
    %1090 = vmatprep.subr.mxu0 0.0
    %1091 = vmatpush1.msra.mxu0 0.0
    %1092 = vmatprep.subr.mxu0 0.0
    %1093 = vmatpush1.msra.mxu0 0.0
    %1094 = vmatprep.subr.mxu0 0.0
    %1095 = vmatpush1.msra.mxu0 0.0
    %1096 = vmatprep.subr.mxu0 0.0
    %1097 = vmatpush1.msra.mxu0 0.0
    %1098 = vmatprep.subr.mxu0 0.0
    %1099 = vmatpush1.msra.mxu0 0.0
    %1100 = vmatprep.subr.mxu0 0.0
    %1101 = vmatpush1.msra.mxu0 0.0
    %1102 = vmatprep.subr.mxu0 0.0
    %1103 = vmatpush1.msra.mxu0 0.0
    %1104 = vmatprep.subr.mxu0 0.0
    %1105 = vmatpush1.msra.mxu0 0.0
    %1106 = vmatprep.subr.mxu0 0.0
    %1107 = vmatpush1.msra.mxu0 0.0
    %1108 = vmatprep.subr.mxu0 0.0
    %1109 = vmatpush1.msra.mxu0 0.0
    %1110 = vmatprep.subr.mxu0 0.0
    %1111 = vmatpush1.msra.mxu0 0.0
    %1112 = vmatprep.subr.mxu0 0.0
    %1113 = vmatpush1.msra.mxu0 0.0
    %1114 = vmatprep.subr.mxu0 0.0
    %1115 = vmatpush1.msra.mxu0 0.0
    %1116 = vmatprep.subr.mxu0 0.0
    %1117 = vmatpush1.msra.mxu0 0.0
    %1118 = vmatprep.subr.mxu0 0.0
    %1119 = vmatpush1.msra.mxu0 0.0
    %1120 = vmatprep.subr.mxu0 0.0
    %1121 = vmatpush1.msra.mxu0 0.0
    %1122 = vmatprep.subr.mxu0 0.0
    %1123 = vmatpush1.msra.mxu0 0.0
    %1124 = vmatprep.subr.mxu0 0.0
    %1125 = vmatpush1.msra.mxu0 0.0
    %1126 = vmatprep.subr.mxu0 0.0
    %1127 = vmatpush1.msra.mxu0 0.0
    %1128 = vmatprep.subr.mxu0 0.0
    %1129 = vmatpush1.msra.mxu0 0.0
    %1130 = vmatprep.subr.mxu0 0.0
    %1131 = vmatpush1.msra.mxu0 0.0
    %1132 = vmatprep.subr.mxu0 0.0
    %1133 = vmatpush1.msra.mxu0 0.0
    %1134 = vmatprep.subr.mxu0 0.0
    %1135 = vmatpush1.msra.mxu0 0.0
    %1136 = vmatprep.subr.mxu0 0.0
    %1137 = vmatpush1.msra.mxu0 0.0
    %1138 = vmatprep.subr.mxu0 0.0
    %1139 = vmatpush1.msra.mxu0 0.0
    %1140 = vmatprep.subr.mxu0 0.0
    %1141 = vmatpush1.msra.mxu0 0.0
    %1142 = vmatprep.subr.mxu0 0.0
    %1143 = vmatpush1.msra.mxu0 0.0
    %1144 = vmatprep.subr.mxu0 0.0
    %1145 = vmatpush1.msra.mxu0 0.0
    %1146 = vmatprep.subr.mxu0 0.0
    %1147 = vmatpush1.msra.mxu0 0.0
    %1148 = vmatprep.subr.mxu0 0.0
    %1149 = vmatpush1.msra.mxu0 0.0
    %1150 = vmatprep.subr.mxu0 0.0
    %1151 = vmatpush1.msra.mxu0 0.0
    %1152 = vmatprep.mubr.f32.mxu0 0.0
    %1153 = vmatmul.mubr.f32.gmra.mrb[0].mxu0 %v1086
    %v1154 = vpop.f32.mrb[0].mxu0
    %v1155 = vadd.f32 %v863, %v1154
    %v1156 = vpop.f32.mrb[0].mxu0
    %1157 = vdwg.mxu0
    %v1159 = vsel %vm792, %v662, 0
    %1161 = vmatprep.subr.mxu0 0.0
    %1162 = vmatpush1.msra.mxu0 %v644
    %1163 = vmatprep.subr.mxu0 0.0
    %1164 = vmatpush1.msra.mxu0 0.0
    %1165 = vmatprep.subr.mxu0 0.0
    %1166 = vmatpush1.msra.mxu0 0.0
    %1167 = vmatprep.subr.mxu0 0.0
    %1168 = vmatpush1.msra.mxu0 0.0
    %1169 = vmatprep.subr.mxu0 0.0
    %1170 = vmatpush1.msra.mxu0 0.0
    %1171 = vmatprep.subr.mxu0 0.0
    %1172 = vmatpush1.msra.mxu0 0.0
    %1173 = vmatprep.subr.mxu0 0.0
    %1174 = vmatpush1.msra.mxu0 0.0
    %1175 = vmatprep.subr.mxu0 0.0
    %1176 = vmatpush1.msra.mxu0 0.0
    %1177 = vmatprep.subr.mxu0 0.0
    %1178 = vmatpush1.msra.mxu0 0.0
    %1179 = vmatprep.subr.mxu0 0.0
    %1180 = vmatpush1.msra.mxu0 0.0
    %1181 = vmatprep.subr.mxu0 0.0
    %1182 = vmatpush1.msra.mxu0 0.0
    %1183 = vmatprep.subr.mxu0 0.0
    %1184 = vmatpush1.msra.mxu0 0.0
    %1185 = vmatprep.subr.mxu0 0.0
    %1186 = vmatpush1.msra.mxu0 0.0
    %1187 = vmatprep.subr.mxu0 0.0
    %1188 = vmatpush1.msra.mxu0 0.0
    %1189 = vmatprep.subr.mxu0 0.0
    %1190 = vmatpush1.msra.mxu0 0.0
    %1191 = vmatprep.subr.mxu0 0.0
    %1192 = vmatpush1.msra.mxu0 0.0
    %1193 = vmatprep.subr.mxu0 0.0
    %1194 = vmatpush1.msra.mxu0 0.0
    %1195 = vmatprep.subr.mxu0 0.0
    %1196 = vmatpush1.msra.mxu0 0.0
    %1197 = vmatprep.subr.mxu0 0.0
    %1198 = vmatpush1.msra.mxu0 0.0
    %1199 = vmatprep.subr.mxu0 0.0
    %1200 = vmatpush1.msra.mxu0 0.0
    %1201 = vmatprep.subr.mxu0 0.0
    %1202 = vmatpush1.msra.mxu0 0.0
    %1203 = vmatprep.subr.mxu0 0.0
    %1204 = vmatpush1.msra.mxu0 0.0
    %1205 = vmatprep.subr.mxu0 0.0
    %1206 = vmatpush1.msra.mxu0 0.0
    %1207 = vmatprep.subr.mxu0 0.0
    %1208 = vmatpush1.msra.mxu0 0.0
    %1209 = vmatprep.subr.mxu0 0.0
    %1210 = vmatpush1.msra.mxu0 0.0
    %1211 = vmatprep.subr.mxu0 0.0
    %1212 = vmatpush1.msra.mxu0 0.0
    %1213 = vmatprep.subr.mxu0 0.0
    %1214 = vmatpush1.msra.mxu0 0.0
    %1215 = vmatprep.subr.mxu0 0.0
    %1216 = vmatpush1.msra.mxu0 0.0
    %1217 = vmatprep.subr.mxu0 0.0
    %1218 = vmatpush1.msra.mxu0 0.0
    %1219 = vmatprep.subr.mxu0 0.0
    %1220 = vmatpush1.msra.mxu0 0.0
    %1221 = vmatprep.subr.mxu0 0.0
    %1222 = vmatpush1.msra.mxu0 0.0
    %1223 = vmatprep.subr.mxu0 0.0
    %1224 = vmatpush1.msra.mxu0 0.0
    %1225 = vmatprep.mubr.f32.mxu0 0.0
    %1226 = vmatmul.mubr.f32.gmra.mrb[0].mxu0 %v1159
    %v1227 = vpop.f32.mrb[0].mxu0
    %v1228 = vadd.f32 %v936, %v1227
    %v1229 = vpop.f32.mrb[0].mxu0
    %1230 = vdwg.mxu0
    %v1232 = vsel %vm792, %v663, 0
    %1234 = vmatprep.subr.mxu0 0.0
    %1235 = vmatpush1.msra.mxu0 %v649
    %1236 = vmatprep.subr.mxu0 0.0
    %1237 = vmatpush1.msra.mxu0 0.0
    %1238 = vmatprep.subr.mxu0 0.0
    %1239 = vmatpush1.msra.mxu0 0.0
    %1240 = vmatprep.subr.mxu0 0.0
    %1241 = vmatpush1.msra.mxu0 0.0
    %1242 = vmatprep.subr.mxu0 0.0
    %1243 = vmatpush1.msra.mxu0 0.0
    %1244 = vmatprep.subr.mxu0 0.0
    %1245 = vmatpush1.msra.mxu0 0.0
    %1246 = vmatprep.subr.mxu0 0.0
    %1247 = vmatpush1.msra.mxu0 0.0
    %1248 = vmatprep.subr.mxu0 0.0
    %1249 = vmatpush1.msra.mxu0 0.0
    %1250 = vmatprep.subr.mxu0 0.0
    %1251 = vmatpush1.msra.mxu0 0.0
    %1252 = vmatprep.subr.mxu0 0.0
    %1253 = vmatpush1.msra.mxu0 0.0
    %1254 = vmatprep.subr.mxu0 0.0
    %1255 = vmatpush1.msra.mxu0 0.0
    %1256 = vmatprep.subr.mxu0 0.0
    %1257 = vmatpush1.msra.mxu0 0.0
    %1258 = vmatprep.subr.mxu0 0.0
    %1259 = vmatpush1.msra.mxu0 0.0
    %1260 = vmatprep.subr.mxu0 0.0
    %1261 = vmatpush1.msra.mxu0 0.0
    %1262 = vmatprep.subr.mxu0 0.0
    %1263 = vmatpush1.msra.mxu0 0.0
    %1264 = vmatprep.subr.mxu0 0.0
    %1265 = vmatpush1.msra.mxu0 0.0
    %1266 = vmatprep.subr.mxu0 0.0
    %1267 = vmatpush1.msra.mxu0 0.0
    %1268 = vmatprep.subr.mxu0 0.0
    %1269 = vmatpush1.msra.mxu0 0.0
    %1270 = vmatprep.subr.mxu0 0.0
    %1271 = vmatpush1.msra.mxu0 0.0
    %1272 = vmatprep.subr.mxu0 0.0
    %1273 = vmatpush1.msra.mxu0 0.0
    %1274 = vmatprep.subr.mxu0 0.0
    %1275 = vmatpush1.msra.mxu0 0.0
    %1276 = vmatprep.subr.mxu0 0.0
    %1277 = vmatpush1.msra.mxu0 0.0
    %1278 = vmatprep.subr.mxu0 0.0
    %1279 = vmatpush1.msra.mxu0 0.0
    %1280 = vmatprep.subr.mxu0 0.0
    %1281 = vmatpush1.msra.mxu0 0.0
    %1282 = vmatprep.subr.mxu0 0.0
    %1283 = vmatpush1.msra.mxu0 0.0
    %1284 = vmatprep.subr.mxu0 0.0
    %1285 = vmatpush1.msra.mxu0 0.0
    %1286 = vmatprep.subr.mxu0 0.0
    %1287 = vmatpush1.msra.mxu0 0.0
    %1288 = vmatprep.subr.mxu0 0.0
    %1289 = vmatpush1.msra.mxu0 0.0
    %1290 = vmatprep.subr.mxu0 0.0
    %1291 = vmatpush1.msra.mxu0 0.0
    %1292 = vmatprep.subr.mxu0 0.0
    %1293 = vmatpush1.msra.mxu0 0.0
    %1294 = vmatprep.subr.mxu0 0.0
    %1295 = vmatpush1.msra.mxu0 0.0
    %1296 = vmatprep.subr.mxu0 0.0
    %1297 = vmatpush1.msra.mxu0 0.0
    %1298 = vmatprep.mubr.f32.mxu0 0.0
    %1299 = vmatmul.mubr.f32.gmra.mrb[0].mxu0 %v1232
    %v1300 = vpop.f32.mrb[0].mxu0
    %v1301 = vadd.f32 %v1009, %v1300
    %v1302 = vpop.f32.mrb[0].mxu0
    %1303 = vdwg.mxu0
    %v1305 = vsel %vm792, %v664, 0
    %1307 = vmatprep.subr.mxu0 0.0
    %1308 = vmatpush1.msra.mxu0 %v654
    %1309 = vmatprep.subr.mxu0 0.0
    %1310 = vmatpush1.msra.mxu0 0.0
    %1311 = vmatprep.subr.mxu0 0.0
    %1312 = vmatpush1.msra.mxu0 0.0
    %1313 = vmatprep.subr.mxu0 0.0
    %1314 = vmatpush1.msra.mxu0 0.0
    %1315 = vmatprep.subr.mxu0 0.0
    %1316 = vmatpush1.msra.mxu0 0.0
    %1317 = vmatprep.subr.mxu0 0.0
    %1318 = vmatpush1.msra.mxu0 0.0
    %1319 = vmatprep.subr.mxu0 0.0
    %1320 = vmatpush1.msra.mxu0 0.0
    %1321 = vmatprep.subr.mxu0 0.0
    %1322 = vmatpush1.msra.mxu0 0.0
    %1323 = vmatprep.subr.mxu0 0.0
    %1324 = vmatpush1.msra.mxu0 0.0
    %1325 = vmatprep.subr.mxu0 0.0
    %1326 = vmatpush1.msra.mxu0 0.0
    %1327 = vmatprep.subr.mxu0 0.0
    %1328 = vmatpush1.msra.mxu0 0.0
    %1329 = vmatprep.subr.mxu0 0.0
    %1330 = vmatpush1.msra.mxu0 0.0
    %1331 = vmatprep.subr.mxu0 0.0
    %1332 = vmatpush1.msra.mxu0 0.0
    %1333 = vmatprep.subr.mxu0 0.0
    %1334 = vmatpush1.msra.mxu0 0.0
    %1335 = vmatprep.subr.mxu0 0.0
    %1336 = vmatpush1.msra.mxu0 0.0
    %1337 = vmatprep.subr.mxu0 0.0
    %1338 = vmatpush1.msra.mxu0 0.0
    %1339 = vmatprep.subr.mxu0 0.0
    %1340 = vmatpush1.msra.mxu0 0.0
    %1341 = vmatprep.subr.mxu0 0.0
    %1342 = vmatpush1.msra.mxu0 0.0
    %1343 = vmatprep.subr.mxu0 0.0
    %1344 = vmatpush1.msra.mxu0 0.0
    %1345 = vmatprep.subr.mxu0 0.0
    %1346 = vmatpush1.msra.mxu0 0.0
    %1347 = vmatprep.subr.mxu0 0.0
    %1348 = vmatpush1.msra.mxu0 0.0
    %1349 = vmatprep.subr.mxu0 0.0
    %1350 = vmatpush1.msra.mxu0 0.0
    %1351 = vmatprep.subr.mxu0 0.0
    %1352 = vmatpush1.msra.mxu0 0.0
    %1353 = vmatprep.subr.mxu0 0.0
    %1354 = vmatpush1.msra.mxu0 0.0
    %1355 = vmatprep.subr.mxu0 0.0
    %1356 = vmatpush1.msra.mxu0 0.0
    %1357 = vmatprep.subr.mxu0 0.0
    %1358 = vmatpush1.msra.mxu0 0.0
    %1359 = vmatprep.subr.mxu0 0.0
    %1360 = vmatpush1.msra.mxu0 0.0
    %1361 = vmatprep.subr.mxu0 0.0
    %1362 = vmatpush1.msra.mxu0 0.0
    %1363 = vmatprep.subr.mxu0 0.0
    %1364 = vmatpush1.msra.mxu0 0.0
    %1365 = vmatprep.subr.mxu0 0.0
    %1366 = vmatpush1.msra.mxu0 0.0
    %1367 = vmatprep.subr.mxu0 0.0
    %1368 = vmatpush1.msra.mxu0 0.0
    %1369 = vmatprep.subr.mxu0 0.0
    %1370 = vmatpush1.msra.mxu0 0.0
    %1371 = vmatprep.mubr.f32.mxu0 0.0
    %1372 = vmatmul.mubr.f32.gmra.mrb[0].mxu0 %v1305
    %v1373 = vpop.f32.mrb[0].mxu0
    %v1374 = vadd.f32 %v1082, %v1373
    %v1375 = vpop.f32.mrb[0].mxu0
    %1376 = vdwg.mxu0
    %s1377 = scalar_lea.vmem %s5, 512
    %v1378 = vld [vmem:[%s1377] sm:$0xff]
    %v1379 = vld [vmem:[%s1377 + $0x8] sm:$0xff]
    %v1380 = vld [vmem:[%s1377 + $0x10] sm:$0xff]
    %v1381 = vld [vmem:[%s1377 + $0x18] sm:$0xff]
    %v1382 = vld [vmem:[%s1377 + $0x20] sm:$0xff]
    %v1383 = vld [vmem:[%s1377 + $0x28] sm:$0xff]
    %v1384 = vld [vmem:[%s1377 + $0x30] sm:$0xff]
    %v1385 = vld [vmem:[%s1377 + $0x38] sm:$0xff]
    %v1386 = vld [vmem:[%s1377 + $0x40] sm:$0xff]
    %v1387 = vld [vmem:[%s1377 + $0x48] sm:$0xff]
    %v1388 = vld [vmem:[%s1377 + $0x50] sm:$0xff]
    %v1389 = vld [vmem:[%s1377 + $0x58] sm:$0xff]
    %v1390 = vld [vmem:[%s1377 + $0x60] sm:$0xff]
    %v1391 = vld [vmem:[%s1377 + $0x68] sm:$0xff]
    %v1392 = vld [vmem:[%s1377 + $0x70] sm:$0xff]
    %v1393 = vld [vmem:[%s1377 + $0x78] sm:$0xff]
    %v1394 = vld [vmem:[%s1377 + $0x80] sm:$0xff]
    %v1395 = vld [vmem:[%s1377 + $0x88] sm:$0xff]
    %v1396 = vld [vmem:[%s1377 + $0x90] sm:$0xff]
    %v1397 = vld [vmem:[%s1377 + $0x98] sm:$0xff]
    %v1398 = vld [vmem:[%s1377 + $0xa0] sm:$0xff]
    %v1399 = vld [vmem:[%s1377 + $0xa8] sm:$0xff]
    %v1400 = vld [vmem:[%s1377 + $0xb0] sm:$0xff]
    %v1401 = vld [vmem:[%s1377 + $0xb8] sm:$0xff]
    %v1402 = vld [vmem:[%s1377 + $0xc0] sm:$0xff]
    %v1403 = vld [vmem:[%s1377 + $0xc8] sm:$0xff]
    %v1404 = vld [vmem:[%s1377 + $0xd0] sm:$0xff]
    %v1405 = vld [vmem:[%s1377 + $0xd8] sm:$0xff]
    %v1406 = vld [vmem:[%s1377 + $0xe0] sm:$0xff]
    %v1407 = vld [vmem:[%s1377 + $0xe8] sm:$0xff]
    %v1408 = vld [vmem:[%s1377 + $0xf0] sm:$0xff]
    %v1409 = vld [vmem:[%s1377 + $0xf8] sm:$0xff]
    %1410 = vmatprep.subr.mxu0 0.0
    %1411 = vmatpush1.msra.mxu0 %v1378
    %1412 = vmatprep.subr.mxu0 0.0
    %1413 = vmatpush1.msra.mxu0 %v1379
    %1414 = vmatprep.subr.mxu0 0.0
    %1415 = vmatpush1.msra.mxu0 %v1380
    %1416 = vmatprep.subr.mxu0 0.0
    %1417 = vmatpush1.msra.mxu0 %v1381
    %1418 = vmatprep.subr.mxu0 0.0
    %1419 = vmatpush1.msra.mxu0 %v1382
    %1420 = vmatprep.subr.mxu0 0.0
    %1421 = vmatpush1.msra.mxu0 %v1383
    %1422 = vmatprep.subr.mxu0 0.0
    %1423 = vmatpush1.msra.mxu0 %v1384
    %1424 = vmatprep.subr.mxu0 0.0
    %1425 = vmatpush1.msra.mxu0 %v1385
    %1426 = vmatprep.subr.mxu0 0.0
    %1427 = vmatpush1.msra.mxu0 %v1386
    %1428 = vmatprep.subr.mxu0 0.0
    %1429 = vmatpush1.msra.mxu0 %v1387
    %1430 = vmatprep.subr.mxu0 0.0
    %1431 = vmatpush1.msra.mxu0 %v1388
    %1432 = vmatprep.subr.mxu0 0.0
    %1433 = vmatpush1.msra.mxu0 %v1389
    %1434 = vmatprep.subr.mxu0 0.0
    %1435 = vmatpush1.msra.mxu0 %v1390
    %1436 = vmatprep.subr.mxu0 0.0
    %1437 = vmatpush1.msra.mxu0 %v1391
    %1438 = vmatprep.subr.mxu0 0.0
    %1439 = vmatpush1.msra.mxu0 %v1392
    %1440 = vmatprep.subr.mxu0 0.0
    %1441 = vmatpush1.msra.mxu0 %v1393
    %1442 = vmatprep.subr.mxu0 0.0
    %1443 = vmatpush1.msra.mxu0 %v1394
    %1444 = vmatprep.subr.mxu0 0.0
    %1445 = vmatpush1.msra.mxu0 %v1395
    %1446 = vmatprep.subr.mxu0 0.0
    %1447 = vmatpush1.msra.mxu0 %v1396
    %1448 = vmatprep.subr.mxu0 0.0
    %1449 = vmatpush1.msra.mxu0 %v1397
    %1450 = vmatprep.subr.mxu0 0.0
    %1451 = vmatpush1.msra.mxu0 %v1398
    %1452 = vmatprep.subr.mxu0 0.0
    %1453 = vmatpush1.msra.mxu0 %v1399
    %1454 = vmatprep.subr.mxu0 0.0
    %1455 = vmatpush1.msra.mxu0 %v1400
    %1456 = vmatprep.subr.mxu0 0.0
    %1457 = vmatpush1.msra.mxu0 %v1401
    %1458 = vmatprep.subr.mxu0 0.0
    %1459 = vmatpush1.msra.mxu0 %v1402
    %1460 = vmatprep.subr.mxu0 0.0
    %1461 = vmatpush1.msra.mxu0 %v1403
    %1462 = vmatprep.subr.mxu0 0.0
    %1463 = vmatpush1.msra.mxu0 %v1404
    %1464 = vmatprep.subr.mxu0 0.0
    %1465 = vmatpush1.msra.mxu0 %v1405
    %1466 = vmatprep.subr.mxu0 0.0
    %1467 = vmatpush1.msra.mxu0 %v1406
    %1468 = vmatprep.subr.mxu0 0.0
    %1469 = vmatpush1.msra.mxu0 %v1407
    %1470 = vmatprep.subr.mxu0 0.0
    %1471 = vmatpush1.msra.mxu0 %v1408
    %1472 = vmatprep.subr.mxu0 0.0
    %1473 = vmatpush1.msra.mxu0 %v1409
    %1474 = vmatprep.mubr.f32.mxu0 %v533
    %1475 = vmatmul.mubr.f32.gmra.mrb[0].mxu0 %v532
    %v1476 = vpop.f32.mrb[0].mxu0
    %v1477 = vadd.f32 0.0, %v1476
    %v1478 = vpop.f32.mrb[0].mxu0
    %1479 = vmatprep.mubr.f32.mxu0 %v535
    %1480 = vmatmul.mubr.f32.gmra.mrb[0].mxu0 %v534
    %v1481 = vpop.f32.mrb[0].mxu0
    %v1482 = vadd.f32 0.0, %v1481
    %v1483 = vpop.f32.mrb[0].mxu0
    %1484 = vmatprep.mubr.f32.mxu0 %v537
    %1485 = vmatmul.mubr.f32.gmra.mrb[0].mxu0 %v536
    %v1486 = vpop.f32.mrb[0].mxu0
    %v1487 = vadd.f32 0.0, %v1486
    %v1488 = vpop.f32.mrb[0].mxu0
    %1489 = vmatprep.mubr.f32.mxu0 %v539
    %1490 = vmatmul.mubr.f32.gmra.mrb[0].mxu0 %v538
    %v1491 = vpop.f32.mrb[0].mxu0
    %v1492 = vadd.f32 0.0, %v1491
    %v1493 = vpop.f32.mrb[0].mxu0
    %1494 = vdwg.mxu0
    %s1495 = scalar_lea.vmem [#allocation2], 32
    %v1496 = vld [vmem:[%s1495] sm:$0xf]
    %v1497 = vld [vmem:[%s1495 + $0x4] sm:$0xf]
    %v1498 = vld [vmem:[%s1495 + $0x8] sm:$0xf]
    %v1499 = vld [vmem:[%s1495 + $0xc] sm:$0xf]
    %v1500 = vunpack.c.l.bf16 %v1496
    %v1501 = vunpack.c.l.bf16 %v1497
    %v1502 = vunpack.c.l.bf16 %v1498
    %v1503 = vunpack.c.l.bf16 %v1499
    %v1505 = vsel %vm792, %v1500, 0
    %1507 = vmatprep.subr.mxu0 0.0
    %1508 = vmatpush1.msra.mxu0 %v1477
    %1509 = vmatprep.subr.mxu0 0.0
    %1510 = vmatpush1.msra.mxu0 0.0
    %1511 = vmatprep.subr.mxu0 0.0
    %1512 = vmatpush1.msra.mxu0 0.0
    %1513 = vmatprep.subr.mxu0 0.0
    %1514 = vmatpush1.msra.mxu0 0.0
    %1515 = vmatprep.subr.mxu0 0.0
    %1516 = vmatpush1.msra.mxu0 0.0
    %1517 = vmatprep.subr.mxu0 0.0
    %1518 = vmatpush1.msra.mxu0 0.0
    %1519 = vmatprep.subr.mxu0 0.0
    %1520 = vmatpush1.msra.mxu0 0.0
    %1521 = vmatprep.subr.mxu0 0.0
    %1522 = vmatpush1.msra.mxu0 0.0
    %1523 = vmatprep.subr.mxu0 0.0
    %1524 = vmatpush1.msra.mxu0 0.0
    %1525 = vmatprep.subr.mxu0 0.0
    %1526 = vmatpush1.msra.mxu0 0.0
    %1527 = vmatprep.subr.mxu0 0.0
    %1528 = vmatpush1.msra.mxu0 0.0
    %1529 = vmatprep.subr.mxu0 0.0
    %1530 = vmatpush1.msra.mxu0 0.0
    %1531 = vmatprep.subr.mxu0 0.0
    %1532 = vmatpush1.msra.mxu0 0.0
    %1533 = vmatprep.subr.mxu0 0.0
    %1534 = vmatpush1.msra.mxu0 0.0
    %1535 = vmatprep.subr.mxu0 0.0
    %1536 = vmatpush1.msra.mxu0 0.0
    %1537 = vmatprep.subr.mxu0 0.0
    %1538 = vmatpush1.msra.mxu0 0.0
    %1539 = vmatprep.subr.mxu0 0.0
    %1540 = vmatpush1.msra.mxu0 0.0
    %1541 = vmatprep.subr.mxu0 0.0
    %1542 = vmatpush1.msra.mxu0 0.0
    %1543 = vmatprep.subr.mxu0 0.0
    %1544 = vmatpush1.msra.mxu0 0.0
    %1545 = vmatprep.subr.mxu0 0.0
    %1546 = vmatpush1.msra.mxu0 0.0
    %1547 = vmatprep.subr.mxu0 0.0
    %1548 = vmatpush1.msra.mxu0 0.0
    %1549 = vmatprep.subr.mxu0 0.0
    %1550 = vmatpush1.msra.mxu0 0.0
    %1551 = vmatprep.subr.mxu0 0.0
    %1552 = vmatpush1.msra.mxu0 0.0
    %1553 = vmatprep.subr.mxu0 0.0
    %1554 = vmatpush1.msra.mxu0 0.0
    %1555 = vmatprep.subr.mxu0 0.0
    %1556 = vmatpush1.msra.mxu0 0.0
    %1557 = vmatprep.subr.mxu0 0.0
    %1558 = vmatpush1.msra.mxu0 0.0
    %1559 = vmatprep.subr.mxu0 0.0
    %1560 = vmatpush1.msra.mxu0 0.0
    %1561 = vmatprep.subr.mxu0 0.0
    %1562 = vmatpush1.msra.mxu0 0.0
    %1563 = vmatprep.subr.mxu0 0.0
    %1564 = vmatpush1.msra.mxu0 0.0
    %1565 = vmatprep.subr.mxu0 0.0
    %1566 = vmatpush1.msra.mxu0 0.0
    %1567 = vmatprep.subr.mxu0 0.0
    %1568 = vmatpush1.msra.mxu0 0.0
    %1569 = vmatprep.subr.mxu0 0.0
    %1570 = vmatpush1.msra.mxu0 0.0
    %1571 = vmatprep.mubr.f32.mxu0 0.0
    %1572 = vmatmul.mubr.f32.gmra.mrb[0].mxu0 %v1505
    %v1573 = vpop.f32.mrb[0].mxu0
    %v1574 = vadd.f32 0.0, %v1573
    %v1575 = vpop.f32.mrb[0].mxu0
    %1576 = vdwg.mxu0
    %v1578 = vsel %vm792, %v1501, 0
    %1580 = vmatprep.subr.mxu0 0.0
    %1581 = vmatpush1.msra.mxu0 %v1482
    %1582 = vmatprep.subr.mxu0 0.0
    %1583 = vmatpush1.msra.mxu0 0.0
    %1584 = vmatprep.subr.mxu0 0.0
    %1585 = vmatpush1.msra.mxu0 0.0
    %1586 = vmatprep.subr.mxu0 0.0
    %1587 = vmatpush1.msra.mxu0 0.0
    %1588 = vmatprep.subr.mxu0 0.0
    %1589 = vmatpush1.msra.mxu0 0.0
    %1590 = vmatprep.subr.mxu0 0.0
    %1591 = vmatpush1.msra.mxu0 0.0
    %1592 = vmatprep.subr.mxu0 0.0
    %1593 = vmatpush1.msra.mxu0 0.0
    %1594 = vmatprep.subr.mxu0 0.0
    %1595 = vmatpush1.msra.mxu0 0.0
    %1596 = vmatprep.subr.mxu0 0.0
    %1597 = vmatpush1.msra.mxu0 0.0
    %1598 = vmatprep.subr.mxu0 0.0
    %1599 = vmatpush1.msra.mxu0 0.0
    %1600 = vmatprep.subr.mxu0 0.0
    %1601 = vmatpush1.msra.mxu0 0.0
    %1602 = vmatprep.subr.mxu0 0.0
    %1603 = vmatpush1.msra.mxu0 0.0
    %1604 = vmatprep.subr.mxu0 0.0
    %1605 = vmatpush1.msra.mxu0 0.0
    %1606 = vmatprep.subr.mxu0 0.0
    %1607 = vmatpush1.msra.mxu0 0.0
    %1608 = vmatprep.subr.mxu0 0.0
    %1609 = vmatpush1.msra.mxu0 0.0
    %1610 = vmatprep.subr.mxu0 0.0
    %1611 = vmatpush1.msra.mxu0 0.0
    %1612 = vmatprep.subr.mxu0 0.0
    %1613 = vmatpush1.msra.mxu0 0.0
    %1614 = vmatprep.subr.mxu0 0.0
    %1615 = vmatpush1.msra.mxu0 0.0
    %1616 = vmatprep.subr.mxu0 0.0
    %1617 = vmatpush1.msra.mxu0 0.0
    %1618 = vmatprep.subr.mxu0 0.0
    %1619 = vmatpush1.msra.mxu0 0.0
    %1620 = vmatprep.subr.mxu0 0.0
    %1621 = vmatpush1.msra.mxu0 0.0
    %1622 = vmatprep.subr.mxu0 0.0
    %1623 = vmatpush1.msra.mxu0 0.0
    %1624 = vmatprep.subr.mxu0 0.0
    %1625 = vmatpush1.msra.mxu0 0.0
    %1626 = vmatprep.subr.mxu0 0.0
    %1627 = vmatpush1.msra.mxu0 0.0
    %1628 = vmatprep.subr.mxu0 0.0
    %1629 = vmatpush1.msra.mxu0 0.0
    %1630 = vmatprep.subr.mxu0 0.0
    %1631 = vmatpush1.msra.mxu0 0.0
    %1632 = vmatprep.subr.mxu0 0.0
    %1633 = vmatpush1.msra.mxu0 0.0
    %1634 = vmatprep.subr.mxu0 0.0
    %1635 = vmatpush1.msra.mxu0 0.0
    %1636 = vmatprep.subr.mxu0 0.0
    %1637 = vmatpush1.msra.mxu0 0.0
    %1638 = vmatprep.subr.mxu0 0.0
    %1639 = vmatpush1.msra.mxu0 0.0
    %1640 = vmatprep.subr.mxu0 0.0
    %1641 = vmatpush1.msra.mxu0 0.0
    %1642 = vmatprep.subr.mxu0 0.0
    %1643 = vmatpush1.msra.mxu0 0.0
    %1644 = vmatprep.mubr.f32.mxu0 0.0
    %1645 = vmatmul.mubr.f32.gmra.mrb[0].mxu0 %v1578
    %v1646 = vpop.f32.mrb[0].mxu0
    %v1647 = vadd.f32 0.0, %v1646
    %v1648 = vpop.f32.mrb[0].mxu0
    %1649 = vdwg.mxu0
    %v1651 = vsel %vm792, %v1502, 0
    %1653 = vmatprep.subr.mxu0 0.0
    %1654 = vmatpush1.msra.mxu0 %v1487
    %1655 = vmatprep.subr.mxu0 0.0
    %1656 = vmatpush1.msra.mxu0 0.0
    %1657 = vmatprep.subr.mxu0 0.0
    %1658 = vmatpush1.msra.mxu0 0.0
    %1659 = vmatprep.subr.mxu0 0.0
    %1660 = vmatpush1.msra.mxu0 0.0
    %1661 = vmatprep.subr.mxu0 0.0
    %1662 = vmatpush1.msra.mxu0 0.0
    %1663 = vmatprep.subr.mxu0 0.0
    %1664 = vmatpush1.msra.mxu0 0.0
    %1665 = vmatprep.subr.mxu0 0.0
    %1666 = vmatpush1.msra.mxu0 0.0
    %1667 = vmatprep.subr.mxu0 0.0
    %1668 = vmatpush1.msra.mxu0 0.0
    %1669 = vmatprep.subr.mxu0 0.0
    %1670 = vmatpush1.msra.mxu0 0.0
    %1671 = vmatprep.subr.mxu0 0.0
    %1672 = vmatpush1.msra.mxu0 0.0
    %1673 = vmatprep.subr.mxu0 0.0
    %1674 = vmatpush1.msra.mxu0 0.0
    %1675 = vmatprep.subr.mxu0 0.0
    %1676 = vmatpush1.msra.mxu0 0.0
    %1677 = vmatprep.subr.mxu0 0.0
    %1678 = vmatpush1.msra.mxu0 0.0
    %1679 = vmatprep.subr.mxu0 0.0
    %1680 = vmatpush1.msra.mxu0 0.0
    %1681 = vmatprep.subr.mxu0 0.0
    %1682 = vmatpush1.msra.mxu0 0.0
    %1683 = vmatprep.subr.mxu0 0.0
    %1684 = vmatpush1.msra.mxu0 0.0
    %1685 = vmatprep.subr.mxu0 0.0
    %1686 = vmatpush1.msra.mxu0 0.0
    %1687 = vmatprep.subr.mxu0 0.0
    %1688 = vmatpush1.msra.mxu0 0.0
    %1689 = vmatprep.subr.mxu0 0.0
    %1690 = vmatpush1.msra.mxu0 0.0
    %1691 = vmatprep.subr.mxu0 0.0
    %1692 = vmatpush1.msra.mxu0 0.0
    %1693 = vmatprep.subr.mxu0 0.0
    %1694 = vmatpush1.msra.mxu0 0.0
    %1695 = vmatprep.subr.mxu0 0.0
    %1696 = vmatpush1.msra.mxu0 0.0
    %1697 = vmatprep.subr.mxu0 0.0
    %1698 = vmatpush1.msra.mxu0 0.0
    %1699 = vmatprep.subr.mxu0 0.0
    %1700 = vmatpush1.msra.mxu0 0.0
    %1701 = vmatprep.subr.mxu0 0.0
    %1702 = vmatpush1.msra.mxu0 0.0
    %1703 = vmatprep.subr.mxu0 0.0
    %1704 = vmatpush1.msra.mxu0 0.0
    %1705 = vmatprep.subr.mxu0 0.0
    %1706 = vmatpush1.msra.mxu0 0.0
    %1707 = vmatprep.subr.mxu0 0.0
    %1708 = vmatpush1.msra.mxu0 0.0
    %1709 = vmatprep.subr.mxu0 0.0
    %1710 = vmatpush1.msra.mxu0 0.0
    %1711 = vmatprep.subr.mxu0 0.0
    %1712 = vmatpush1.msra.mxu0 0.0
    %1713 = vmatprep.subr.mxu0 0.0
    %1714 = vmatpush1.msra.mxu0 0.0
    %1715 = vmatprep.subr.mxu0 0.0
    %1716 = vmatpush1.msra.mxu0 0.0
    %1717 = vmatprep.mubr.f32.mxu0 0.0
    %1718 = vmatmul.mubr.f32.gmra.mrb[0].mxu0 %v1651
    %v1719 = vpop.f32.mrb[0].mxu0
    %v1720 = vadd.f32 0.0, %v1719
    %v1721 = vpop.f32.mrb[0].mxu0
    %1722 = vdwg.mxu0
    %v1724 = vsel %vm792, %v1503, 0
    %1726 = vmatprep.subr.mxu0 0.0
    %1727 = vmatpush1.msra.mxu0 %v1492
    %1728 = vmatprep.subr.mxu0 0.0
    %1729 = vmatpush1.msra.mxu0 0.0
    %1730 = vmatprep.subr.mxu0 0.0
    %1731 = vmatpush1.msra.mxu0 0.0
    %1732 = vmatprep.subr.mxu0 0.0
    %1733 = vmatpush1.msra.mxu0 0.0
    %1734 = vmatprep.subr.mxu0 0.0
    %1735 = vmatpush1.msra.mxu0 0.0
    %1736 = vmatprep.subr.mxu0 0.0
    %1737 = vmatpush1.msra.mxu0 0.0
    %1738 = vmatprep.subr.mxu0 0.0
    %1739 = vmatpush1.msra.mxu0 0.0
    %1740 = vmatprep.subr.mxu0 0.0
    %1741 = vmatpush1.msra.mxu0 0.0
    %1742 = vmatprep.subr.mxu0 0.0
    %1743 = vmatpush1.msra.mxu0 0.0
    %1744 = vmatprep.subr.mxu0 0.0
    %1745 = vmatpush1.msra.mxu0 0.0
    %1746 = vmatprep.subr.mxu0 0.0
    %1747 = vmatpush1.msra.mxu0 0.0
    %1748 = vmatprep.subr.mxu0 0.0
    %1749 = vmatpush1.msra.mxu0 0.0
    %1750 = vmatprep.subr.mxu0 0.0
    %1751 = vmatpush1.msra.mxu0 0.0
    %1752 = vmatprep.subr.mxu0 0.0
    %1753 = vmatpush1.msra.mxu0 0.0
    %1754 = vmatprep.subr.mxu0 0.0
    %1755 = vmatpush1.msra.mxu0 0.0
    %1756 = vmatprep.subr.mxu0 0.0
    %1757 = vmatpush1.msra.mxu0 0.0
    %1758 = vmatprep.subr.mxu0 0.0
    %1759 = vmatpush1.msra.mxu0 0.0
    %1760 = vmatprep.subr.mxu0 0.0
    %1761 = vmatpush1.msra.mxu0 0.0
    %1762 = vmatprep.subr.mxu0 0.0
    %1763 = vmatpush1.msra.mxu0 0.0
    %1764 = vmatprep.subr.mxu0 0.0
    %1765 = vmatpush1.msra.mxu0 0.0
    %1766 = vmatprep.subr.mxu0 0.0
    %1767 = vmatpush1.msra.mxu0 0.0
    %1768 = vmatprep.subr.mxu0 0.0
    %1769 = vmatpush1.msra.mxu0 0.0
    %1770 = vmatprep.subr.mxu0 0.0
    %1771 = vmatpush1.msra.mxu0 0.0
    %1772 = vmatprep.subr.mxu0 0.0
    %1773 = vmatpush1.msra.mxu0 0.0
    %1774 = vmatprep.subr.mxu0 0.0
    %1775 = vmatpush1.msra.mxu0 0.0
    %1776 = vmatprep.subr.mxu0 0.0
    %1777 = vmatpush1.msra.mxu0 0.0
    %1778 = vmatprep.subr.mxu0 0.0
    %1779 = vmatpush1.msra.mxu0 0.0
    %1780 = vmatprep.subr.mxu0 0.0
    %1781 = vmatpush1.msra.mxu0 0.0
    %1782 = vmatprep.subr.mxu0 0.0
    %1783 = vmatpush1.msra.mxu0 0.0
    %1784 = vmatprep.subr.mxu0 0.0
    %1785 = vmatpush1.msra.mxu0 0.0
    %1786 = vmatprep.subr.mxu0 0.0
    %1787 = vmatpush1.msra.mxu0 0.0
    %1788 = vmatprep.subr.mxu0 0.0
    %1789 = vmatpush1.msra.mxu0 0.0
    %1790 = vmatprep.mubr.f32.mxu0 0.0
    %1791 = vmatmul.mubr.f32.gmra.mrb[0].mxu0 %v1724
    %v1792 = vpop.f32.mrb[0].mxu0
    %v1793 = vadd.f32 0.0, %v1792
    %v1794 = vpop.f32.mrb[0].mxu0
    %1795 = vdwg.mxu0
    %v1796 = vadd.f32 %v1155, %v1574
    %v1797 = vadd.f32 %v1228, %v1647
    %v1798 = vadd.f32 %v1301, %v1720
    %v1799 = vadd.f32 %v1374, %v1793
    %v1800 = vld [vmem:[#allocation6] sm:$0x1]
    %v1802 = vlaneseq
    %v1803 = vshrl.u32 %v1802, 7
    %v1804 = vsub.s32 0, %v1803
    %v1805 = vrot.slane %v1800, %v1804
    %v1807 = vadd.f32 %v1796, %v1805
    %v1808 = vadd.f32 %v1797, %v1805
    %v1809 = vadd.f32 %v1798, %v1805
    %v1810 = vadd.f32 %v1799, %v1805
    %v1811 = vmul.f32 %v1807, %v351
    %v1812 = vmul.f32 %v1808, %v356
    %v1813 = vmul.f32 %v1809, %v361
    %v1814 = vmul.f32 %v1810, %v366
    %1815 = vadd.xlane.f32.xlu0 %v1811
    %v1816 = vpop.xlane.xlu0 %1815
    %1817 = vadd.xlane.f32.xlu0 %v1812
    %v1818 = vpop.xlane.xlu0 %1817
    %1819 = vadd.xlane.f32.xlu0 %v1813
    %v1820 = vpop.xlane.xlu0 %1819
    %1821 = vadd.xlane.f32.xlu0 %v1814
    %v1822 = vpop.xlane.xlu0 %1821
    %v1823 = vrot.slane %v1816, 4
    %v1824 = vadd.f32 %v1816, %v1823
    %v1825 = vrot.slane %v1824, 2
    %v1826 = vadd.f32 %v1824, %v1825
    %v1827 = vrot.slane %v1826, 1
    %v1828 = vadd.f32 %v1826, %v1827
    %v1829 = vrot.slane %v1818, 4
    %v1830 = vadd.f32 %v1818, %v1829
    %v1831 = vrot.slane %v1830, 2
    %v1832 = vadd.f32 %v1830, %v1831
    %v1833 = vrot.slane %v1832, 1
    %v1834 = vadd.f32 %v1832, %v1833
    %v1835 = vrot.slane %v1820, 4
    %v1836 = vadd.f32 %v1820, %v1835
    %v1837 = vrot.slane %v1836, 2
    %v1838 = vadd.f32 %v1836, %v1837
    %v1839 = vrot.slane %v1838, 1
    %v1840 = vadd.f32 %v1838, %v1839
    %v1841 = vrot.slane %v1822, 4
    %v1842 = vadd.f32 %v1822, %v1841
    %v1843 = vrot.slane %v1842, 2
    %v1844 = vadd.f32 %v1842, %v1843
    %v1845 = vrot.slane %v1844, 1
    %v1846 = vadd.f32 %v1844, %v1845
    %v1847 = vmul.f32 %v1828, 0.0009765625
    %v1848 = vmul.f32 %v1834, 0.0009765625
    %v1849 = vmul.f32 %v1840, 0.0009765625
    %v1850 = vmul.f32 %v1846, 0.0009765625
    %v1851 = vsub.f32 %v1811, %v1847
    %v1852 = vsub.f32 %v1812, %v1848
    %v1853 = vsub.f32 %v1813, %v1849
    %v1854 = vsub.f32 %v1814, %v1850
    %v1855 = vmul.f32 %v1851, %v1851
    %v1856 = vmul.f32 %v1852, %v1852
    %v1857 = vmul.f32 %v1853, %v1853
    %v1858 = vmul.f32 %v1854, %v1854
    %1859 = vadd.xlane.f32.xlu0 %v1855
    %v1860 = vpop.xlane.xlu0 %1859
    %1861 = vadd.xlane.f32.xlu0 %v1856
    %v1862 = vpop.xlane.xlu0 %1861
    %1863 = vadd.xlane.f32.xlu0 %v1857
    %v1864 = vpop.xlane.xlu0 %1863
    %1865 = vadd.xlane.f32.xlu0 %v1858
    %v1866 = vpop.xlane.xlu0 %1865
    %v1867 = vrot.slane %v1860, 4
    %v1868 = vadd.f32 %v1860, %v1867
    %v1869 = vrot.slane %v1868, 2
    %v1870 = vadd.f32 %v1868, %v1869
    %v1871 = vrot.slane %v1870, 1
    %v1872 = vadd.f32 %v1870, %v1871
    %v1873 = vrot.slane %v1862, 4
    %v1874 = vadd.f32 %v1862, %v1873
    %v1875 = vrot.slane %v1874, 2
    %v1876 = vadd.f32 %v1874, %v1875
    %v1877 = vrot.slane %v1876, 1
    %v1878 = vadd.f32 %v1876, %v1877
    %v1879 = vrot.slane %v1864, 4
    %v1880 = vadd.f32 %v1864, %v1879
    %v1881 = vrot.slane %v1880, 2
    %v1882 = vadd.f32 %v1880, %v1881
    %v1883 = vrot.slane %v1882, 1
    %v1884 = vadd.f32 %v1882, %v1883
    %v1885 = vrot.slane %v1866, 4
    %v1886 = vadd.f32 %v1866, %v1885
    %v1887 = vrot.slane %v1886, 2
    %v1888 = vadd.f32 %v1886, %v1887
    %v1889 = vrot.slane %v1888, 1
    %v1890 = vadd.f32 %v1888, %v1889
    %v1891 = vmul.f32 %v1872, 0.0009775171
    %v1892 = vmul.f32 %v1878, 0.0009775171
    %v1893 = vmul.f32 %v1884, 0.0009775171
    %v1894 = vmul.f32 %v1890, 0.0009775171
    %v1895 = vrsqrt.pop %v1891
    %v1896 = vmul.f32 %v1891, %v1895
    %vm1897 = vcmp.eq.f32.partialorder %v1891, inf
    %v1898 = vsel %vm1897, %v1891, %v1896
    %vm1899 = vcmp.eq.f32.partialorder %v1891, 0.0
    %v1900 = vand.u32 %v1891, 2147483648
    %v1901 = vsel %vm1899, %v1900, %v1898
    %v1902 = vrsqrt.pop %v1892
    %v1903 = vmul.f32 %v1892, %v1902
    %vm1904 = vcmp.eq.f32.partialorder %v1892, inf
    %v1905 = vsel %vm1904, %v1892, %v1903
    %vm1906 = vcmp.eq.f32.partialorder %v1892, 0.0
    %v1907 = vand.u32 %v1892, 2147483648
    %v1908 = vsel %vm1906, %v1907, %v1905
    %v1909 = vrsqrt.pop %v1893
    %v1910 = vmul.f32 %v1893, %v1909
    %vm1911 = vcmp.eq.f32.partialorder %v1893, inf
    %v1912 = vsel %vm1911, %v1893, %v1910
    %vm1913 = vcmp.eq.f32.partialorder %v1893, 0.0
    %v1914 = vand.u32 %v1893, 2147483648
    %v1915 = vsel %vm1913, %v1914, %v1912
    %v1916 = vrsqrt.pop %v1894
    %v1917 = vmul.f32 %v1894, %v1916
    %vm1918 = vcmp.eq.f32.partialorder %v1894, inf
    %v1919 = vsel %vm1918, %v1894, %v1917
    %vm1920 = vcmp.eq.f32.partialorder %v1894, 0.0
    %v1921 = vand.u32 %v1894, 2147483648
    %v1922 = vsel %vm1920, %v1921, %v1919
    %v1923 = vadd.f32 %v1901, 1e-05
    %v1924 = vadd.f32 %v1908, 1e-05
    %v1925 = vadd.f32 %v1915, 1e-05
    %v1926 = vadd.f32 %v1922, 1e-05
    %v1927 = vrcp.pop %v1923
    %v1928 = vrcp.pop %v1924
    %v1929 = vrcp.pop %v1925
    %v1930 = vrcp.pop %v1926
    %v1931 = vmul.f32 %v1851, %v1927
    %v1932 = vmul.f32 %v1852, %v1928
    %v1933 = vmul.f32 %v1853, %v1929
    %v1934 = vmul.f32 %v1854, %v1930
    %vm1935 = vcmp.gt.f32.partialorder %v1931, 0.0
    %vm1936 = vcmp.gt.f32.partialorder %v1932, 0.0
    %vm1937 = vcmp.gt.f32.partialorder %v1933, 0.0
    %vm1938 = vcmp.gt.f32.partialorder %v1934, 0.0
    %v1939 = vmul.f32 %v1931, 0.01
    %v1940 = vmul.f32 %v1932, 0.01
    %v1941 = vmul.f32 %v1933, 0.01
    %v1942 = vmul.f32 %v1934, 0.01
    %v1943 = vsel %vm1935, %v1931, %v1939
    %v1944 = vsel %vm1936, %v1932, %v1940
    %v1945 = vsel %vm1937, %v1933, %v1941
    %v1946 = vsel %vm1938, %v1934, %v1942
    %v1947 = vld [vmem:[%s7] sm:$0xff]
    %v1948 = vld [vmem:[%s7 + $0x8] sm:$0xff]
    %v1949 = vld [vmem:[%s7 + $0x10] sm:$0xff]
    %v1950 = vld [vmem:[%s7 + $0x18] sm:$0xff]
    %v1951 = vld [vmem:[%s7 + $0x20] sm:$0xff]
    %v1952 = vld [vmem:[%s7 + $0x28] sm:$0xff]
    %v1953 = vld [vmem:[%s7 + $0x30] sm:$0xff]
    %v1954 = vld [vmem:[%s7 + $0x38] sm:$0xff]
    %v1955 = vld [vmem:[%s7 + $0x40] sm:$0xff]
    %v1956 = vld [vmem:[%s7 + $0x48] sm:$0xff]
    %v1957 = vld [vmem:[%s7 + $0x50] sm:$0xff]
    %v1958 = vld [vmem:[%s7 + $0x58] sm:$0xff]
    %v1959 = vld [vmem:[%s7 + $0x60] sm:$0xff]
    %v1960 = vld [vmem:[%s7 + $0x68] sm:$0xff]
    %v1961 = vld [vmem:[%s7 + $0x70] sm:$0xff]
    %v1962 = vld [vmem:[%s7 + $0x78] sm:$0xff]
    %1963 = vmatprep.subr.mxu0 0.0
    %1964 = vmatpush1.msra.mxu0 %v1947
    %1965 = vmatprep.subr.mxu0 0.0
    %1966 = vmatpush1.msra.mxu0 %v1948
    %1967 = vmatprep.subr.mxu0 0.0
    %1968 = vmatpush1.msra.mxu0 %v1949
    %1969 = vmatprep.subr.mxu0 0.0
    %1970 = vmatpush1.msra.mxu0 %v1950
    %1971 = vmatprep.subr.mxu0 0.0
    %1972 = vmatpush1.msra.mxu0 %v1951
    %1973 = vmatprep.subr.mxu0 0.0
    %1974 = vmatpush1.msra.mxu0 %v1952
    %1975 = vmatprep.subr.mxu0 0.0
    %1976 = vmatpush1.msra.mxu0 %v1953
    %1977 = vmatprep.subr.mxu0 0.0
    %1978 = vmatpush1.msra.mxu0 %v1954
    %1979 = vmatprep.subr.mxu0 0.0
    %1980 = vmatpush1.msra.mxu0 %v1955
    %1981 = vmatprep.subr.mxu0 0.0
    %1982 = vmatpush1.msra.mxu0 %v1956
    %1983 = vmatprep.subr.mxu0 0.0
    %1984 = vmatpush1.msra.mxu0 %v1957
    %1985 = vmatprep.subr.mxu0 0.0
    %1986 = vmatpush1.msra.mxu0 %v1958
    %1987 = vmatprep.subr.mxu0 0.0
    %1988 = vmatpush1.msra.mxu0 %v1959
    %1989 = vmatprep.subr.mxu0 0.0
    %1990 = vmatpush1.msra.mxu0 %v1960
    %1991 = vmatprep.subr.mxu0 0.0
    %1992 = vmatpush1.msra.mxu0 %v1961
    %1993 = vmatprep.subr.mxu0 0.0
    %1994 = vmatpush1.msra.mxu0 %v1962
    %1995 = vmatprep.subr.mxu0 0.0
    %1996 = vmatpush1.msra.mxu0 0.0
    %1997 = vmatprep.subr.mxu0 0.0
    %1998 = vmatpush1.msra.mxu0 0.0
    %1999 = vmatprep.subr.mxu0 0.0
    %2000 = vmatpush1.msra.mxu0 0.0
    %2001 = vmatprep.subr.mxu0 0.0
    %2002 = vmatpush1.msra.mxu0 0.0
    %2003 = vmatprep.subr.mxu0 0.0
    %2004 = vmatpush1.msra.mxu0 0.0
    %2005 = vmatprep.subr.mxu0 0.0
    %2006 = vmatpush1.msra.mxu0 0.0
    %2007 = vmatprep.subr.mxu0 0.0
    %2008 = vmatpush1.msra.mxu0 0.0
    %2009 = vmatprep.subr.mxu0 0.0
    %2010 = vmatpush1.msra.mxu0 0.0
    %2011 = vmatprep.subr.mxu0 0.0
    %2012 = vmatpush1.msra.mxu0 0.0
    %2013 = vmatprep.subr.mxu0 0.0
    %2014 = vmatpush1.msra.mxu0 0.0
    %2015 = vmatprep.subr.mxu0 0.0
    %2016 = vmatpush1.msra.mxu0 0.0
    %2017 = vmatprep.subr.mxu0 0.0
    %2018 = vmatpush1.msra.mxu0 0.0
    %2019 = vmatprep.subr.mxu0 0.0
    %2020 = vmatpush1.msra.mxu0 0.0
    %2021 = vmatprep.subr.mxu0 0.0
    %2022 = vmatpush1.msra.mxu0 0.0
    %2023 = vmatprep.subr.mxu0 0.0
    %2024 = vmatpush1.msra.mxu0 0.0
    %2025 = vmatprep.subr.mxu0 0.0
    %2026 = vmatpush1.msra.mxu0 0.0
    %2027 = vmatprep.mubr.f32.mxu0 0.0
    %2028 = vmatmul.mubr.f32.gmra.mrb[0].mxu0 %v1943
    %v2029 = vpop.f32.mrb[0].mxu0
    %v2030 = vadd.f32 0.0, %v2029
    %v2031 = vpop.f32.mrb[0].mxu0
    %2032 = vmatprep.mubr.f32.mxu0 0.0
    %2033 = vmatmul.mubr.f32.gmra.mrb[0].mxu0 %v1944
    %v2034 = vpop.f32.mrb[0].mxu0
    %v2035 = vadd.f32 0.0, %v2034
    %v2036 = vpop.f32.mrb[0].mxu0
    %2037 = vmatprep.mubr.f32.mxu0 0.0
    %2038 = vmatmul.mubr.f32.gmra.mrb[0].mxu0 %v1945
    %v2039 = vpop.f32.mrb[0].mxu0
    %v2040 = vadd.f32 0.0, %v2039
    %v2041 = vpop.f32.mrb[0].mxu0
    %2042 = vmatprep.mubr.f32.mxu0 0.0
    %2043 = vmatmul.mubr.f32.gmra.mrb[0].mxu0 %v1946
    %v2044 = vpop.f32.mrb[0].mxu0
    %v2045 = vadd.f32 0.0, %v2044
    %v2046 = vpop.f32.mrb[0].mxu0
    %2047 = vdwg.mxu0
    %v2048 = vld [vmem:[#allocation2] sm:$0xf]
    %v2049 = vld [vmem:[#allocation2 + $0x4] sm:$0xf]
    %v2050 = vld [vmem:[#allocation2 + $0x8] sm:$0xf]
    %v2051 = vld [vmem:[#allocation2 + $0xc] sm:$0xf]
    %v2052 = vunpack.c.l.bf16 %v2048
    %v2053 = vunpack.c.l.bf16 %v2049
    %v2054 = vunpack.c.l.bf16 %v2050
    %v2055 = vunpack.c.l.bf16 %v2051
    %s2056 = scalar_lea.vmem %s7, 128
    %v2057 = vld [vmem:[%s2056] sm:$0xff]
    %v2058 = vld [vmem:[%s2056 + $0x8] sm:$0xff]
    %v2059 = vld [vmem:[%s2056 + $0x10] sm:$0xff]
    %v2060 = vld [vmem:[%s2056 + $0x18] sm:$0xff]
    %v2061 = vld [vmem:[%s2056 + $0x20] sm:$0xff]
    %v2062 = vld [vmem:[%s2056 + $0x28] sm:$0xff]
    %v2063 = vld [vmem:[%s2056 + $0x30] sm:$0xff]
    %v2064 = vld [vmem:[%s2056 + $0x38] sm:$0xff]
    %v2065 = vld [vmem:[%s2056 + $0x40] sm:$0xff]
    %v2066 = vld [vmem:[%s2056 + $0x48] sm:$0xff]
    %v2067 = vld [vmem:[%s2056 + $0x50] sm:$0xff]
    %v2068 = vld [vmem:[%s2056 + $0x58] sm:$0xff]
    %v2069 = vld [vmem:[%s2056 + $0x60] sm:$0xff]
    %v2070 = vld [vmem:[%s2056 + $0x68] sm:$0xff]
    %v2071 = vld [vmem:[%s2056 + $0x70] sm:$0xff]
    %v2072 = vld [vmem:[%s2056 + $0x78] sm:$0xff]
    %2073 = vmatprep.subr.mxu0 0.0
    %2074 = vmatpush1.msra.mxu0 %v2057
    %2075 = vmatprep.subr.mxu0 0.0
    %2076 = vmatpush1.msra.mxu0 %v2058
    %2077 = vmatprep.subr.mxu0 0.0
    %2078 = vmatpush1.msra.mxu0 %v2059
    %2079 = vmatprep.subr.mxu0 0.0
    %2080 = vmatpush1.msra.mxu0 %v2060
    %2081 = vmatprep.subr.mxu0 0.0
    %2082 = vmatpush1.msra.mxu0 %v2061
    %2083 = vmatprep.subr.mxu0 0.0
    %2084 = vmatpush1.msra.mxu0 %v2062
    %2085 = vmatprep.subr.mxu0 0.0
    %2086 = vmatpush1.msra.mxu0 %v2063
    %2087 = vmatprep.subr.mxu0 0.0
    %2088 = vmatpush1.msra.mxu0 %v2064
    %2089 = vmatprep.subr.mxu0 0.0
    %2090 = vmatpush1.msra.mxu0 %v2065
    %2091 = vmatprep.subr.mxu0 0.0
    %2092 = vmatpush1.msra.mxu0 %v2066
    %2093 = vmatprep.subr.mxu0 0.0
    %2094 = vmatpush1.msra.mxu0 %v2067
    %2095 = vmatprep.subr.mxu0 0.0
    %2096 = vmatpush1.msra.mxu0 %v2068
    %2097 = vmatprep.subr.mxu0 0.0
    %2098 = vmatpush1.msra.mxu0 %v2069
    %2099 = vmatprep.subr.mxu0 0.0
    %2100 = vmatpush1.msra.mxu0 %v2070
    %2101 = vmatprep.subr.mxu0 0.0
    %2102 = vmatpush1.msra.mxu0 %v2071
    %2103 = vmatprep.subr.mxu0 0.0
    %2104 = vmatpush1.msra.mxu0 %v2072
    %2105 = vmatprep.subr.mxu0 0.0
    %2106 = vmatpush1.msra.mxu0 0.0
    %2107 = vmatprep.subr.mxu0 0.0
    %2108 = vmatpush1.msra.mxu0 0.0
    %2109 = vmatprep.subr.mxu0 0.0
    %2110 = vmatpush1.msra.mxu0 0.0
    %2111 = vmatprep.subr.mxu0 0.0
    %2112 = vmatpush1.msra.mxu0 0.0
    %2113 = vmatprep.subr.mxu0 0.0
    %2114 = vmatpush1.msra.mxu0 0.0
    %2115 = vmatprep.subr.mxu0 0.0
    %2116 = vmatpush1.msra.mxu0 0.0
    %2117 = vmatprep.subr.mxu0 0.0
    %2118 = vmatpush1.msra.mxu0 0.0
    %2119 = vmatprep.subr.mxu0 0.0
    %2120 = vmatpush1.msra.mxu0 0.0
    %2121 = vmatprep.subr.mxu0 0.0
    %2122 = vmatpush1.msra.mxu0 0.0
    %2123 = vmatprep.subr.mxu0 0.0
    %2124 = vmatpush1.msra.mxu0 0.0
    %2125 = vmatprep.subr.mxu0 0.0
    %2126 = vmatpush1.msra.mxu0 0.0
    %2127 = vmatprep.subr.mxu0 0.0
    %2128 = vmatpush1.msra.mxu0 0.0
    %2129 = vmatprep.subr.mxu0 0.0
    %2130 = vmatpush1.msra.mxu0 0.0
    %2131 = vmatprep.subr.mxu0 0.0
    %2132 = vmatpush1.msra.mxu0 0.0
    %2133 = vmatprep.subr.mxu0 0.0
    %2134 = vmatpush1.msra.mxu0 0.0
    %2135 = vmatprep.subr.mxu0 0.0
    %2136 = vmatpush1.msra.mxu0 0.0
    %2137 = vmatprep.mubr.f32.mxu0 0.0
    %2138 = vmatmul.mubr.f32.gmra.mrb[0].mxu0 %v1943
    %v2139 = vpop.f32.mrb[0].mxu0
    %v2140 = vadd.f32 0.0, %v2139
    %v2141 = vpop.f32.mrb[0].mxu0
    %2142 = vmatprep.mubr.f32.mxu0 0.0
    %2143 = vmatmul.mubr.f32.gmra.mrb[0].mxu0 %v1944
    %v2144 = vpop.f32.mrb[0].mxu0
    %v2145 = vadd.f32 0.0, %v2144
    %v2146 = vpop.f32.mrb[0].mxu0
    %2147 = vmatprep.mubr.f32.mxu0 0.0
    %2148 = vmatmul.mubr.f32.gmra.mrb[0].mxu0 %v1945
    %v2149 = vpop.f32.mrb[0].mxu0
    %v2150 = vadd.f32 0.0, %v2149
    %v2151 = vpop.f32.mrb[0].mxu0
    %2152 = vmatprep.mubr.f32.mxu0 0.0
    %2153 = vmatmul.mubr.f32.gmra.mrb[0].mxu0 %v1946
    %v2154 = vpop.f32.mrb[0].mxu0
    %v2155 = vadd.f32 0.0, %v2154
    %v2156 = vpop.f32.mrb[0].mxu0
    %2157 = vdwg.mxu0
    %v2158 = vld [vmem:[%s783] sm:$0xf]
    %v2159 = vld [vmem:[%s783 + $0x4] sm:$0xf]
    %v2160 = vld [vmem:[%s783 + $0x8] sm:$0xf]
    %v2161 = vld [vmem:[%s783 + $0xc] sm:$0xf]
    %v2162 = vunpack.c.l.bf16 %v2158
    %v2163 = vunpack.c.l.bf16 %v2159
    %v2164 = vunpack.c.l.bf16 %v2160
    %v2165 = vunpack.c.l.bf16 %v2161
    %v2167 = vsel %vm792, %v2162, 0
    %2169 = vmatprep.subr.mxu0 0.0
    %2170 = vmatpush1.msra.mxu0 %v2140
    %2171 = vmatprep.subr.mxu0 0.0
    %2172 = vmatpush1.msra.mxu0 0.0
    %2173 = vmatprep.subr.mxu0 0.0
    %2174 = vmatpush1.msra.mxu0 0.0
    %2175 = vmatprep.subr.mxu0 0.0
    %2176 = vmatpush1.msra.mxu0 0.0
    %2177 = vmatprep.subr.mxu0 0.0
    %2178 = vmatpush1.msra.mxu0 0.0
    %2179 = vmatprep.subr.mxu0 0.0
    %2180 = vmatpush1.msra.mxu0 0.0
    %2181 = vmatprep.subr.mxu0 0.0
    %2182 = vmatpush1.msra.mxu0 0.0
    %2183 = vmatprep.subr.mxu0 0.0
    %2184 = vmatpush1.msra.mxu0 0.0
    %2185 = vmatprep.subr.mxu0 0.0
    %2186 = vmatpush1.msra.mxu0 0.0
    %2187 = vmatprep.subr.mxu0 0.0
    %2188 = vmatpush1.msra.mxu0 0.0
    %2189 = vmatprep.subr.mxu0 0.0
    %2190 = vmatpush1.msra.mxu0 0.0
    %2191 = vmatprep.subr.mxu0 0.0
    %2192 = vmatpush1.msra.mxu0 0.0
    %2193 = vmatprep.subr.mxu0 0.0
    %2194 = vmatpush1.msra.mxu0 0.0
    %2195 = vmatprep.subr.mxu0 0.0
    %2196 = vmatpush1.msra.mxu0 0.0
    %2197 = vmatprep.subr.mxu0 0.0
    %2198 = vmatpush1.msra.mxu0 0.0
    %2199 = vmatprep.subr.mxu0 0.0
    %2200 = vmatpush1.msra.mxu0 0.0
    %2201 = vmatprep.subr.mxu0 0.0
    %2202 = vmatpush1.msra.mxu0 0.0
    %2203 = vmatprep.subr.mxu0 0.0
    %2204 = vmatpush1.msra.mxu0 0.0
    %2205 = vmatprep.subr.mxu0 0.0
    %2206 = vmatpush1.msra.mxu0 0.0
    %2207 = vmatprep.subr.mxu0 0.0
    %2208 = vmatpush1.msra.mxu0 0.0
    %2209 = vmatprep.subr.mxu0 0.0
    %2210 = vmatpush1.msra.mxu0 0.0
    %2211 = vmatprep.subr.mxu0 0.0
    %2212 = vmatpush1.msra.mxu0 0.0
    %2213 = vmatprep.subr.mxu0 0.0
    %2214 = vmatpush1.msra.mxu0 0.0
    %2215 = vmatprep.subr.mxu0 0.0
    %2216 = vmatpush1.msra.mxu0 0.0
    %2217 = vmatprep.subr.mxu0 0.0
    %2218 = vmatpush1.msra.mxu0 0.0
    %2219 = vmatprep.subr.mxu0 0.0
    %2220 = vmatpush1.msra.mxu0 0.0
    %2221 = vmatprep.subr.mxu0 0.0
    %2222 = vmatpush1.msra.mxu0 0.0
    %2223 = vmatprep.subr.mxu0 0.0
    %2224 = vmatpush1.msra.mxu0 0.0
    %2225 = vmatprep.subr.mxu0 0.0
    %2226 = vmatpush1.msra.mxu0 0.0
    %2227 = vmatprep.subr.mxu0 0.0
    %2228 = vmatpush1.msra.mxu0 0.0
    %2229 = vmatprep.subr.mxu0 0.0
    %2230 = vmatpush1.msra.mxu0 0.0
    %2231 = vmatprep.subr.mxu0 0.0
    %2232 = vmatpush1.msra.mxu0 0.0
    %2233 = vmatprep.mubr.f32.mxu0 0.0
    %2234 = vmatmul.mubr.f32.gmra.mrb[0].mxu0 %v2167
    %v2235 = vpop.f32.mrb[0].mxu0
    %v2236 = vadd.f32 0.0, %v2235
    %v2237 = vpop.f32.mrb[0].mxu0
    %2238 = vdwg.mxu0
    %v2240 = vsel %vm792, %v2163, 0
    %2242 = vmatprep.subr.mxu0 0.0
    %2243 = vmatpush1.msra.mxu0 %v2145
    %2244 = vmatprep.subr.mxu0 0.0
    %2245 = vmatpush1.msra.mxu0 0.0
    %2246 = vmatprep.subr.mxu0 0.0
    %2247 = vmatpush1.msra.mxu0 0.0
    %2248 = vmatprep.subr.mxu0 0.0
    %2249 = vmatpush1.msra.mxu0 0.0
    %2250 = vmatprep.subr.mxu0 0.0
    %2251 = vmatpush1.msra.mxu0 0.0
    %2252 = vmatprep.subr.mxu0 0.0
    %2253 = vmatpush1.msra.mxu0 0.0
    %2254 = vmatprep.subr.mxu0 0.0
    %2255 = vmatpush1.msra.mxu0 0.0
    %2256 = vmatprep.subr.mxu0 0.0
    %2257 = vmatpush1.msra.mxu0 0.0
    %2258 = vmatprep.subr.mxu0 0.0
    %2259 = vmatpush1.msra.mxu0 0.0
    %2260 = vmatprep.subr.mxu0 0.0
    %2261 = vmatpush1.msra.mxu0 0.0
    %2262 = vmatprep.subr.mxu0 0.0
    %2263 = vmatpush1.msra.mxu0 0.0
    %2264 = vmatprep.subr.mxu0 0.0
    %2265 = vmatpush1.msra.mxu0 0.0
    %2266 = vmatprep.subr.mxu0 0.0
    %2267 = vmatpush1.msra.mxu0 0.0
    %2268 = vmatprep.subr.mxu0 0.0
    %2269 = vmatpush1.msra.mxu0 0.0
    %2270 = vmatprep.subr.mxu0 0.0
    %2271 = vmatpush1.msra.mxu0 0.0
    %2272 = vmatprep.subr.mxu0 0.0
    %2273 = vmatpush1.msra.mxu0 0.0
    %2274 = vmatprep.subr.mxu0 0.0
    %2275 = vmatpush1.msra.mxu0 0.0
    %2276 = vmatprep.subr.mxu0 0.0
    %2277 = vmatpush1.msra.mxu0 0.0
    %2278 = vmatprep.subr.mxu0 0.0
    %2279 = vmatpush1.msra.mxu0 0.0
    %2280 = vmatprep.subr.mxu0 0.0
    %2281 = vmatpush1.msra.mxu0 0.0
    %2282 = vmatprep.subr.mxu0 0.0
    %2283 = vmatpush1.msra.mxu0 0.0
    %2284 = vmatprep.subr.mxu0 0.0
    %2285 = vmatpush1.msra.mxu0 0.0
    %2286 = vmatprep.subr.mxu0 0.0
    %2287 = vmatpush1.msra.mxu0 0.0
    %2288 = vmatprep.subr.mxu0 0.0
    %2289 = vmatpush1.msra.mxu0 0.0
    %2290 = vmatprep.subr.mxu0 0.0
    %2291 = vmatpush1.msra.mxu0 0.0
    %2292 = vmatprep.subr.mxu0 0.0
    %2293 = vmatpush1.msra.mxu0 0.0
    %2294 = vmatprep.subr.mxu0 0.0
    %2295 = vmatpush1.msra.mxu0 0.0
    %2296 = vmatprep.subr.mxu0 0.0
    %2297 = vmatpush1.msra.mxu0 0.0
    %2298 = vmatprep.subr.mxu0 0.0
    %2299 = vmatpush1.msra.mxu0 0.0
    %2300 = vmatprep.subr.mxu0 0.0
    %2301 = vmatpush1.msra.mxu0 0.0
    %2302 = vmatprep.subr.mxu0 0.0
    %2303 = vmatpush1.msra.mxu0 0.0
    %2304 = vmatprep.subr.mxu0 0.0
    %2305 = vmatpush1.msra.mxu0 0.0
    %2306 = vmatprep.mubr.f32.mxu0 0.0
    %2307 = vmatmul.mubr.f32.gmra.mrb[0].mxu0 %v2240
    %v2308 = vpop.f32.mrb[0].mxu0
    %v2309 = vadd.f32 0.0, %v2308
    %v2310 = vpop.f32.mrb[0].mxu0
    %2311 = vdwg.mxu0
    %v2313 = vsel %vm792, %v2164, 0
    %2315 = vmatprep.subr.mxu0 0.0
    %2316 = vmatpush1.msra.mxu0 %v2150
    %2317 = vmatprep.subr.mxu0 0.0
    %2318 = vmatpush1.msra.mxu0 0.0
    %2319 = vmatprep.subr.mxu0 0.0
    %2320 = vmatpush1.msra.mxu0 0.0
    %2321 = vmatprep.subr.mxu0 0.0
    %2322 = vmatpush1.msra.mxu0 0.0
    %2323 = vmatprep.subr.mxu0 0.0
    %2324 = vmatpush1.msra.mxu0 0.0
    %2325 = vmatprep.subr.mxu0 0.0
    %2326 = vmatpush1.msra.mxu0 0.0
    %2327 = vmatprep.subr.mxu0 0.0
    %2328 = vmatpush1.msra.mxu0 0.0
    %2329 = vmatprep.subr.mxu0 0.0
    %2330 = vmatpush1.msra.mxu0 0.0
    %2331 = vmatprep.subr.mxu0 0.0
    %2332 = vmatpush1.msra.mxu0 0.0
    %2333 = vmatprep.subr.mxu0 0.0
    %2334 = vmatpush1.msra.mxu0 0.0
    %2335 = vmatprep.subr.mxu0 0.0
    %2336 = vmatpush1.msra.mxu0 0.0
    %2337 = vmatprep.subr.mxu0 0.0
    %2338 = vmatpush1.msra.mxu0 0.0
    %2339 = vmatprep.subr.mxu0 0.0
    %2340 = vmatpush1.msra.mxu0 0.0
    %2341 = vmatprep.subr.mxu0 0.0
    %2342 = vmatpush1.msra.mxu0 0.0
    %2343 = vmatprep.subr.mxu0 0.0
    %2344 = vmatpush1.msra.mxu0 0.0
    %2345 = vmatprep.subr.mxu0 0.0
    %2346 = vmatpush1.msra.mxu0 0.0
    %2347 = vmatprep.subr.mxu0 0.0
    %2348 = vmatpush1.msra.mxu0 0.0
    %2349 = vmatprep.subr.mxu0 0.0
    %2350 = vmatpush1.msra.mxu0 0.0
    %2351 = vmatprep.subr.mxu0 0.0
    %2352 = vmatpush1.msra.mxu0 0.0
    %2353 = vmatprep.subr.mxu0 0.0
    %2354 = vmatpush1.msra.mxu0 0.0
    %2355 = vmatprep.subr.mxu0 0.0
    %2356 = vmatpush1.msra.mxu0 0.0
    %2357 = vmatprep.subr.mxu0 0.0
    %2358 = vmatpush1.msra.mxu0 0.0
    %2359 = vmatprep.subr.mxu0 0.0
    %2360 = vmatpush1.msra.mxu0 0.0
    %2361 = vmatprep.subr.mxu0 0.0
    %2362 = vmatpush1.msra.mxu0 0.0
    %2363 = vmatprep.subr.mxu0 0.0
    %2364 = vmatpush1.msra.mxu0 0.0
    %2365 = vmatprep.subr.mxu0 0.0
    %2366 = vmatpush1.msra.mxu0 0.0
    %2367 = vmatprep.subr.mxu0 0.0
    %2368 = vmatpush1.msra.mxu0 0.0
    %2369 = vmatprep.subr.mxu0 0.0
    %2370 = vmatpush1.msra.mxu0 0.0
    %2371 = vmatprep.subr.mxu0 0.0
    %2372 = vmatpush1.msra.mxu0 0.0
    %2373 = vmatprep.subr.mxu0 0.0
    %2374 = vmatpush1.msra.mxu0 0.0
    %2375 = vmatprep.subr.mxu0 0.0
    %2376 = vmatpush1.msra.mxu0 0.0
    %2377 = vmatprep.subr.mxu0 0.0
    %2378 = vmatpush1.msra.mxu0 0.0
    %2379 = vmatprep.mubr.f32.mxu0 0.0
    %2380 = vmatmul.mubr.f32.gmra.mrb[0].mxu0 %v2313
    %v2381 = vpop.f32.mrb[0].mxu0
    %v2382 = vadd.f32 0.0, %v2381
    %v2383 = vpop.f32.mrb[0].mxu0
    %2384 = vdwg.mxu0
    %v2386 = vsel %vm792, %v2165, 0
    %2388 = vmatprep.subr.mxu0 0.0
    %2389 = vmatpush1.msra.mxu0 %v2155
    %2390 = vmatprep.subr.mxu0 0.0
    %2391 = vmatpush1.msra.mxu0 0.0
    %2392 = vmatprep.subr.mxu0 0.0
    %2393 = vmatpush1.msra.mxu0 0.0
    %2394 = vmatprep.subr.mxu0 0.0
    %2395 = vmatpush1.msra.mxu0 0.0
    %2396 = vmatprep.subr.mxu0 0.0
    %2397 = vmatpush1.msra.mxu0 0.0
    %2398 = vmatprep.subr.mxu0 0.0
    %2399 = vmatpush1.msra.mxu0 0.0
    %2400 = vmatprep.subr.mxu0 0.0
    %2401 = vmatpush1.msra.mxu0 0.0
    %2402 = vmatprep.subr.mxu0 0.0
    %2403 = vmatpush1.msra.mxu0 0.0
    %2404 = vmatprep.subr.mxu0 0.0
    %2405 = vmatpush1.msra.mxu0 0.0
    %2406 = vmatprep.subr.mxu0 0.0
    %2407 = vmatpush1.msra.mxu0 0.0
    %2408 = vmatprep.subr.mxu0 0.0
    %2409 = vmatpush1.msra.mxu0 0.0
    %2410 = vmatprep.subr.mxu0 0.0
    %2411 = vmatpush1.msra.mxu0 0.0
    %2412 = vmatprep.subr.mxu0 0.0
    %2413 = vmatpush1.msra.mxu0 0.0
    %2414 = vmatprep.subr.mxu0 0.0
    %2415 = vmatpush1.msra.mxu0 0.0
    %2416 = vmatprep.subr.mxu0 0.0
    %2417 = vmatpush1.msra.mxu0 0.0
    %2418 = vmatprep.subr.mxu0 0.0
    %2419 = vmatpush1.msra.mxu0 0.0
    %2420 = vmatprep.subr.mxu0 0.0
    %2421 = vmatpush1.msra.mxu0 0.0
    %2422 = vmatprep.subr.mxu0 0.0
    %2423 = vmatpush1.msra.mxu0 0.0
    %2424 = vmatprep.subr.mxu0 0.0
    %2425 = vmatpush1.msra.mxu0 0.0
    %2426 = vmatprep.subr.mxu0 0.0
    %2427 = vmatpush1.msra.mxu0 0.0
    %2428 = vmatprep.subr.mxu0 0.0
    %2429 = vmatpush1.msra.mxu0 0.0
    %2430 = vmatprep.subr.mxu0 0.0
    %2431 = vmatpush1.msra.mxu0 0.0
    %2432 = vmatprep.subr.mxu0 0.0
    %2433 = vmatpush1.msra.mxu0 0.0
    %2434 = vmatprep.subr.mxu0 0.0
    %2435 = vmatpush1.msra.mxu0 0.0
    %2436 = vmatprep.subr.mxu0 0.0
    %2437 = vmatpush1.msra.mxu0 0.0
    %2438 = vmatprep.subr.mxu0 0.0
    %2439 = vmatpush1.msra.mxu0 0.0
    %2440 = vmatprep.subr.mxu0 0.0
    %2441 = vmatpush1.msra.mxu0 0.0
    %2442 = vmatprep.subr.mxu0 0.0
    %2443 = vmatpush1.msra.mxu0 0.0
    %2444 = vmatprep.subr.mxu0 0.0
    %2445 = vmatpush1.msra.mxu0 0.0
    %2446 = vmatprep.subr.mxu0 0.0
    %2447 = vmatpush1.msra.mxu0 0.0
    %2448 = vmatprep.subr.mxu0 0.0
    %2449 = vmatpush1.msra.mxu0 0.0
    %2450 = vmatprep.subr.mxu0 0.0
    %2451 = vmatpush1.msra.mxu0 0.0
    %2452 = vmatprep.mubr.f32.mxu0 0.0
    %2453 = vmatmul.mubr.f32.gmra.mrb[0].mxu0 %v2386
    %v2454 = vpop.f32.mrb[0].mxu0
    %v2455 = vadd.f32 0.0, %v2454
    %v2456 = vpop.f32.mrb[0].mxu0
    %2457 = vdwg.mxu0
    %v2459 = vsel %vm792, %v2052, 0
    %2461 = vmatprep.subr.mxu0 0.0
    %2462 = vmatpush1.msra.mxu0 %v2030
    %2463 = vmatprep.subr.mxu0 0.0
    %2464 = vmatpush1.msra.mxu0 0.0
    %2465 = vmatprep.subr.mxu0 0.0
    %2466 = vmatpush1.msra.mxu0 0.0
    %2467 = vmatprep.subr.mxu0 0.0
    %2468 = vmatpush1.msra.mxu0 0.0
    %2469 = vmatprep.subr.mxu0 0.0
    %2470 = vmatpush1.msra.mxu0 0.0
    %2471 = vmatprep.subr.mxu0 0.0
    %2472 = vmatpush1.msra.mxu0 0.0
    %2473 = vmatprep.subr.mxu0 0.0
    %2474 = vmatpush1.msra.mxu0 0.0
    %2475 = vmatprep.subr.mxu0 0.0
    %2476 = vmatpush1.msra.mxu0 0.0
    %2477 = vmatprep.subr.mxu0 0.0
    %2478 = vmatpush1.msra.mxu0 0.0
    %2479 = vmatprep.subr.mxu0 0.0
    %2480 = vmatpush1.msra.mxu0 0.0
    %2481 = vmatprep.subr.mxu0 0.0
    %2482 = vmatpush1.msra.mxu0 0.0
    %2483 = vmatprep.subr.mxu0 0.0
    %2484 = vmatpush1.msra.mxu0 0.0
    %2485 = vmatprep.subr.mxu0 0.0
    %2486 = vmatpush1.msra.mxu0 0.0
    %2487 = vmatprep.subr.mxu0 0.0
    %2488 = vmatpush1.msra.mxu0 0.0
    %2489 = vmatprep.subr.mxu0 0.0
    %2490 = vmatpush1.msra.mxu0 0.0
    %2491 = vmatprep.subr.mxu0 0.0
    %2492 = vmatpush1.msra.mxu0 0.0
    %2493 = vmatprep.subr.mxu0 0.0
    %2494 = vmatpush1.msra.mxu0 0.0
    %2495 = vmatprep.subr.mxu0 0.0
    %2496 = vmatpush1.msra.mxu0 0.0
    %2497 = vmatprep.subr.mxu0 0.0
    %2498 = vmatpush1.msra.mxu0 0.0
    %2499 = vmatprep.subr.mxu0 0.0
    %2500 = vmatpush1.msra.mxu0 0.0
    %2501 = vmatprep.subr.mxu0 0.0
    %2502 = vmatpush1.msra.mxu0 0.0
    %2503 = vmatprep.subr.mxu0 0.0
    %2504 = vmatpush1.msra.mxu0 0.0
    %2505 = vmatprep.subr.mxu0 0.0
    %2506 = vmatpush1.msra.mxu0 0.0
    %2507 = vmatprep.subr.mxu0 0.0
    %2508 = vmatpush1.msra.mxu0 0.0
    %2509 = vmatprep.subr.mxu0 0.0
    %2510 = vmatpush1.msra.mxu0 0.0
    %2511 = vmatprep.subr.mxu0 0.0
    %2512 = vmatpush1.msra.mxu0 0.0
    %2513 = vmatprep.subr.mxu0 0.0
    %2514 = vmatpush1.msra.mxu0 0.0
    %2515 = vmatprep.subr.mxu0 0.0
    %2516 = vmatpush1.msra.mxu0 0.0
    %2517 = vmatprep.subr.mxu0 0.0
    %2518 = vmatpush1.msra.mxu0 0.0
    %2519 = vmatprep.subr.mxu0 0.0
    %2520 = vmatpush1.msra.mxu0 0.0
    %2521 = vmatprep.subr.mxu0 0.0
    %2522 = vmatpush1.msra.mxu0 0.0
    %2523 = vmatprep.subr.mxu0 0.0
    %2524 = vmatpush1.msra.mxu0 0.0
    %2525 = vmatprep.mubr.f32.mxu0 0.0
    %2526 = vmatmul.mubr.f32.gmra.mrb[0].mxu0 %v2459
    %v2527 = vpop.f32.mrb[0].mxu0
    %v2528 = vadd.f32 %v2236, %v2527
    %v2529 = vpop.f32.mrb[0].mxu0
    %2530 = vdwg.mxu0
    %v2532 = vsel %vm792, %v2053, 0
    %2534 = vmatprep.subr.mxu0 0.0
    %2535 = vmatpush1.msra.mxu0 %v2035
    %2536 = vmatprep.subr.mxu0 0.0
    %2537 = vmatpush1.msra.mxu0 0.0
    %2538 = vmatprep.subr.mxu0 0.0
    %2539 = vmatpush1.msra.mxu0 0.0
    %2540 = vmatprep.subr.mxu0 0.0
    %2541 = vmatpush1.msra.mxu0 0.0
    %2542 = vmatprep.subr.mxu0 0.0
    %2543 = vmatpush1.msra.mxu0 0.0
    %2544 = vmatprep.subr.mxu0 0.0
    %2545 = vmatpush1.msra.mxu0 0.0
    %2546 = vmatprep.subr.mxu0 0.0
    %2547 = vmatpush1.msra.mxu0 0.0
    %2548 = vmatprep.subr.mxu0 0.0
    %2549 = vmatpush1.msra.mxu0 0.0
    %2550 = vmatprep.subr.mxu0 0.0
    %2551 = vmatpush1.msra.mxu0 0.0
    %2552 = vmatprep.subr.mxu0 0.0
    %2553 = vmatpush1.msra.mxu0 0.0
    %2554 = vmatprep.subr.mxu0 0.0
    %2555 = vmatpush1.msra.mxu0 0.0
    %2556 = vmatprep.subr.mxu0 0.0
    %2557 = vmatpush1.msra.mxu0 0.0
    %2558 = vmatprep.subr.mxu0 0.0
    %2559 = vmatpush1.msra.mxu0 0.0
    %2560 = vmatprep.subr.mxu0 0.0
    %2561 = vmatpush1.msra.mxu0 0.0
    %2562 = vmatprep.subr.mxu0 0.0
    %2563 = vmatpush1.msra.mxu0 0.0
    %2564 = vmatprep.subr.mxu0 0.0
    %2565 = vmatpush1.msra.mxu0 0.0
    %2566 = vmatprep.subr.mxu0 0.0
    %2567 = vmatpush1.msra.mxu0 0.0
    %2568 = vmatprep.subr.mxu0 0.0
    %2569 = vmatpush1.msra.mxu0 0.0
    %2570 = vmatprep.subr.mxu0 0.0
    %2571 = vmatpush1.msra.mxu0 0.0
    %2572 = vmatprep.subr.mxu0 0.0
    %2573 = vmatpush1.msra.mxu0 0.0
    %2574 = vmatprep.subr.mxu0 0.0
    %2575 = vmatpush1.msra.mxu0 0.0
    %2576 = vmatprep.subr.mxu0 0.0
    %2577 = vmatpush1.msra.mxu0 0.0
    %2578 = vmatprep.subr.mxu0 0.0
    %2579 = vmatpush1.msra.mxu0 0.0
    %2580 = vmatprep.subr.mxu0 0.0
    %2581 = vmatpush1.msra.mxu0 0.0
    %2582 = vmatprep.subr.mxu0 0.0
    %2583 = vmatpush1.msra.mxu0 0.0
    %2584 = vmatprep.subr.mxu0 0.0
    %2585 = vmatpush1.msra.mxu0 0.0
    %2586 = vmatprep.subr.mxu0 0.0
    %2587 = vmatpush1.msra.mxu0 0.0
    %2588 = vmatprep.subr.mxu0 0.0
    %2589 = vmatpush1.msra.mxu0 0.0
    %2590 = vmatprep.subr.mxu0 0.0
    %2591 = vmatpush1.msra.mxu0 0.0
    %2592 = vmatprep.subr.mxu0 0.0
    %2593 = vmatpush1.msra.mxu0 0.0
    %2594 = vmatprep.subr.mxu0 0.0
    %2595 = vmatpush1.msra.mxu0 0.0
    %2596 = vmatprep.subr.mxu0 0.0
    %2597 = vmatpush1.msra.mxu0 0.0
    %2598 = vmatprep.mubr.f32.mxu0 0.0
    %2599 = vmatmul.mubr.f32.gmra.mrb[0].mxu0 %v2532
    %v2600 = vpop.f32.mrb[0].mxu0
    %v2601 = vadd.f32 %v2309, %v2600
    %v2602 = vpop.f32.mrb[0].mxu0
    %2603 = vdwg.mxu0
    %v2605 = vsel %vm792, %v2054, 0
    %2607 = vmatprep.subr.mxu0 0.0
    %2608 = vmatpush1.msra.mxu0 %v2040
    %2609 = vmatprep.subr.mxu0 0.0
    %2610 = vmatpush1.msra.mxu0 0.0
    %2611 = vmatprep.subr.mxu0 0.0
    %2612 = vmatpush1.msra.mxu0 0.0
    %2613 = vmatprep.subr.mxu0 0.0
    %2614 = vmatpush1.msra.mxu0 0.0
    %2615 = vmatprep.subr.mxu0 0.0
    %2616 = vmatpush1.msra.mxu0 0.0
    %2617 = vmatprep.subr.mxu0 0.0
    %2618 = vmatpush1.msra.mxu0 0.0
    %2619 = vmatprep.subr.mxu0 0.0
    %2620 = vmatpush1.msra.mxu0 0.0
    %2621 = vmatprep.subr.mxu0 0.0
    %2622 = vmatpush1.msra.mxu0 0.0
    %2623 = vmatprep.subr.mxu0 0.0
    %2624 = vmatpush1.msra.mxu0 0.0
    %2625 = vmatprep.subr.mxu0 0.0
    %2626 = vmatpush1.msra.mxu0 0.0
    %2627 = vmatprep.subr.mxu0 0.0
    %2628 = vmatpush1.msra.mxu0 0.0
    %2629 = vmatprep.subr.mxu0 0.0
    %2630 = vmatpush1.msra.mxu0 0.0
    %2631 = vmatprep.subr.mxu0 0.0
    %2632 = vmatpush1.msra.mxu0 0.0
    %2633 = vmatprep.subr.mxu0 0.0
    %2634 = vmatpush1.msra.mxu0 0.0
    %2635 = vmatprep.subr.mxu0 0.0
    %2636 = vmatpush1.msra.mxu0 0.0
    %2637 = vmatprep.subr.mxu0 0.0
    %2638 = vmatpush1.msra.mxu0 0.0
    %2639 = vmatprep.subr.mxu0 0.0
    %2640 = vmatpush1.msra.mxu0 0.0
    %2641 = vmatprep.subr.mxu0 0.0
    %2642 = vmatpush1.msra.mxu0 0.0
    %2643 = vmatprep.subr.mxu0 0.0
    %2644 = vmatpush1.msra.mxu0 0.0
    %2645 = vmatprep.subr.mxu0 0.0
    %2646 = vmatpush1.msra.mxu0 0.0
    %2647 = vmatprep.subr.mxu0 0.0
    %2648 = vmatpush1.msra.mxu0 0.0
    %2649 = vmatprep.subr.mxu0 0.0
    %2650 = vmatpush1.msra.mxu0 0.0
    %2651 = vmatprep.subr.mxu0 0.0
    %2652 = vmatpush1.msra.mxu0 0.0
    %2653 = vmatprep.subr.mxu0 0.0
    %2654 = vmatpush1.msra.mxu0 0.0
    %2655 = vmatprep.subr.mxu0 0.0
    %2656 = vmatpush1.msra.mxu0 0.0
    %2657 = vmatprep.subr.mxu0 0.0
    %2658 = vmatpush1.msra.mxu0 0.0
    %2659 = vmatprep.subr.mxu0 0.0
    %2660 = vmatpush1.msra.mxu0 0.0
    %2661 = vmatprep.subr.mxu0 0.0
    %2662 = vmatpush1.msra.mxu0 0.0
    %2663 = vmatprep.subr.mxu0 0.0
    %2664 = vmatpush1.msra.mxu0 0.0
    %2665 = vmatprep.subr.mxu0 0.0
    %2666 = vmatpush1.msra.mxu0 0.0
    %2667 = vmatprep.subr.mxu0 0.0
    %2668 = vmatpush1.msra.mxu0 0.0
    %2669 = vmatprep.subr.mxu0 0.0
    %2670 = vmatpush1.msra.mxu0 0.0
    %2671 = vmatprep.mubr.f32.mxu0 0.0
    %2672 = vmatmul.mubr.f32.gmra.mrb[0].mxu0 %v2605
    %v2673 = vpop.f32.mrb[0].mxu0
    %v2674 = vadd.f32 %v2382, %v2673
    %v2675 = vpop.f32.mrb[0].mxu0
    %2676 = vdwg.mxu0
    %v2678 = vsel %vm792, %v2055, 0
    %2680 = vmatprep.subr.mxu0 0.0
    %2681 = vmatpush1.msra.mxu0 %v2045
    %2682 = vmatprep.subr.mxu0 0.0
    %2683 = vmatpush1.msra.mxu0 0.0
    %2684 = vmatprep.subr.mxu0 0.0
    %2685 = vmatpush1.msra.mxu0 0.0
    %2686 = vmatprep.subr.mxu0 0.0
    %2687 = vmatpush1.msra.mxu0 0.0
    %2688 = vmatprep.subr.mxu0 0.0
    %2689 = vmatpush1.msra.mxu0 0.0
    %2690 = vmatprep.subr.mxu0 0.0
    %2691 = vmatpush1.msra.mxu0 0.0
    %2692 = vmatprep.subr.mxu0 0.0
    %2693 = vmatpush1.msra.mxu0 0.0
    %2694 = vmatprep.subr.mxu0 0.0
    %2695 = vmatpush1.msra.mxu0 0.0
    %2696 = vmatprep.subr.mxu0 0.0
    %2697 = vmatpush1.msra.mxu0 0.0
    %2698 = vmatprep.subr.mxu0 0.0
    %2699 = vmatpush1.msra.mxu0 0.0
    %2700 = vmatprep.subr.mxu0 0.0
    %2701 = vmatpush1.msra.mxu0 0.0
    %2702 = vmatprep.subr.mxu0 0.0
    %2703 = vmatpush1.msra.mxu0 0.0
    %2704 = vmatprep.subr.mxu0 0.0
    %2705 = vmatpush1.msra.mxu0 0.0
    %2706 = vmatprep.subr.mxu0 0.0
    %2707 = vmatpush1.msra.mxu0 0.0
    %2708 = vmatprep.subr.mxu0 0.0
    %2709 = vmatpush1.msra.mxu0 0.0
    %2710 = vmatprep.subr.mxu0 0.0
    %2711 = vmatpush1.msra.mxu0 0.0
    %2712 = vmatprep.subr.mxu0 0.0
    %2713 = vmatpush1.msra.mxu0 0.0
    %2714 = vmatprep.subr.mxu0 0.0
    %2715 = vmatpush1.msra.mxu0 0.0
    %2716 = vmatprep.subr.mxu0 0.0
    %2717 = vmatpush1.msra.mxu0 0.0
    %2718 = vmatprep.subr.mxu0 0.0
    %2719 = vmatpush1.msra.mxu0 0.0
    %2720 = vmatprep.subr.mxu0 0.0
    %2721 = vmatpush1.msra.mxu0 0.0
    %2722 = vmatprep.subr.mxu0 0.0
    %2723 = vmatpush1.msra.mxu0 0.0
    %2724 = vmatprep.subr.mxu0 0.0
    %2725 = vmatpush1.msra.mxu0 0.0
    %2726 = vmatprep.subr.mxu0 0.0
    %2727 = vmatpush1.msra.mxu0 0.0
    %2728 = vmatprep.subr.mxu0 0.0
    %2729 = vmatpush1.msra.mxu0 0.0
    %2730 = vmatprep.subr.mxu0 0.0
    %2731 = vmatpush1.msra.mxu0 0.0
    %2732 = vmatprep.subr.mxu0 0.0
    %2733 = vmatpush1.msra.mxu0 0.0
    %2734 = vmatprep.subr.mxu0 0.0
    %2735 = vmatpush1.msra.mxu0 0.0
    %2736 = vmatprep.subr.mxu0 0.0
    %2737 = vmatpush1.msra.mxu0 0.0
    %2738 = vmatprep.subr.mxu0 0.0
    %2739 = vmatpush1.msra.mxu0 0.0
    %2740 = vmatprep.subr.mxu0 0.0
    %2741 = vmatpush1.msra.mxu0 0.0
    %2742 = vmatprep.subr.mxu0 0.0
    %2743 = vmatpush1.msra.mxu0 0.0
    %2744 = vmatprep.mubr.f32.mxu0 0.0
    %2745 = vmatmul.mubr.f32.gmra.mrb[0].mxu0 %v2678
    %v2746 = vpop.f32.mrb[0].mxu0
    %v2747 = vadd.f32 %v2455, %v2746
    %v2748 = vpop.f32.mrb[0].mxu0
    %2749 = vdwg.mxu0
    %s2750 = scalar_lea.vmem %s7, 256
    %v2751 = vld [vmem:[%s2750] sm:$0xff]
    %v2752 = vld [vmem:[%s2750 + $0x8] sm:$0xff]
    %v2753 = vld [vmem:[%s2750 + $0x10] sm:$0xff]
    %v2754 = vld [vmem:[%s2750 + $0x18] sm:$0xff]
    %v2755 = vld [vmem:[%s2750 + $0x20] sm:$0xff]
    %v2756 = vld [vmem:[%s2750 + $0x28] sm:$0xff]
    %v2757 = vld [vmem:[%s2750 + $0x30] sm:$0xff]
    %v2758 = vld [vmem:[%s2750 + $0x38] sm:$0xff]
    %v2759 = vld [vmem:[%s2750 + $0x40] sm:$0xff]
    %v2760 = vld [vmem:[%s2750 + $0x48] sm:$0xff]
    %v2761 = vld [vmem:[%s2750 + $0x50] sm:$0xff]
    %v2762 = vld [vmem:[%s2750 + $0x58] sm:$0xff]
    %v2763 = vld [vmem:[%s2750 + $0x60] sm:$0xff]
    %v2764 = vld [vmem:[%s2750 + $0x68] sm:$0xff]
    %v2765 = vld [vmem:[%s2750 + $0x70] sm:$0xff]
    %v2766 = vld [vmem:[%s2750 + $0x78] sm:$0xff]
    %2767 = vmatprep.subr.mxu0 0.0
    %2768 = vmatpush1.msra.mxu0 %v2751
    %2769 = vmatprep.subr.mxu0 0.0
    %2770 = vmatpush1.msra.mxu0 %v2752
    %2771 = vmatprep.subr.mxu0 0.0
    %2772 = vmatpush1.msra.mxu0 %v2753
    %2773 = vmatprep.subr.mxu0 0.0
    %2774 = vmatpush1.msra.mxu0 %v2754
    %2775 = vmatprep.subr.mxu0 0.0
    %2776 = vmatpush1.msra.mxu0 %v2755
    %2777 = vmatprep.subr.mxu0 0.0
    %2778 = vmatpush1.msra.mxu0 %v2756
    %2779 = vmatprep.subr.mxu0 0.0
    %2780 = vmatpush1.msra.mxu0 %v2757
    %2781 = vmatprep.subr.mxu0 0.0
    %2782 = vmatpush1.msra.mxu0 %v2758
    %2783 = vmatprep.subr.mxu0 0.0
    %2784 = vmatpush1.msra.mxu0 %v2759
    %2785 = vmatprep.subr.mxu0 0.0
    %2786 = vmatpush1.msra.mxu0 %v2760
    %2787 = vmatprep.subr.mxu0 0.0
    %2788 = vmatpush1.msra.mxu0 %v2761
    %2789 = vmatprep.subr.mxu0 0.0
    %2790 = vmatpush1.msra.mxu0 %v2762
    %2791 = vmatprep.subr.mxu0 0.0
    %2792 = vmatpush1.msra.mxu0 %v2763
    %2793 = vmatprep.subr.mxu0 0.0
    %2794 = vmatpush1.msra.mxu0 %v2764
    %2795 = vmatprep.subr.mxu0 0.0
    %2796 = vmatpush1.msra.mxu0 %v2765
    %2797 = vmatprep.subr.mxu0 0.0
    %2798 = vmatpush1.msra.mxu0 %v2766
    %2799 = vmatprep.subr.mxu0 0.0
    %2800 = vmatpush1.msra.mxu0 0.0
    %2801 = vmatprep.subr.mxu0 0.0
    %2802 = vmatpush1.msra.mxu0 0.0
    %2803 = vmatprep.subr.mxu0 0.0
    %2804 = vmatpush1.msra.mxu0 0.0
    %2805 = vmatprep.subr.mxu0 0.0
    %2806 = vmatpush1.msra.mxu0 0.0
    %2807 = vmatprep.subr.mxu0 0.0
    %2808 = vmatpush1.msra.mxu0 0.0
    %2809 = vmatprep.subr.mxu0 0.0
    %2810 = vmatpush1.msra.mxu0 0.0
    %2811 = vmatprep.subr.mxu0 0.0
    %2812 = vmatpush1.msra.mxu0 0.0
    %2813 = vmatprep.subr.mxu0 0.0
    %2814 = vmatpush1.msra.mxu0 0.0
    %2815 = vmatprep.subr.mxu0 0.0
    %2816 = vmatpush1.msra.mxu0 0.0
    %2817 = vmatprep.subr.mxu0 0.0
    %2818 = vmatpush1.msra.mxu0 0.0
    %2819 = vmatprep.subr.mxu0 0.0
    %2820 = vmatpush1.msra.mxu0 0.0
    %2821 = vmatprep.subr.mxu0 0.0
    %2822 = vmatpush1.msra.mxu0 0.0
    %2823 = vmatprep.subr.mxu0 0.0
    %2824 = vmatpush1.msra.mxu0 0.0
    %2825 = vmatprep.subr.mxu0 0.0
    %2826 = vmatpush1.msra.mxu0 0.0
    %2827 = vmatprep.subr.mxu0 0.0
    %2828 = vmatpush1.msra.mxu0 0.0
    %2829 = vmatprep.subr.mxu0 0.0
    %2830 = vmatpush1.msra.mxu0 0.0
    %2831 = vmatprep.mubr.f32.mxu0 0.0
    %2832 = vmatmul.mubr.f32.gmra.mrb[0].mxu0 %v1943
    %v2833 = vpop.f32.mrb[0].mxu0
    %v2834 = vadd.f32 0.0, %v2833
    %v2835 = vpop.f32.mrb[0].mxu0
    %2836 = vmatprep.mubr.f32.mxu0 0.0
    %2837 = vmatmul.mubr.f32.gmra.mrb[0].mxu0 %v1944
    %v2838 = vpop.f32.mrb[0].mxu0
    %v2839 = vadd.f32 0.0, %v2838
    %v2840 = vpop.f32.mrb[0].mxu0
    %2841 = vmatprep.mubr.f32.mxu0 0.0
    %2842 = vmatmul.mubr.f32.gmra.mrb[0].mxu0 %v1945
    %v2843 = vpop.f32.mrb[0].mxu0
    %v2844 = vadd.f32 0.0, %v2843
    %v2845 = vpop.f32.mrb[0].mxu0
    %2846 = vmatprep.mubr.f32.mxu0 0.0
    %2847 = vmatmul.mubr.f32.gmra.mrb[0].mxu0 %v1946
    %v2848 = vpop.f32.mrb[0].mxu0
    %v2849 = vadd.f32 0.0, %v2848
    %v2850 = vpop.f32.mrb[0].mxu0
    %2851 = vdwg.mxu0
    %v2852 = vld [vmem:[%s1495] sm:$0xf]
    %v2853 = vld [vmem:[%s1495 + $0x4] sm:$0xf]
    %v2854 = vld [vmem:[%s1495 + $0x8] sm:$0xf]
    %v2855 = vld [vmem:[%s1495 + $0xc] sm:$0xf]
    %v2856 = vunpack.c.l.bf16 %v2852
    %v2857 = vunpack.c.l.bf16 %v2853
    %v2858 = vunpack.c.l.bf16 %v2854
    %v2859 = vunpack.c.l.bf16 %v2855
    %v2861 = vsel %vm792, %v2856, 0
    %2863 = vmatprep.subr.mxu0 0.0
    %2864 = vmatpush1.msra.mxu0 %v2834
    %2865 = vmatprep.subr.mxu0 0.0
    %2866 = vmatpush1.msra.mxu0 0.0
    %2867 = vmatprep.subr.mxu0 0.0
    %2868 = vmatpush1.msra.mxu0 0.0
    %2869 = vmatprep.subr.mxu0 0.0
    %2870 = vmatpush1.msra.mxu0 0.0
    %2871 = vmatprep.subr.mxu0 0.0
    %2872 = vmatpush1.msra.mxu0 0.0
    %2873 = vmatprep.subr.mxu0 0.0
    %2874 = vmatpush1.msra.mxu0 0.0
    %2875 = vmatprep.subr.mxu0 0.0
    %2876 = vmatpush1.msra.mxu0 0.0
    %2877 = vmatprep.subr.mxu0 0.0
    %2878 = vmatpush1.msra.mxu0 0.0
    %2879 = vmatprep.subr.mxu0 0.0
    %2880 = vmatpush1.msra.mxu0 0.0
    %2881 = vmatprep.subr.mxu0 0.0
    %2882 = vmatpush1.msra.mxu0 0.0
    %2883 = vmatprep.subr.mxu0 0.0
    %2884 = vmatpush1.msra.mxu0 0.0
    %2885 = vmatprep.subr.mxu0 0.0
    %2886 = vmatpush1.msra.mxu0 0.0
    %2887 = vmatprep.subr.mxu0 0.0
    %2888 = vmatpush1.msra.mxu0 0.0
    %2889 = vmatprep.subr.mxu0 0.0
    %2890 = vmatpush1.msra.mxu0 0.0
    %2891 = vmatprep.subr.mxu0 0.0
    %2892 = vmatpush1.msra.mxu0 0.0
    %2893 = vmatprep.subr.mxu0 0.0
    %2894 = vmatpush1.msra.mxu0 0.0
    %2895 = vmatprep.subr.mxu0 0.0
    %2896 = vmatpush1.msra.mxu0 0.0
    %2897 = vmatprep.subr.mxu0 0.0
    %2898 = vmatpush1.msra.mxu0 0.0
    %2899 = vmatprep.subr.mxu0 0.0
    %2900 = vmatpush1.msra.mxu0 0.0
    %2901 = vmatprep.subr.mxu0 0.0
    %2902 = vmatpush1.msra.mxu0 0.0
    %2903 = vmatprep.subr.mxu0 0.0
    %2904 = vmatpush1.msra.mxu0 0.0
    %2905 = vmatprep.subr.mxu0 0.0
    %2906 = vmatpush1.msra.mxu0 0.0
    %2907 = vmatprep.subr.mxu0 0.0
    %2908 = vmatpush1.msra.mxu0 0.0
    %2909 = vmatprep.subr.mxu0 0.0
    %2910 = vmatpush1.msra.mxu0 0.0
    %2911 = vmatprep.subr.mxu0 0.0
    %2912 = vmatpush1.msra.mxu0 0.0
    %2913 = vmatprep.subr.mxu0 0.0
    %2914 = vmatpush1.msra.mxu0 0.0
    %2915 = vmatprep.subr.mxu0 0.0
    %2916 = vmatpush1.msra.mxu0 0.0
    %2917 = vmatprep.subr.mxu0 0.0
    %2918 = vmatpush1.msra.mxu0 0.0
    %2919 = vmatprep.subr.mxu0 0.0
    %2920 = vmatpush1.msra.mxu0 0.0
    %2921 = vmatprep.subr.mxu0 0.0
    %2922 = vmatpush1.msra.mxu0 0.0
    %2923 = vmatprep.subr.mxu0 0.0
    %2924 = vmatpush1.msra.mxu0 0.0
    %2925 = vmatprep.subr.mxu0 0.0
    %2926 = vmatpush1.msra.mxu0 0.0
    %2927 = vmatprep.mubr.f32.mxu0 0.0
    %2928 = vmatmul.mubr.f32.gmra.mrb[0].mxu0 %v2861
    %v2929 = vpop.f32.mrb[0].mxu0
    %v2930 = vadd.f32 0.0, %v2929
    %v2931 = vpop.f32.mrb[0].mxu0
    %2932 = vdwg.mxu0
    %v2934 = vsel %vm792, %v2857, 0
    %2936 = vmatprep.subr.mxu0 0.0
    %2937 = vmatpush1.msra.mxu0 %v2839
    %2938 = vmatprep.subr.mxu0 0.0
    %2939 = vmatpush1.msra.mxu0 0.0
    %2940 = vmatprep.subr.mxu0 0.0
    %2941 = vmatpush1.msra.mxu0 0.0
    %2942 = vmatprep.subr.mxu0 0.0
    %2943 = vmatpush1.msra.mxu0 0.0
    %2944 = vmatprep.subr.mxu0 0.0
    %2945 = vmatpush1.msra.mxu0 0.0
    %2946 = vmatprep.subr.mxu0 0.0
    %2947 = vmatpush1.msra.mxu0 0.0
    %2948 = vmatprep.subr.mxu0 0.0
    %2949 = vmatpush1.msra.mxu0 0.0
    %2950 = vmatprep.subr.mxu0 0.0
    %2951 = vmatpush1.msra.mxu0 0.0
    %2952 = vmatprep.subr.mxu0 0.0
    %2953 = vmatpush1.msra.mxu0 0.0
    %2954 = vmatprep.subr.mxu0 0.0
    %2955 = vmatpush1.msra.mxu0 0.0
    %2956 = vmatprep.subr.mxu0 0.0
    %2957 = vmatpush1.msra.mxu0 0.0
    %2958 = vmatprep.subr.mxu0 0.0
    %2959 = vmatpush1.msra.mxu0 0.0
    %2960 = vmatprep.subr.mxu0 0.0
    %2961 = vmatpush1.msra.mxu0 0.0
    %2962 = vmatprep.subr.mxu0 0.0
    %2963 = vmatpush1.msra.mxu0 0.0
    %2964 = vmatprep.subr.mxu0 0.0
    %2965 = vmatpush1.msra.mxu0 0.0
    %2966 = vmatprep.subr.mxu0 0.0
    %2967 = vmatpush1.msra.mxu0 0.0
    %2968 = vmatprep.subr.mxu0 0.0
    %2969 = vmatpush1.msra.mxu0 0.0
    %2970 = vmatprep.subr.mxu0 0.0
    %2971 = vmatpush1.msra.mxu0 0.0
    %2972 = vmatprep.subr.mxu0 0.0
    %2973 = vmatpush1.msra.mxu0 0.0
    %2974 = vmatprep.subr.mxu0 0.0
    %2975 = vmatpush1.msra.mxu0 0.0
    %2976 = vmatprep.subr.mxu0 0.0
    %2977 = vmatpush1.msra.mxu0 0.0
    %2978 = vmatprep.subr.mxu0 0.0
    %2979 = vmatpush1.msra.mxu0 0.0
    %2980 = vmatprep.subr.mxu0 0.0
    %2981 = vmatpush1.msra.mxu0 0.0
    %2982 = vmatprep.subr.mxu0 0.0
    %2983 = vmatpush1.msra.mxu0 0.0
    %2984 = vmatprep.subr.mxu0 0.0
    %2985 = vmatpush1.msra.mxu0 0.0
    %2986 = vmatprep.subr.mxu0 0.0
    %2987 = vmatpush1.msra.mxu0 0.0
    %2988 = vmatprep.subr.mxu0 0.0
    %2989 = vmatpush1.msra.mxu0 0.0
    %2990 = vmatprep.subr.mxu0 0.0
    %2991 = vmatpush1.msra.mxu0 0.0
    %2992 = vmatprep.subr.mxu0 0.0
    %2993 = vmatpush1.msra.mxu0 0.0
    %2994 = vmatprep.subr.mxu0 0.0
    %2995 = vmatpush1.msra.mxu0 0.0
    %2996 = vmatprep.subr.mxu0 0.0
    %2997 = vmatpush1.msra.mxu0 0.0
    %2998 = vmatprep.subr.mxu0 0.0
    %2999 = vmatpush1.msra.mxu0 0.0
    %3000 = vmatprep.mubr.f32.mxu0 0.0
    %3001 = vmatmul.mubr.f32.gmra.mrb[0].mxu0 %v2934
    %v3002 = vpop.f32.mrb[0].mxu0
    %v3003 = vadd.f32 0.0, %v3002
    %v3004 = vpop.f32.mrb[0].mxu0
    %3005 = vdwg.mxu0
    %v3007 = vsel %vm792, %v2858, 0
    %3009 = vmatprep.subr.mxu0 0.0
    %3010 = vmatpush1.msra.mxu0 %v2844
    %3011 = vmatprep.subr.mxu0 0.0
    %3012 = vmatpush1.msra.mxu0 0.0
    %3013 = vmatprep.subr.mxu0 0.0
    %3014 = vmatpush1.msra.mxu0 0.0
    %3015 = vmatprep.subr.mxu0 0.0
    %3016 = vmatpush1.msra.mxu0 0.0
    %3017 = vmatprep.subr.mxu0 0.0
    %3018 = vmatpush1.msra.mxu0 0.0
    %3019 = vmatprep.subr.mxu0 0.0
    %3020 = vmatpush1.msra.mxu0 0.0
    %3021 = vmatprep.subr.mxu0 0.0
    %3022 = vmatpush1.msra.mxu0 0.0
    %3023 = vmatprep.subr.mxu0 0.0
    %3024 = vmatpush1.msra.mxu0 0.0
    %3025 = vmatprep.subr.mxu0 0.0
    %3026 = vmatpush1.msra.mxu0 0.0
    %3027 = vmatprep.subr.mxu0 0.0
    %3028 = vmatpush1.msra.mxu0 0.0
    %3029 = vmatprep.subr.mxu0 0.0
    %3030 = vmatpush1.msra.mxu0 0.0
    %3031 = vmatprep.subr.mxu0 0.0
    %3032 = vmatpush1.msra.mxu0 0.0
    %3033 = vmatprep.subr.mxu0 0.0
    %3034 = vmatpush1.msra.mxu0 0.0
    %3035 = vmatprep.subr.mxu0 0.0
    %3036 = vmatpush1.msra.mxu0 0.0
    %3037 = vmatprep.subr.mxu0 0.0
    %3038 = vmatpush1.msra.mxu0 0.0
    %3039 = vmatprep.subr.mxu0 0.0
    %3040 = vmatpush1.msra.mxu0 0.0
    %3041 = vmatprep.subr.mxu0 0.0
    %3042 = vmatpush1.msra.mxu0 0.0
    %3043 = vmatprep.subr.mxu0 0.0
    %3044 = vmatpush1.msra.mxu0 0.0
    %3045 = vmatprep.subr.mxu0 0.0
    %3046 = vmatpush1.msra.mxu0 0.0
    %3047 = vmatprep.subr.mxu0 0.0
    %3048 = vmatpush1.msra.mxu0 0.0
    %3049 = vmatprep.subr.mxu0 0.0
    %3050 = vmatpush1.msra.mxu0 0.0
    %3051 = vmatprep.subr.mxu0 0.0
    %3052 = vmatpush1.msra.mxu0 0.0
    %3053 = vmatprep.subr.mxu0 0.0
    %3054 = vmatpush1.msra.mxu0 0.0
    %3055 = vmatprep.subr.mxu0 0.0
    %3056 = vmatpush1.msra.mxu0 0.0
    %3057 = vmatprep.subr.mxu0 0.0
    %3058 = vmatpush1.msra.mxu0 0.0
    %3059 = vmatprep.subr.mxu0 0.0
    %3060 = vmatpush1.msra.mxu0 0.0
    %3061 = vmatprep.subr.mxu0 0.0
    %3062 = vmatpush1.msra.mxu0 0.0
    %3063 = vmatprep.subr.mxu0 0.0
    %3064 = vmatpush1.msra.mxu0 0.0
    %3065 = vmatprep.subr.mxu0 0.0
    %3066 = vmatpush1.msra.mxu0 0.0
    %3067 = vmatprep.subr.mxu0 0.0
    %3068 = vmatpush1.msra.mxu0 0.0
    %3069 = vmatprep.subr.mxu0 0.0
    %3070 = vmatpush1.msra.mxu0 0.0
    %3071 = vmatprep.subr.mxu0 0.0
    %3072 = vmatpush1.msra.mxu0 0.0
    %3073 = vmatprep.mubr.f32.mxu0 0.0
    %3074 = vmatmul.mubr.f32.gmra.mrb[0].mxu0 %v3007
    %v3075 = vpop.f32.mrb[0].mxu0
    %v3076 = vadd.f32 0.0, %v3075
    %v3077 = vpop.f32.mrb[0].mxu0
    %3078 = vdwg.mxu0
    %v3080 = vsel %vm792, %v2859, 0
    %3082 = vmatprep.subr.mxu0 0.0
    %3083 = vmatpush1.msra.mxu0 %v2849
    %3084 = vmatprep.subr.mxu0 0.0
    %3085 = vmatpush1.msra.mxu0 0.0
    %3086 = vmatprep.subr.mxu0 0.0
    %3087 = vmatpush1.msra.mxu0 0.0
    %3088 = vmatprep.subr.mxu0 0.0
    %3089 = vmatpush1.msra.mxu0 0.0
    %3090 = vmatprep.subr.mxu0 0.0
    %3091 = vmatpush1.msra.mxu0 0.0
    %3092 = vmatprep.subr.mxu0 0.0
    %3093 = vmatpush1.msra.mxu0 0.0
    %3094 = vmatprep.subr.mxu0 0.0
    %3095 = vmatpush1.msra.mxu0 0.0
    %3096 = vmatprep.subr.mxu0 0.0
    %3097 = vmatpush1.msra.mxu0 0.0
    %3098 = vmatprep.subr.mxu0 0.0
    %3099 = vmatpush1.msra.mxu0 0.0
    %3100 = vmatprep.subr.mxu0 0.0
    %3101 = vmatpush1.msra.mxu0 0.0
    %3102 = vmatprep.subr.mxu0 0.0
    %3103 = vmatpush1.msra.mxu0 0.0
    %3104 = vmatprep.subr.mxu0 0.0
    %3105 = vmatpush1.msra.mxu0 0.0
    %3106 = vmatprep.subr.mxu0 0.0
    %3107 = vmatpush1.msra.mxu0 0.0
    %3108 = vmatprep.subr.mxu0 0.0
    %3109 = vmatpush1.msra.mxu0 0.0
    %3110 = vmatprep.subr.mxu0 0.0
    %3111 = vmatpush1.msra.mxu0 0.0
    %3112 = vmatprep.subr.mxu0 0.0
    %3113 = vmatpush1.msra.mxu0 0.0
    %3114 = vmatprep.subr.mxu0 0.0
    %3115 = vmatpush1.msra.mxu0 0.0
    %3116 = vmatprep.subr.mxu0 0.0
    %3117 = vmatpush1.msra.mxu0 0.0
    %3118 = vmatprep.subr.mxu0 0.0
    %3119 = vmatpush1.msra.mxu0 0.0
    %3120 = vmatprep.subr.mxu0 0.0
    %3121 = vmatpush1.msra.mxu0 0.0
    %3122 = vmatprep.subr.mxu0 0.0
    %3123 = vmatpush1.msra.mxu0 0.0
    %3124 = vmatprep.subr.mxu0 0.0
    %3125 = vmatpush1.msra.mxu0 0.0
    %3126 = vmatprep.subr.mxu0 0.0
    %3127 = vmatpush1.msra.mxu0 0.0
    %3128 = vmatprep.subr.mxu0 0.0
    %3129 = vmatpush1.msra.mxu0 0.0
    %3130 = vmatprep.subr.mxu0 0.0
    %3131 = vmatpush1.msra.mxu0 0.0
    %3132 = vmatprep.subr.mxu0 0.0
    %3133 = vmatpush1.msra.mxu0 0.0
    %3134 = vmatprep.subr.mxu0 0.0
    %3135 = vmatpush1.msra.mxu0 0.0
    %3136 = vmatprep.subr.mxu0 0.0
    %3137 = vmatpush1.msra.mxu0 0.0
    %3138 = vmatprep.subr.mxu0 0.0
    %3139 = vmatpush1.msra.mxu0 0.0
    %3140 = vmatprep.subr.mxu0 0.0
    %3141 = vmatpush1.msra.mxu0 0.0
    %3142 = vmatprep.subr.mxu0 0.0
    %3143 = vmatpush1.msra.mxu0 0.0
    %3144 = vmatprep.subr.mxu0 0.0
    %3145 = vmatpush1.msra.mxu0 0.0
    %3146 = vmatprep.mubr.f32.mxu0 0.0
    %3147 = vmatmul.mubr.f32.gmra.mrb[0].mxu0 %v3080
    %v3148 = vpop.f32.mrb[0].mxu0
    %v3149 = vadd.f32 0.0, %v3148
    %v3150 = vpop.f32.mrb[0].mxu0
    %3151 = vdwg.mxu0
    %v3152 = vadd.f32 %v2528, %v2930
    %v3153 = vadd.f32 %v2601, %v3003
    %v3154 = vadd.f32 %v2674, %v3076
    %v3155 = vadd.f32 %v2747, %v3149
    %v3156 = vld [vmem:[#allocation7] sm:$0x1]
    %v3158 = vlaneseq
    %v3159 = vshrl.u32 %v3158, 7
    %v3160 = vsub.s32 0, %v3159
    %v3161 = vrot.slane %v3156, %v3160
    %v3163 = vadd.f32 %v3152, %v3161
    %v3164 = vadd.f32 %v3153, %v3161
    %v3165 = vadd.f32 %v3154, %v3161
    %v3166 = vadd.f32 %v3155, %v3161
    %v3167 = vmul.f32 %v3163, %v351
    %v3168 = vmul.f32 %v3164, %v356
    %v3169 = vmul.f32 %v3165, %v361
    %v3170 = vmul.f32 %v3166, %v366
    %vm3171 = vcmask 523264
    %v3172 = vsel %vm3171, %v3167, 0.0
    %3173 = vadd.xlane.f32.xlu0 %v3172
    %v3174 = vpop.xlane.xlu0 %3173
    %v3175 = vsel %vm3171, %v3168, 0.0
    %3176 = vadd.xlane.f32.xlu0 %v3175
    %v3177 = vpop.xlane.xlu0 %3176
    %v3178 = vsel %vm3171, %v3169, 0.0
    %3179 = vadd.xlane.f32.xlu0 %v3178
    %v3180 = vpop.xlane.xlu0 %3179
    %v3181 = vsel %vm3171, %v3170, 0.0
    %3182 = vadd.xlane.f32.xlu0 %v3181
    %v3183 = vpop.xlane.xlu0 %3182
    %v3184 = vrot.slane %v3174, 4
    %v3185 = vadd.f32 %v3174, %v3184
    %v3186 = vrot.slane %v3185, 2
    %v3187 = vadd.f32 %v3185, %v3186
    %v3188 = vrot.slane %v3187, 1
    %v3189 = vadd.f32 %v3187, %v3188
    %v3190 = vrot.slane %v3177, 4
    %v3191 = vadd.f32 %v3177, %v3190
    %v3192 = vrot.slane %v3191, 2
    %v3193 = vadd.f32 %v3191, %v3192
    %v3194 = vrot.slane %v3193, 1
    %v3195 = vadd.f32 %v3193, %v3194
    %v3196 = vrot.slane %v3180, 4
    %v3197 = vadd.f32 %v3180, %v3196
    %v3198 = vrot.slane %v3197, 2
    %v3199 = vadd.f32 %v3197, %v3198
    %v3200 = vrot.slane %v3199, 1
    %v3201 = vadd.f32 %v3199, %v3200
    %v3202 = vrot.slane %v3183, 4
    %v3203 = vadd.f32 %v3183, %v3202
    %v3204 = vrot.slane %v3203, 2
    %v3205 = vadd.f32 %v3203, %v3204
    %v3206 = vrot.slane %v3205, 1
    %v3207 = vadd.f32 %v3205, %v3206
    %v3208 = vmul.f32 %v3189, 0.001953125
    %v3209 = vmul.f32 %v3195, 0.001953125
    %v3210 = vmul.f32 %v3201, 0.001953125
    %v3211 = vmul.f32 %v3207, 0.001953125
    %v3212 = vsub.f32 %v3167, %v3208
    %v3213 = vsub.f32 %v3168, %v3209
    %v3214 = vsub.f32 %v3169, %v3210
    %v3215 = vsub.f32 %v3170, %v3211
    %v3216 = vmul.f32 %v3212, %v3212
    %v3217 = vmul.f32 %v3213, %v3213
    %v3218 = vmul.f32 %v3214, %v3214
    %v3219 = vmul.f32 %v3215, %v3215
    %v3220 = vsel %vm3171, %v3216, 0.0
    %3221 = vadd.xlane.f32.xlu0 %v3220
    %v3222 = vpop.xlane.xlu0 %3221
    %v3223 = vsel %vm3171, %v3217, 0.0
    %3224 = vadd.xlane.f32.xlu0 %v3223
    %v3225 = vpop.xlane.xlu0 %3224
    %v3226 = vsel %vm3171, %v3218, 0.0
    %3227 = vadd.xlane.f32.xlu0 %v3226
    %v3228 = vpop.xlane.xlu0 %3227
    %v3229 = vsel %vm3171, %v3219, 0.0
    %3230 = vadd.xlane.f32.xlu0 %v3229
    %v3231 = vpop.xlane.xlu0 %3230
    %v3232 = vrot.slane %v3222, 4
    %v3233 = vadd.f32 %v3222, %v3232
    %v3234 = vrot.slane %v3233, 2
    %v3235 = vadd.f32 %v3233, %v3234
    %v3236 = vrot.slane %v3235, 1
    %v3237 = vadd.f32 %v3235, %v3236
    %v3238 = vrot.slane %v3225, 4
    %v3239 = vadd.f32 %v3225, %v3238
    %v3240 = vrot.slane %v3239, 2
    %v3241 = vadd.f32 %v3239, %v3240
    %v3242 = vrot.slane %v3241, 1
    %v3243 = vadd.f32 %v3241, %v3242
    %v3244 = vrot.slane %v3228, 4
    %v3245 = vadd.f32 %v3228, %v3244
    %v3246 = vrot.slane %v3245, 2
    %v3247 = vadd.f32 %v3245, %v3246
    %v3248 = vrot.slane %v3247, 1
    %v3249 = vadd.f32 %v3247, %v3248
    %v3250 = vrot.slane %v3231, 4
    %v3251 = vadd.f32 %v3231, %v3250
    %v3252 = vrot.slane %v3251, 2
    %v3253 = vadd.f32 %v3251, %v3252
    %v3254 = vrot.slane %v3253, 1
    %v3255 = vadd.f32 %v3253, %v3254
    %v3256 = vmul.f32 %v3237, 0.0019569471
    %v3257 = vmul.f32 %v3243, 0.0019569471
    %v3258 = vmul.f32 %v3249, 0.0019569471
    %v3259 = vmul.f32 %v3255, 0.0019569471
    %v3260 = vrsqrt.pop %v3256
    %v3261 = vmul.f32 %v3256, %v3260
    %vm3262 = vcmp.eq.f32.partialorder %v3256, inf
    %v3263 = vsel %vm3262, %v3256, %v3261
    %vm3264 = vcmp.eq.f32.partialorder %v3256, 0.0
    %v3265 = vand.u32 %v3256, 2147483648
    %v3266 = vsel %vm3264, %v3265, %v3263
    %v3267 = vrsqrt.pop %v3257
    %v3268 = vmul.f32 %v3257, %v3267
    %vm3269 = vcmp.eq.f32.partialorder %v3257, inf
    %v3270 = vsel %vm3269, %v3257, %v3268
    %vm3271 = vcmp.eq.f32.partialorder %v3257, 0.0
    %v3272 = vand.u32 %v3257, 2147483648
    %v3273 = vsel %vm3271, %v3272, %v3270
    %v3274 = vrsqrt.pop %v3258
    %v3275 = vmul.f32 %v3258, %v3274
    %vm3276 = vcmp.eq.f32.partialorder %v3258, inf
    %v3277 = vsel %vm3276, %v3258, %v3275
    %vm3278 = vcmp.eq.f32.partialorder %v3258, 0.0
    %v3279 = vand.u32 %v3258, 2147483648
    %v3280 = vsel %vm3278, %v3279, %v3277
    %v3281 = vrsqrt.pop %v3259
    %v3282 = vmul.f32 %v3259, %v3281
    %vm3283 = vcmp.eq.f32.partialorder %v3259, inf
    %v3284 = vsel %vm3283, %v3259, %v3282
    %vm3285 = vcmp.eq.f32.partialorder %v3259, 0.0
    %v3286 = vand.u32 %v3259, 2147483648
    %v3287 = vsel %vm3285, %v3286, %v3284
    %v3288 = vadd.f32 %v3266, 1e-05
    %v3289 = vadd.f32 %v3273, 1e-05
    %v3290 = vadd.f32 %v3280, 1e-05
    %v3291 = vadd.f32 %v3287, 1e-05
    %v3292 = vrcp.pop %v3288
    %v3293 = vrcp.pop %v3289
    %v3294 = vrcp.pop %v3290
    %v3295 = vrcp.pop %v3291
    %v3296 = vmul.f32 %v3212, %v3292
    %v3297 = vmul.f32 %v3213, %v3293
    %v3298 = vmul.f32 %v3214, %v3294
    %v3299 = vmul.f32 %v3215, %v3295
    %v3300 = vsel %vm3171, %v3296, -inf
    %v3301 = vrot.slane %v3300, 4
    %v3302 = vmax.f32 %v3300, %v3301
    %v3303 = vrot.slane %v3302, 2
    %v3304 = vmax.f32 %v3302, %v3303
    %v3305 = vrot.slane %v3304, 1
    %v3306 = vmax.f32 %v3304, %v3305
    %v3307 = vsel %vm3171, %v3297, -inf
    %v3308 = vrot.slane %v3307, 4
    %v3309 = vmax.f32 %v3307, %v3308
    %v3310 = vrot.slane %v3309, 2
    %v3311 = vmax.f32 %v3309, %v3310
    %v3312 = vrot.slane %v3311, 1
    %v3313 = vmax.f32 %v3311, %v3312
    %v3314 = vsel %vm3171, %v3298, -inf
    %v3315 = vrot.slane %v3314, 4
    %v3316 = vmax.f32 %v3314, %v3315
    %v3317 = vrot.slane %v3316, 2
    %v3318 = vmax.f32 %v3316, %v3317
    %v3319 = vrot.slane %v3318, 1
    %v3320 = vmax.f32 %v3318, %v3319
    %v3321 = vsel %vm3171, %v3299, -inf
    %v3322 = vrot.slane %v3321, 4
    %v3323 = vmax.f32 %v3321, %v3322
    %v3324 = vrot.slane %v3323, 2
    %v3325 = vmax.f32 %v3323, %v3324
    %v3326 = vrot.slane %v3325, 1
    %v3327 = vmax.f32 %v3325, %v3326
    %v3328 = vld [vmem:[%s9] sm:$0xff]
    %v3329 = vld [vmem:[%s9 + $0x8] sm:$0xff]
    %v3330 = vld [vmem:[%s9 + $0x10] sm:$0xff]
    %v3331 = vld [vmem:[%s9 + $0x18] sm:$0xff]
    %v3332 = vld [vmem:[%s9 + $0x20] sm:$0xff]
    %v3333 = vld [vmem:[%s9 + $0x28] sm:$0xff]
    %v3334 = vld [vmem:[%s9 + $0x30] sm:$0xff]
    %v3335 = vld [vmem:[%s9 + $0x38] sm:$0xff]
    %v3336 = vld [vmem:[#allocation9] sm:$0x1]
    %v3338 = vlaneseq
    %v3339 = vshrl.u32 %v3338, 7
    %v3340 = vsub.s32 0, %v3339
    %v3341 = vrot.slane %v3336, %v3340
    %vm3347 = vcmask 1041409
    %v3348 = vsel %vm3347, %v3313, %v3306
    %vm3349 = vcmask 1042434
    %v3350 = vsel %vm3349, %v3320, %v3348
    %vm3351 = vcmask 1043459
    %v3352 = vsel %vm3351, %v3327, %v3350
    %v3353 = vsel %vm3171, %v3352, 0
    %3355 = vmatprep.subr.mxu0 0.0
    %3356 = vmatpush1.msra.mxu0 %v3328
    %3357 = vmatprep.subr.mxu0 0.0
    %3358 = vmatpush1.msra.mxu0 %v3329
    %3359 = vmatprep.subr.mxu0 0.0
    %3360 = vmatpush1.msra.mxu0 %v3330
    %3361 = vmatprep.subr.mxu0 0.0
    %3362 = vmatpush1.msra.mxu0 %v3331
    %3363 = vmatprep.subr.mxu0 0.0
    %3364 = vmatpush1.msra.mxu0 %v3332
    %3365 = vmatprep.subr.mxu0 0.0
    %3366 = vmatpush1.msra.mxu0 %v3333
    %3367 = vmatprep.subr.mxu0 0.0
    %3368 = vmatpush1.msra.mxu0 %v3334
    %3369 = vmatprep.subr.mxu0 0.0
    %3370 = vmatpush1.msra.mxu0 %v3335
    %3371 = vmatprep.subr.mxu0 0.0
    %3372 = vmatpush1.msra.mxu0 0.0
    %3373 = vmatprep.subr.mxu0 0.0
    %3374 = vmatpush1.msra.mxu0 0.0
    %3375 = vmatprep.subr.mxu0 0.0
    %3376 = vmatpush1.msra.mxu0 0.0
    %3377 = vmatprep.subr.mxu0 0.0
    %3378 = vmatpush1.msra.mxu0 0.0
    %3379 = vmatprep.subr.mxu0 0.0
    %3380 = vmatpush1.msra.mxu0 0.0
    %3381 = vmatprep.subr.mxu0 0.0
    %3382 = vmatpush1.msra.mxu0 0.0
    %3383 = vmatprep.subr.mxu0 0.0
    %3384 = vmatpush1.msra.mxu0 0.0
    %3385 = vmatprep.subr.mxu0 0.0
    %3386 = vmatpush1.msra.mxu0 0.0
    %3387 = vmatprep.subr.mxu0 0.0
    %3388 = vmatpush1.msra.mxu0 0.0
    %3389 = vmatprep.subr.mxu0 0.0
    %3390 = vmatpush1.msra.mxu0 0.0
    %3391 = vmatprep.subr.mxu0 0.0
    %3392 = vmatpush1.msra.mxu0 0.0
    %3393 = vmatprep.subr.mxu0 0.0
    %3394 = vmatpush1.msra.mxu0 0.0
    %3395 = vmatprep.subr.mxu0 0.0
    %3396 = vmatpush1.msra.mxu0 0.0
    %3397 = vmatprep.subr.mxu0 0.0
    %3398 = vmatpush1.msra.mxu0 0.0
    %3399 = vmatprep.subr.mxu0 0.0
    %3400 = vmatpush1.msra.mxu0 0.0
    %3401 = vmatprep.subr.mxu0 0.0
    %3402 = vmatpush1.msra.mxu0 0.0
    %3403 = vmatprep.subr.mxu0 0.0
    %3404 = vmatpush1.msra.mxu0 0.0
    %3405 = vmatprep.subr.mxu0 0.0
    %3406 = vmatpush1.msra.mxu0 0.0
    %3407 = vmatprep.subr.mxu0 0.0
    %3408 = vmatpush1.msra.mxu0 0.0
    %3409 = vmatprep.subr.mxu0 0.0
    %3410 = vmatpush1.msra.mxu0 0.0
    %3411 = vmatprep.subr.mxu0 0.0
    %3412 = vmatpush1.msra.mxu0 0.0
    %3413 = vmatprep.subr.mxu0 0.0
    %3414 = vmatpush1.msra.mxu0 0.0
    %3415 = vmatprep.subr.mxu0 0.0
    %3416 = vmatpush1.msra.mxu0 0.0
    %3417 = vmatprep.subr.mxu0 0.0
    %3418 = vmatpush1.msra.mxu0 0.0
    %3419 = vmatprep.mubr.f32.mxu0 0.0
    %3420 = vmatmul.mubr.f32.gmra.mrb[0].mxu0 %v3353
    %v3421 = vpop.f32.mrb[0].mxu0
    %v3422 = vadd.f32 %v3341, %v3421
    %v3423 = vpop.f32.mrb[0].mxu0
    %3424 = vdwg.mxu0
    %v3425 = vmax.f32 %v3422, 0.0
    %v3426 = vld [vmem:[%s11] sm:$0xff]
    %v3427 = vld [vmem:[%s11 + $0x8] sm:$0xff]
    %v3428 = vld [vmem:[%s11 + $0x10] sm:$0xff]
    %v3429 = vld [vmem:[%s11 + $0x18] sm:$0xff]
    %v3430 = vld [vmem:[%s11 + $0x20] sm:$0xff]
    %v3431 = vld [vmem:[%s11 + $0x28] sm:$0xff]
    %v3432 = vld [vmem:[%s11 + $0x30] sm:$0xff]
    %v3433 = vld [vmem:[%s11 + $0x38] sm:$0xff]
    %v3434 = vld [vmem:[%s11 + $0x40] sm:$0xff]
    %v3435 = vld [vmem:[%s11 + $0x48] sm:$0xff]
    %v3436 = vld [vmem:[%s11 + $0x50] sm:$0xff]
    %v3437 = vld [vmem:[%s11 + $0x58] sm:$0xff]
    %v3438 = vld [vmem:[%s11 + $0x60] sm:$0xff]
    %v3439 = vld [vmem:[%s11 + $0x68] sm:$0xff]
    %v3440 = vld [vmem:[%s11 + $0x70] sm:$0xff]
    %v3441 = vld [vmem:[%s11 + $0x78] sm:$0xff]
    %v3442 = vld [vmem:[#allocation10] sm:$0x1]
    %v3444 = vlaneseq
    %v3445 = vshrl.u32 %v3444, 7
    %v3446 = vsub.s32 0, %v3445
    %v3447 = vrot.slane %v3442, %v3446
    %3449 = vmatprep.subr.mxu0 0.0
    %3450 = vmatpush1.msra.mxu0 %v3426
    %3451 = vmatprep.subr.mxu0 0.0
    %3452 = vmatpush1.msra.mxu0 %v3427
    %3453 = vmatprep.subr.mxu0 0.0
    %3454 = vmatpush1.msra.mxu0 %v3428
    %3455 = vmatprep.subr.mxu0 0.0
    %3456 = vmatpush1.msra.mxu0 %v3429
    %3457 = vmatprep.subr.mxu0 0.0
    %3458 = vmatpush1.msra.mxu0 %v3430
    %3459 = vmatprep.subr.mxu0 0.0
    %3460 = vmatpush1.msra.mxu0 %v3431
    %3461 = vmatprep.subr.mxu0 0.0
    %3462 = vmatpush1.msra.mxu0 %v3432
    %3463 = vmatprep.subr.mxu0 0.0
    %3464 = vmatpush1.msra.mxu0 %v3433
    %3465 = vmatprep.subr.mxu0 0.0
    %3466 = vmatpush1.msra.mxu0 %v3434
    %3467 = vmatprep.subr.mxu0 0.0
    %3468 = vmatpush1.msra.mxu0 %v3435
    %3469 = vmatprep.subr.mxu0 0.0
    %3470 = vmatpush1.msra.mxu0 %v3436
    %3471 = vmatprep.subr.mxu0 0.0
    %3472 = vmatpush1.msra.mxu0 %v3437
    %3473 = vmatprep.subr.mxu0 0.0
    %3474 = vmatpush1.msra.mxu0 %v3438
    %3475 = vmatprep.subr.mxu0 0.0
    %3476 = vmatpush1.msra.mxu0 %v3439
    %3477 = vmatprep.subr.mxu0 0.0
    %3478 = vmatpush1.msra.mxu0 %v3440
    %3479 = vmatprep.subr.mxu0 0.0
    %3480 = vmatpush1.msra.mxu0 %v3441
    %3481 = vmatprep.subr.mxu0 0.0
    %3482 = vmatpush1.msra.mxu0 0.0
    %3483 = vmatprep.subr.mxu0 0.0
    %3484 = vmatpush1.msra.mxu0 0.0
    %3485 = vmatprep.subr.mxu0 0.0
    %3486 = vmatpush1.msra.mxu0 0.0
    %3487 = vmatprep.subr.mxu0 0.0
    %3488 = vmatpush1.msra.mxu0 0.0
    %3489 = vmatprep.subr.mxu0 0.0
    %3490 = vmatpush1.msra.mxu0 0.0
    %3491 = vmatprep.subr.mxu0 0.0
    %3492 = vmatpush1.msra.mxu0 0.0
    %3493 = vmatprep.subr.mxu0 0.0
    %3494 = vmatpush1.msra.mxu0 0.0
    %3495 = vmatprep.subr.mxu0 0.0
    %3496 = vmatpush1.msra.mxu0 0.0
    %3497 = vmatprep.subr.mxu0 0.0
    %3498 = vmatpush1.msra.mxu0 0.0
    %3499 = vmatprep.subr.mxu0 0.0
    %3500 = vmatpush1.msra.mxu0 0.0
    %3501 = vmatprep.subr.mxu0 0.0
    %3502 = vmatpush1.msra.mxu0 0.0
    %3503 = vmatprep.subr.mxu0 0.0
    %3504 = vmatpush1.msra.mxu0 0.0
    %3505 = vmatprep.subr.mxu0 0.0
    %3506 = vmatpush1.msra.mxu0 0.0
    %3507 = vmatprep.subr.mxu0 0.0
    %3508 = vmatpush1.msra.mxu0 0.0
    %3509 = vmatprep.subr.mxu0 0.0
    %3510 = vmatpush1.msra.mxu0 0.0
    %3511 = vmatprep.subr.mxu0 0.0
    %3512 = vmatpush1.msra.mxu0 0.0
    %3513 = vmatprep.mubr.f32.mxu0 0.0
    %3514 = vmatmul.mubr.f32.gmra.mrb[0].mxu0 %v3425
    %v3515 = vpop.f32.mrb[0].mxu0
    %v3516 = vadd.f32 %v3447, %v3515
    %v3517 = vpop.f32.mrb[0].mxu0
    %3518 = vdwg.mxu0
    %v3521 = vunpack.c.l.s4 1983009808
    %v3522 = vunpack.c.0.s8 %v3521
    %v3523 = vlaneseq
    %v3524 = vshrl.u32 %v3523, 7
    %v3525 = vsub.s32 %v3522, %v3524
    %v3526 = vrot.slane %v3516, %v3525
    %v3527 = vcombine.high %v3526, %v3526
    %vm3530 = vcmask 254976
    %v3531 = vsel %vm3530, %v3526, 0.0
    %v3532 = vrot.slane %v3531, 4
    %v3533 = vadd.f32 %v3531, %v3532
    %v3534 = vrot.slane %v3533, 2
    %v3535 = vadd.f32 %v3533, %v3534
    %v3536 = vrot.slane %v3535, 1
    %v3537 = vadd.f32 %v3535, %v3536
    %v3538 = vsel %vm3530, %v3527, 0.0
    %v3539 = vrot.slane %v3538, 4
    %v3540 = vadd.f32 %v3538, %v3539
    %v3541 = vrot.slane %v3540, 2
    %v3542 = vadd.f32 %v3540, %v3541
    %v3543 = vrot.slane %v3542, 1
    %v3544 = vadd.f32 %v3542, %v3543
    %v3547 = vsel %vm3347, %v3544, %v3537
    %vm3549 = vcmask 1041408
    %v3550 = vsel %vm3549, %v3547, 0.0
    %v3551 = vld [vmem:[#allocation12] sm:$0xff]
    %v3552 = vld [vmem:[#allocation12 + $0x8] sm:$0xff]
    %v3553 = vld [vmem:[#allocation12 + $0x10] sm:$0xff]
    %v3554 = vld [vmem:[#allocation12 + $0x18] sm:$0xff]
    %v3555 = vld [vmem:[#allocation13] sm:$0x1]
    %v3557 = vlaneseq
    %v3558 = vshrl.u32 %v3557, 7
    %v3559 = vsub.s32 0, %v3558
    %v3560 = vrot.slane %v3555, %v3559
    %vm3562 = vcmask 261120
    %v3564 = vsel %vm3562, %v3550, 0
    %3566 = vmatprep.subr.mxu0 0.0
    %3567 = vmatpush1.msra.mxu0 %v3551
    %3568 = vmatprep.subr.mxu0 0.0
    %3569 = vmatpush1.msra.mxu0 %v3552
    %3570 = vmatprep.subr.mxu0 0.0
    %3571 = vmatpush1.msra.mxu0 %v3553
    %3572 = vmatprep.subr.mxu0 0.0
    %3573 = vmatpush1.msra.mxu0 %v3554
    %3574 = vmatprep.subr.mxu0 0.0
    %3575 = vmatpush1.msra.mxu0 0.0
    %3576 = vmatprep.subr.mxu0 0.0
    %3577 = vmatpush1.msra.mxu0 0.0
    %3578 = vmatprep.subr.mxu0 0.0
    %3579 = vmatpush1.msra.mxu0 0.0
    %3580 = vmatprep.subr.mxu0 0.0
    %3581 = vmatpush1.msra.mxu0 0.0
    %3582 = vmatprep.subr.mxu0 0.0
    %3583 = vmatpush1.msra.mxu0 0.0
    %3584 = vmatprep.subr.mxu0 0.0
    %3585 = vmatpush1.msra.mxu0 0.0
    %3586 = vmatprep.subr.mxu0 0.0
    %3587 = vmatpush1.msra.mxu0 0.0
    %3588 = vmatprep.subr.mxu0 0.0
    %3589 = vmatpush1.msra.mxu0 0.0
    %3590 = vmatprep.subr.mxu0 0.0
    %3591 = vmatpush1.msra.mxu0 0.0
    %3592 = vmatprep.subr.mxu0 0.0
    %3593 = vmatpush1.msra.mxu0 0.0
    %3594 = vmatprep.subr.mxu0 0.0
    %3595 = vmatpush1.msra.mxu0 0.0
    %3596 = vmatprep.subr.mxu0 0.0
    %3597 = vmatpush1.msra.mxu0 0.0
    %3598 = vmatprep.subr.mxu0 0.0
    %3599 = vmatpush1.msra.mxu0 0.0
    %3600 = vmatprep.subr.mxu0 0.0
    %3601 = vmatpush1.msra.mxu0 0.0
    %3602 = vmatprep.subr.mxu0 0.0
    %3603 = vmatpush1.msra.mxu0 0.0
    %3604 = vmatprep.subr.mxu0 0.0
    %3605 = vmatpush1.msra.mxu0 0.0
    %3606 = vmatprep.subr.mxu0 0.0
    %3607 = vmatpush1.msra.mxu0 0.0
    %3608 = vmatprep.subr.mxu0 0.0
    %3609 = vmatpush1.msra.mxu0 0.0
    %3610 = vmatprep.subr.mxu0 0.0
    %3611 = vmatpush1.msra.mxu0 0.0
    %3612 = vmatprep.subr.mxu0 0.0
    %3613 = vmatpush1.msra.mxu0 0.0
    %3614 = vmatprep.subr.mxu0 0.0
    %3615 = vmatpush1.msra.mxu0 0.0
    %3616 = vmatprep.subr.mxu0 0.0
    %3617 = vmatpush1.msra.mxu0 0.0
    %3618 = vmatprep.subr.mxu0 0.0
    %3619 = vmatpush1.msra.mxu0 0.0
    %3620 = vmatprep.subr.mxu0 0.0
    %3621 = vmatpush1.msra.mxu0 0.0
    %3622 = vmatprep.subr.mxu0 0.0
    %3623 = vmatpush1.msra.mxu0 0.0
    %3624 = vmatprep.subr.mxu0 0.0
    %3625 = vmatpush1.msra.mxu0 0.0
    %3626 = vmatprep.subr.mxu0 0.0
    %3627 = vmatpush1.msra.mxu0 0.0
    %3628 = vmatprep.subr.mxu0 0.0
    %3629 = vmatpush1.msra.mxu0 0.0
    %3630 = vmatprep.mubr.f32.mxu0 0.0
    %3631 = vmatmul.mubr.f32.gmra.mrb[0].mxu0 %v3564
    %v3632 = vpop.f32.mrb[0].mxu0
    %v3633 = vadd.f32 %v3560, %v3632
    %v3634 = vpop.f32.mrb[0].mxu0
    %3635 = vdwg.mxu0
    %v3636 = vmax.f32 %v3633, 0.0
    %v3637 = vld [vmem:[%s15] sm:$0xff]
    %v3638 = vld [vmem:[%s15 + $0x8] sm:$0xff]
    %v3639 = vld [vmem:[%s15 + $0x10] sm:$0xff]
    %v3640 = vld [vmem:[%s15 + $0x18] sm:$0xff]
    %v3641 = vld [vmem:[%s15 + $0x20] sm:$0xff]
    %v3642 = vld [vmem:[%s15 + $0x28] sm:$0xff]
    %v3643 = vld [vmem:[%s15 + $0x30] sm:$0xff]
    %v3644 = vld [vmem:[%s15 + $0x38] sm:$0xff]
    %v3645 = vld [vmem:[#allocation15] sm:$0x1]
    %v3647 = vlaneseq
    %v3648 = vshrl.u32 %v3647, 7
    %v3649 = vsub.s32 0, %v3648
    %v3650 = vrot.slane %v3645, %v3649
    %v3653 = vsel %vm3171, %v3636, 0
    %3655 = vmatprep.subr.mxu0 0.0
    %3656 = vmatpush1.msra.mxu0 %v3637
    %3657 = vmatprep.subr.mxu0 0.0
    %3658 = vmatpush1.msra.mxu0 %v3638
    %3659 = vmatprep.subr.mxu0 0.0
    %3660 = vmatpush1.msra.mxu0 %v3639
    %3661 = vmatprep.subr.mxu0 0.0
    %3662 = vmatpush1.msra.mxu0 %v3640
    %3663 = vmatprep.subr.mxu0 0.0
    %3664 = vmatpush1.msra.mxu0 %v3641
    %3665 = vmatprep.subr.mxu0 0.0
    %3666 = vmatpush1.msra.mxu0 %v3642
    %3667 = vmatprep.subr.mxu0 0.0
    %3668 = vmatpush1.msra.mxu0 %v3643
    %3669 = vmatprep.subr.mxu0 0.0
    %3670 = vmatpush1.msra.mxu0 %v3644
    %3671 = vmatprep.subr.mxu0 0.0
    %3672 = vmatpush1.msra.mxu0 0.0
    %3673 = vmatprep.subr.mxu0 0.0
    %3674 = vmatpush1.msra.mxu0 0.0
    %3675 = vmatprep.subr.mxu0 0.0
    %3676 = vmatpush1.msra.mxu0 0.0
    %3677 = vmatprep.subr.mxu0 0.0
    %3678 = vmatpush1.msra.mxu0 0.0
    %3679 = vmatprep.subr.mxu0 0.0
    %3680 = vmatpush1.msra.mxu0 0.0
    %3681 = vmatprep.subr.mxu0 0.0
    %3682 = vmatpush1.msra.mxu0 0.0
    %3683 = vmatprep.subr.mxu0 0.0
    %3684 = vmatpush1.msra.mxu0 0.0
    %3685 = vmatprep.subr.mxu0 0.0
    %3686 = vmatpush1.msra.mxu0 0.0
    %3687 = vmatprep.subr.mxu0 0.0
    %3688 = vmatpush1.msra.mxu0 0.0
    %3689 = vmatprep.subr.mxu0 0.0
    %3690 = vmatpush1.msra.mxu0 0.0
    %3691 = vmatprep.subr.mxu0 0.0
    %3692 = vmatpush1.msra.mxu0 0.0
    %3693 = vmatprep.subr.mxu0 0.0
    %3694 = vmatpush1.msra.mxu0 0.0
    %3695 = vmatprep.subr.mxu0 0.0
    %3696 = vmatpush1.msra.mxu0 0.0
    %3697 = vmatprep.subr.mxu0 0.0
    %3698 = vmatpush1.msra.mxu0 0.0
    %3699 = vmatprep.subr.mxu0 0.0
    %3700 = vmatpush1.msra.mxu0 0.0
    %3701 = vmatprep.subr.mxu0 0.0
    %3702 = vmatpush1.msra.mxu0 0.0
    %3703 = vmatprep.subr.mxu0 0.0
    %3704 = vmatpush1.msra.mxu0 0.0
    %3705 = vmatprep.subr.mxu0 0.0
    %3706 = vmatpush1.msra.mxu0 0.0
    %3707 = vmatprep.subr.mxu0 0.0
    %3708 = vmatpush1.msra.mxu0 0.0
    %3709 = vmatprep.subr.mxu0 0.0
    %3710 = vmatpush1.msra.mxu0 0.0
    %3711 = vmatprep.subr.mxu0 0.0
    %3712 = vmatpush1.msra.mxu0 0.0
    %3713 = vmatprep.subr.mxu0 0.0
    %3714 = vmatpush1.msra.mxu0 0.0
    %3715 = vmatprep.subr.mxu0 0.0
    %3716 = vmatpush1.msra.mxu0 0.0
    %3717 = vmatprep.subr.mxu0 0.0
    %3718 = vmatpush1.msra.mxu0 0.0
    %3719 = vmatprep.mubr.f32.mxu0 0.0
    %3720 = vmatmul.mubr.f32.gmra.mrb[0].mxu0 %v3653
    %v3721 = vpop.f32.mrb[0].mxu0
    %v3722 = vadd.f32 %v3650, %v3721
    %v3723 = vpop.f32.mrb[0].mxu0
    %3724 = vdwg.mxu0
    %v3725 = vld [vmem:[%s17] sm:$0xff]
    %v3726 = vld [vmem:[%s17 + $0x8] sm:$0xff]
    %v3727 = vld [vmem:[%s17 + $0x10] sm:$0xff]
    %v3728 = vld [vmem:[%s17 + $0x18] sm:$0xff]
    %v3729 = vld [vmem:[%s17 + $0x20] sm:$0xff]
    %v3730 = vld [vmem:[%s17 + $0x28] sm:$0xff]
    %v3731 = vld [vmem:[%s17 + $0x30] sm:$0xff]
    %v3732 = vld [vmem:[%s17 + $0x38] sm:$0xff]
    %v3733 = vld [vmem:[#allocation16] sm:$0x1]
    %v3735 = vlaneseq
    %v3736 = vshrl.u32 %v3735, 7
    %v3737 = vsub.s32 0, %v3736
    %v3738 = vrot.slane %v3733, %v3737
    %v3741 = vsel %vm3171, %v3722, 0
    %3743 = vmatprep.subr.mxu0 0.0
    %3744 = vmatpush1.msra.mxu0 %v3725
    %3745 = vmatprep.subr.mxu0 0.0
    %3746 = vmatpush1.msra.mxu0 %v3726
    %3747 = vmatprep.subr.mxu0 0.0
    %3748 = vmatpush1.msra.mxu0 %v3727
    %3749 = vmatprep.subr.mxu0 0.0
    %3750 = vmatpush1.msra.mxu0 %v3728
    %3751 = vmatprep.subr.mxu0 0.0
    %3752 = vmatpush1.msra.mxu0 %v3729
    %3753 = vmatprep.subr.mxu0 0.0
    %3754 = vmatpush1.msra.mxu0 %v3730
    %3755 = vmatprep.subr.mxu0 0.0
    %3756 = vmatpush1.msra.mxu0 %v3731
    %3757 = vmatprep.subr.mxu0 0.0
    %3758 = vmatpush1.msra.mxu0 %v3732
    %3759 = vmatprep.subr.mxu0 0.0
    %3760 = vmatpush1.msra.mxu0 0.0
    %3761 = vmatprep.subr.mxu0 0.0
    %3762 = vmatpush1.msra.mxu0 0.0
    %3763 = vmatprep.subr.mxu0 0.0
    %3764 = vmatpush1.msra.mxu0 0.0
    %3765 = vmatprep.subr.mxu0 0.0
    %3766 = vmatpush1.msra.mxu0 0.0
    %3767 = vmatprep.subr.mxu0 0.0
    %3768 = vmatpush1.msra.mxu0 0.0
    %3769 = vmatprep.subr.mxu0 0.0
    %3770 = vmatpush1.msra.mxu0 0.0
    %3771 = vmatprep.subr.mxu0 0.0
    %3772 = vmatpush1.msra.mxu0 0.0
    %3773 = vmatprep.subr.mxu0 0.0
    %3774 = vmatpush1.msra.mxu0 0.0
    %3775 = vmatprep.subr.mxu0 0.0
    %3776 = vmatpush1.msra.mxu0 0.0
    %3777 = vmatprep.subr.mxu0 0.0
    %3778 = vmatpush1.msra.mxu0 0.0
    %3779 = vmatprep.subr.mxu0 0.0
    %3780 = vmatpush1.msra.mxu0 0.0
    %3781 = vmatprep.subr.mxu0 0.0
    %3782 = vmatpush1.msra.mxu0 0.0
    %3783 = vmatprep.subr.mxu0 0.0
    %3784 = vmatpush1.msra.mxu0 0.0
    %3785 = vmatprep.subr.mxu0 0.0
    %3786 = vmatpush1.msra.mxu0 0.0
    %3787 = vmatprep.subr.mxu0 0.0
    %3788 = vmatpush1.msra.mxu0 0.0
    %3789 = vmatprep.subr.mxu0 0.0
    %3790 = vmatpush1.msra.mxu0 0.0
    %3791 = vmatprep.subr.mxu0 0.0
    %3792 = vmatpush1.msra.mxu0 0.0
    %3793 = vmatprep.subr.mxu0 0.0
    %3794 = vmatpush1.msra.mxu0 0.0
    %3795 = vmatprep.subr.mxu0 0.0
    %3796 = vmatpush1.msra.mxu0 0.0
    %3797 = vmatprep.subr.mxu0 0.0
    %3798 = vmatpush1.msra.mxu0 0.0
    %3799 = vmatprep.subr.mxu0 0.0
    %3800 = vmatpush1.msra.mxu0 0.0
    %3801 = vmatprep.subr.mxu0 0.0
    %3802 = vmatpush1.msra.mxu0 0.0
    %3803 = vmatprep.subr.mxu0 0.0
    %3804 = vmatpush1.msra.mxu0 0.0
    %3805 = vmatprep.subr.mxu0 0.0
    %3806 = vmatpush1.msra.mxu0 0.0
    %3807 = vmatprep.mubr.f32.mxu0 0.0
    %3808 = vmatmul.mubr.f32.gmra.mrb[0].mxu0 %v3741
    %v3809 = vpop.f32.mrb[0].mxu0
    %v3810 = vadd.f32 %v3738, %v3809
    %v3811 = vpop.f32.mrb[0].mxu0
    %3812 = vdwg.mxu0
    %v3813 = vmax.f32 %v3810, 0.0
    %v3814 = vld [vmem:[#allocation18] sm:$0xff]
    %v3815 = vld [vmem:[#allocation18 + $0x8] sm:$0xff]
    %v3816 = vld [vmem:[#allocation18 + $0x10] sm:$0xff]
    %v3817 = vld [vmem:[#allocation18 + $0x18] sm:$0xff]
    %v3818 = vld [vmem:[#allocation19] sm:$0x1]
    %v3820 = vlaneseq
    %v3821 = vshrl.u32 %v3820, 7
    %v3822 = vsub.s32 0, %v3821
    %v3823 = vrot.slane %v3818, %v3822
    %v3826 = vsel %vm3562, %v3813, 0
    %3828 = vmatprep.subr.mxu0 0.0
    %3829 = vmatpush1.msra.mxu0 %v3814
    %3830 = vmatprep.subr.mxu0 0.0
    %3831 = vmatpush1.msra.mxu0 %v3815
    %3832 = vmatprep.subr.mxu0 0.0
    %3833 = vmatpush1.msra.mxu0 %v3816
    %3834 = vmatprep.subr.mxu0 0.0
    %3835 = vmatpush1.msra.mxu0 %v3817
    %3836 = vmatprep.subr.mxu0 0.0
    %3837 = vmatpush1.msra.mxu0 0.0
    %3838 = vmatprep.subr.mxu0 0.0
    %3839 = vmatpush1.msra.mxu0 0.0
    %3840 = vmatprep.subr.mxu0 0.0
    %3841 = vmatpush1.msra.mxu0 0.0
    %3842 = vmatprep.subr.mxu0 0.0
    %3843 = vmatpush1.msra.mxu0 0.0
    %3844 = vmatprep.subr.mxu0 0.0
    %3845 = vmatpush1.msra.mxu0 0.0
    %3846 = vmatprep.subr.mxu0 0.0
    %3847 = vmatpush1.msra.mxu0 0.0
    %3848 = vmatprep.subr.mxu0 0.0
    %3849 = vmatpush1.msra.mxu0 0.0
    %3850 = vmatprep.subr.mxu0 0.0
    %3851 = vmatpush1.msra.mxu0 0.0
    %3852 = vmatprep.subr.mxu0 0.0
    %3853 = vmatpush1.msra.mxu0 0.0
    %3854 = vmatprep.subr.mxu0 0.0
    %3855 = vmatpush1.msra.mxu0 0.0
    %3856 = vmatprep.subr.mxu0 0.0
    %3857 = vmatpush1.msra.mxu0 0.0
    %3858 = vmatprep.subr.mxu0 0.0
    %3859 = vmatpush1.msra.mxu0 0.0
    %3860 = vmatprep.subr.mxu0 0.0
    %3861 = vmatpush1.msra.mxu0 0.0
    %3862 = vmatprep.subr.mxu0 0.0
    %3863 = vmatpush1.msra.mxu0 0.0
    %3864 = vmatprep.subr.mxu0 0.0
    %3865 = vmatpush1.msra.mxu0 0.0
    %3866 = vmatprep.subr.mxu0 0.0
    %3867 = vmatpush1.msra.mxu0 0.0
    %3868 = vmatprep.subr.mxu0 0.0
    %3869 = vmatpush1.msra.mxu0 0.0
    %3870 = vmatprep.subr.mxu0 0.0
    %3871 = vmatpush1.msra.mxu0 0.0
    %3872 = vmatprep.subr.mxu0 0.0
    %3873 = vmatpush1.msra.mxu0 0.0
    %3874 = vmatprep.subr.mxu0 0.0
    %3875 = vmatpush1.msra.mxu0 0.0
    %3876 = vmatprep.subr.mxu0 0.0
    %3877 = vmatpush1.msra.mxu0 0.0
    %3878 = vmatprep.subr.mxu0 0.0
    %3879 = vmatpush1.msra.mxu0 0.0
    %3880 = vmatprep.subr.mxu0 0.0
    %3881 = vmatpush1.msra.mxu0 0.0
    %3882 = vmatprep.subr.mxu0 0.0
    %3883 = vmatpush1.msra.mxu0 0.0
    %3884 = vmatprep.subr.mxu0 0.0
    %3885 = vmatpush1.msra.mxu0 0.0
    %3886 = vmatprep.subr.mxu0 0.0
    %3887 = vmatpush1.msra.mxu0 0.0
    %3888 = vmatprep.subr.mxu0 0.0
    %3889 = vmatpush1.msra.mxu0 0.0
    %3890 = vmatprep.subr.mxu0 0.0
    %3891 = vmatpush1.msra.mxu0 0.0
    %3892 = vmatprep.mubr.f32.mxu0 0.0
    %3893 = vmatmul.mubr.f32.gmra.mrb[0].mxu0 %v3826
    %v3894 = vpop.f32.mrb[0].mxu0
    %v3895 = vadd.f32 %v3823, %v3894
    %v3896 = vpop.f32.mrb[0].mxu0
    %3897 = vdwg.mxu0
    %v3898 = vlaneseq
    %v3899 = vand.u32 %v3898, 127
    %vm3900 = vcmp.eq.s32.totalorder %v3899, 1
    %v3901 = vsel %vm3900, %v3895, 0.0
    %v3902 = vmul.f32 %v3901, 1.442695
    %v3903 = vpow.pop %v3902
    %v3904 = vsel %vm3900, %v3903, %v3895
    %3905 = vst [vmem:[%s21] sm:$0xff] %v3904
    // Predicated region
    $region134: #{tcnnds_forward.1} parent=1 // pred_check
      _
    $region135: #{tcnnds_forward.1} parent=1 // pred_check_branch
      %3907 = sbr.rel (0) target = $region137
    $region136: #{tcnnds_forward.1} parent=1 // pred_region
      _
    $region137: #{tcnnds_forward.1} parent=1 // pred_fallthru
      _
    // Predicated region
    $region138: #{tcnnds_forward.1} parent=1 // pred_check
      _
    $region139: #{tcnnds_forward.1} parent=1 // pred_check_branch
      %3909 = sbr.rel (0) target = $region141
    $region140: #{tcnnds_forward.1} parent=1 // pred_region
      _
    $region141: #{tcnnds_forward.1} parent=1 // pred_fallthru
      _
    %3910 = vsyncpa [#allocation3], 1
    %3911 = vsyncpa [#allocation5], 1
    %3912 = vsyncpa [#allocation8], 1
    %3913 = vsyncpa [#allocation11], 1
    %3914 = vsyncpa [#allocation14], 1
    %3915 = vsyncpa [#allocation17], 1
    %3916 = vsyncpa [#allocation20], 1

</llo_original>
